<compile_context>
chip_gen: v7x
topology: tpu7x:2x2x1
jax: 0.10.0
libtpu: 0.0.40
codegen_flags: <defaults>
</compile_context>

<pallas_src>
import math

import jax
import jax.numpy as jnp
from jax.experimental import pallas as pl
from jax.experimental.pallas import tpu as pltpu


def _round_up(x, m):
    return ((x + m - 1) // m) * m


def _device_info():
    """Return (device_kind, vmem_capacity_bytes, tensorcores_per_chip, bf16_epilogue_ok)."""
    kind = ""
    try:
        kind = jax.devices()[0].device_kind.lower()
    except Exception:
        pass
    try:
        vmem = int(pltpu.get_tpu_info().vmem_capacity_bytes)
    except Exception:
        vmem = 64 << 20  # conservative (v7x-sized) fallback
    is_v7 = ("v7" in kind) or ("7x" in kind)
    num_tc = 2 if is_v7 else 1
    # v5e has no bf16 VPU/EUP -> keep the elementwise epilogue in f32 there (and on
    # unknown chips, which is always numerically safe).
    bf16_epilogue = is_v7 or ("v6" in kind)
    return kind, vmem, num_tc, bf16_epilogue


def _choose_tile_m(B, num_tc, max_tile=1024):
    if B <= 8:
        return B  # single full-extent block (legal even when not a multiple of 8)
    if num_tc <= 1:
        # v5e/v6e: the grid is a sequential loop on one TensorCore -> biggest tile,
        # ideally a single grid step, to amortize step overhead and MXU weight pushes.
        return B if B <= max_tile else max_tile
    # v7x: grid steps shard across the 2 TensorCores; keep the step count a multiple
    # of num_tc so neither core idles on a tail step.
    cap = min(max_tile, 512)
    for k in range(1, 1024):
        t = _round_up(pl.cdiv(B, num_tc * k), 8)
        if t <= cap:
            return t
    return cap


def _make_mlp_kernel(compute_dtype, epilogue_dtype):
    def silu(h):
        # SiLU via tanh: sigmoid(h) = 0.5*(1 + tanh(h/2)).  tanh rides the EUP slot;
        # the remaining ops are cheap VALU mul/adds (bf16 on v6e/v7x, f32 on v5e).
        return h * (0.5 * (jnp.tanh(h * 0.5) + 1.0))

    def kernel(x_ref, w1_ref, b1_ref, w2_ref, b2_ref, w3_ref, b3_ref, o_ref):
        # Cast the input tile to the MXU dtype in-kernel: avoids a separate
        # wrapper-side HBM cast pass; the cast hides under the matmul.
        x = x_ref[...].astype(compute_dtype)

        h = jnp.dot(x, w1_ref[...], preferred_element_type=jnp.float32)
        h = h.astype(epilogue_dtype) + b1_ref[...].astype(epilogue_dtype)
        h = silu(h).astype(compute_dtype)

        h = jnp.dot(h, w2_ref[...], preferred_element_type=jnp.float32)
        h = h.astype(epilogue_dtype) + b2_ref[...].astype(epilogue_dtype)
        h = silu(h).astype(compute_dtype)

        out = jnp.dot(h, w3_ref[...], preferred_element_type=jnp.float32)
        out = out + b3_ref[...]                      # final bias-add in f32
        o_ref[...] = out.astype(o_ref.dtype)

    return kernel


def mlp_pallas(x, params, *, tile_m=None, out_dtype=None, epilogue_dtype=None):
    """x: (B, in_dim) any float dtype.  params: w1/w2/w3 as (fan_in, fan_out) in the
    compute dtype (bf16 recommended), b1/b2/b3 as (1, fan_out) float32.
    Returns (B, out_dim) in `out_dtype` (default: x.dtype)."""
    B, in_dim = x.shape
    hidden = params["w1"].shape[1]
    out_dim = params["w3"].shape[1]
    compute_dtype = params["w1"].dtype
    w_bytes = jnp.dtype(compute_dtype).itemsize
    x_bytes = jnp.dtype(x.dtype).itemsize
    if out_dtype is None:
        out_dtype = x.dtype  # match the PyTorch module's output dtype by default
    out_bytes = jnp.dtype(out_dtype).itemsize

    _, vmem_capacity, num_tc, bf16_ok = _device_info()
    if epilogue_dtype is None:
        epilogue_dtype = jnp.bfloat16 if bf16_ok else jnp.float32

    weights_total = ((in_dim * hidden + hidden * hidden + hidden * out_dim) * w_bytes
                     + (2 * hidden + out_dim) * 4)
    ceiling = int(vmem_capacity * 0.8)  # headroom for Mosaic scratch / semaphores
    if weights_total > vmem_capacity // 3:
        # TODO(synk): add a K/N-tiled variant (accumulator + "arbitrary" grid axis,
        # weights double-buffered along it) for hidden sizes whose weights don't fit
        # in ~1/3 of VMEM; not needed for hidden <= ~2048 bf16.
        raise ValueError(
            f"weights ({weights_total} B) too large to stay VMEM-resident "
            f"({vmem_capacity} B VMEM); weight-tiled variant not implemented.")

    if tile_m is None:
        tile_m = _choose_tile_m(B, num_tc)
    tile_m = int(min(tile_m, B))
    if tile_m < B and tile_m % 8 != 0:
        tile_m = min(_round_up(tile_m, 8), B)

    def footprint(t):
        # double-buffered x tile + double-buffered out tile + f32 intermediates + weights
        return (2 * t * in_dim * x_bytes + 2 * t * out_dim * out_bytes
                + 2 * t * hidden * 4 + weights_total)

    while tile_m > 16 and 2 * footprint(tile_m) + (8 << 20) > ceiling:
        tile_m = _round_up(max(tile_m // 2, 16), 8)

    vmem_limit = int(min(max(2 * footprint(tile_m) + (8 << 20), 32 << 20), ceiling))

    grid = (pl.cdiv(B, tile_m),)  # ragged final block handled by Pallas masking

    def const_spec(shape):
        # Constant index_map -> weights/biases stay resident across the grid; a single
        # buffer (no double-buffering) halves their VMEM footprint.
        return pl.BlockSpec(shape, lambda i: (0, 0),
                            pipeline_mode=pl.Buffered(buffer_count=1))

    flops = 2 * B * (in_dim * hidden + hidden * hidden + hidden * out_dim)
    transcendentals = 2 * B * hidden  # one tanh per hidden element per SiLU layer
    bytes_accessed = (B * in_dim * x_bytes + weights_total + B * out_dim * out_bytes)

    kernel = _make_mlp_kernel(compute_dtype, epilogue_dtype)

    return pl.pallas_call(
        kernel,
        out_shape=jax.ShapeDtypeStruct((B, out_dim), out_dtype),
        grid_spec=pltpu.PrefetchScalarGridSpec(
            num_scalar_prefetch=0,
            grid=grid,
            in_specs=[
                pl.BlockSpec((tile_m, in_dim), lambda i: (i, 0)),  # x tile (pipelined)
                const_spec((in_dim, hidden)),    # w1
                const_spec((1, hidden)),         # b1 (f32)
                const_spec((hidden, hidden)),    # w2
                const_spec((1, hidden)),         # b2 (f32)
                const_spec((hidden, out_dim)),   # w3
                const_spec((1, out_dim)),        # b3 (f32)
            ],
            out_specs=pl.BlockSpec((tile_m, out_dim), lambda i: (i, 0)),
        ),
        compiler_params=pltpu.CompilerParams(
            dimension_semantics=("parallel",),
            vmem_limit_bytes=vmem_limit,
        ),
        cost_estimate=pl.CostEstimate(
            flops=int(flops),
            transcendentals=int(transcendentals),
            bytes_accessed=int(bytes_accessed),
        ),
    )(x, params["w1"], params["b1"], params["w2"], params["b2"],
      params["w3"], params["b3"])


def init_mlp_params(key, in_dim, out_dim, hidden, dtype=jnp.bfloat16):
    """PyTorch nn.Linear-style init (uniform +-1/sqrt(fan_in)).  Weights stored in
    (fan_in, fan_out) layout in `dtype`; biases kept in float32."""
    keys = jax.random.split(key, 6)

    def linear(kw, kb, fan_in, fan_out):
        bound = 1.0 / math.sqrt(fan_in)
        w = jax.random.uniform(kw, (fan_in, fan_out), jnp.float32, -bound, bound).astype(dtype)
        b = jax.random.uniform(kb, (1, fan_out), jnp.float32, -bound, bound)
        return w, b

    w1, b1 = linear(keys[0], keys[1], in_dim, hidden)
    w2, b2 = linear(keys[2], keys[3], hidden, hidden)
    w3, b3 = linear(keys[4], keys[5], hidden, out_dim)
    return {"w1": w1, "b1": b1, "w2": w2, "b2": b2, "w3": w3, "b3": b3}


def mlp_reference(x, params):
    """Pure-JAX reference (bf16 MXU inputs, f32 accumulation, f32 exact-sigmoid SiLU)."""
    cdt = params["w1"].dtype
    h = jnp.dot(x.astype(cdt), params["w1"], preferred_element_type=jnp.float32) + params["b1"]
    h = h * jax.nn.sigmoid(h)
    h = jnp.dot(h.astype(cdt), params["w2"], preferred_element_type=jnp.float32) + params["b2"]
    h = h * jax.nn.sigmoid(h)
    return jnp.dot(h.astype(cdt), params["w3"], preferred_element_type=jnp.float32) + params["b3"]


if __name__ == "__main__":
    # MXU/lane-friendly demo shapes: hidden matches the module default (512),
    # in/out dims are multiples of 128 (unmasked lane-dense stores).
    B, in_dim, hidden, out_dim = 256, 128, 512, 128

    key = jax.random.PRNGKey(0)
    k_x, k_p = jax.random.split(key)
    x = jax.random.normal(k_x, (B, in_dim), jnp.float32)
    params = init_mlp_params(k_p, in_dim, out_dim, hidden, dtype=jnp.bfloat16)

    out = mlp_pallas(x, params)   # tile_m auto: grid=(1,) on v5e/v6e, grid=(2,) on v7x
    out = jax.block_until_ready(out)

    ref = mlp_reference(x, params)
    assert out.shape == (B, out_dim), out.shape
    out_f32 = out.astype(jnp.float32)
    max_err = float(jnp.max(jnp.abs(out_f32 - ref)))
    assert jnp.allclose(out_f32, ref, atol=2e-2, rtol=2e-2), \
        f"mismatch vs reference (max abs err {max_err})"

    print("KERNEL_OK")
</pallas_src>

<mosaic_0001>
module attributes {stable_mosaic.version = 11 : i64} {
  func.func @kernel(%arg0: i32, %arg1: memref<256x128xf32, #tpu.memory_space<vmem>>, %arg2: memref<128x512xbf16, #tpu.memory_space<vmem>>, %arg3: memref<1x512xf32, #tpu.memory_space<vmem>>, %arg4: memref<512x512xbf16, #tpu.memory_space<vmem>>, %arg5: memref<1x512xf32, #tpu.memory_space<vmem>>, %arg6: memref<512x128xbf16, #tpu.memory_space<vmem>>, %arg7: memref<1x128xf32, #tpu.memory_space<vmem>>, %arg8: memref<256x128xf32, #tpu.memory_space<vmem>>) attributes {dimension_semantics = [#tpu.dimension_semantics<parallel>], iteration_bounds = array<i64: 1>, scalar_prefetch = 0 : i64, scratch_operands = 0 : i64, tpu.core_type = #tpu.core_type<tc>, window_params = [{transform_indices = @transform_0, window_bounds = array<i64: 256, 128>}, {pipeline_mode = #tpu.pipeline_mode<synchronous>, transform_indices = @transform_1, window_bounds = array<i64: 128, 512>}, {pipeline_mode = #tpu.pipeline_mode<synchronous>, transform_indices = @transform_2, window_bounds = array<i64: 1, 512>}, {pipeline_mode = #tpu.pipeline_mode<synchronous>, transform_indices = @transform_3, window_bounds = array<i64: 512, 512>}, {pipeline_mode = #tpu.pipeline_mode<synchronous>, transform_indices = @transform_4, window_bounds = array<i64: 1, 512>}, {pipeline_mode = #tpu.pipeline_mode<synchronous>, transform_indices = @transform_5, window_bounds = array<i64: 512, 128>}, {pipeline_mode = #tpu.pipeline_mode<synchronous>, transform_indices = @transform_6, window_bounds = array<i64: 1, 128>}, {transform_indices = @transform_7, window_bounds = array<i64: 256, 128>}]} {
    %c0 = arith.constant 0 : index
    %c0_0 = arith.constant 0 : index
    %0 = vector.load %arg1[%c0, %c0_0] : memref<256x128xf32, #tpu.memory_space<vmem>>, vector<256x128xf32>
    %1 = arith.truncf %0 : vector<256x128xf32> to vector<256x128xbf16>
    %c0_1 = arith.constant 0 : index
    %c0_2 = arith.constant 0 : index
    %2 = vector.load %arg2[%c0_1, %c0_2] : memref<128x512xbf16, #tpu.memory_space<vmem>>, vector<128x512xbf16>
    %cst = arith.constant dense<0.000000e+00> : vector<256x512xf32>
    %3 = tpu.matmul %1, %2, %cst {dimension_numbers = #tpu.dot_dimension_numbers<[1], [0], [0], [1], [0, 0, 1, 1], [], []>} : vector<256x128xbf16>, vector<128x512xbf16>, vector<256x512xf32> -> vector<256x512xf32>
    %c0_3 = arith.constant 0 : index
    %c0_4 = arith.constant 0 : index
    %4 = vector.load %arg3[%c0_3, %c0_4] : memref<1x512xf32, #tpu.memory_space<vmem>>, vector<1x512xf32>
    %5 = vector.broadcast %4 : vector<1x512xf32> to vector<256x512xf32>
    %6 = arith.addf %3, %5 : vector<256x512xf32>
    %cst_5 = arith.constant 5.000000e-01 : f32
    %7 = vector.broadcast %cst_5 : f32 to vector<256x512xf32>
    %8 = arith.mulf %6, %7 : vector<256x512xf32>
    %9 = math.tanh %8 : vector<256x512xf32>
    %cst_6 = arith.constant 1.000000e+00 : f32
    %10 = vector.broadcast %cst_6 : f32 to vector<256x512xf32>
    %11 = arith.addf %9, %10 : vector<256x512xf32>
    %cst_7 = arith.constant 5.000000e-01 : f32
    %12 = vector.broadcast %cst_7 : f32 to vector<256x512xf32>
    %13 = arith.mulf %12, %11 : vector<256x512xf32>
    %14 = arith.mulf %6, %13 : vector<256x512xf32>
    %15 = arith.truncf %14 : vector<256x512xf32> to vector<256x512xbf16>
    %c0_8 = arith.constant 0 : index
    %c0_9 = arith.constant 0 : index
    %16 = vector.load %arg4[%c0_8, %c0_9] : memref<512x512xbf16, #tpu.memory_space<vmem>>, vector<512x512xbf16>
    %cst_10 = arith.constant dense<0.000000e+00> : vector<256x512xf32>
    %17 = tpu.matmul %15, %16, %cst_10 {dimension_numbers = #tpu.dot_dimension_numbers<[1], [0], [0], [1], [0, 0, 1, 1], [], []>} : vector<256x512xbf16>, vector<512x512xbf16>, vector<256x512xf32> -> vector<256x512xf32>
    %c0_11 = arith.constant 0 : index
    %c0_12 = arith.constant 0 : index
    %18 = vector.load %arg5[%c0_11, %c0_12] : memref<1x512xf32, #tpu.memory_space<vmem>>, vector<1x512xf32>
    %19 = vector.broadcast %18 : vector<1x512xf32> to vector<256x512xf32>
    %20 = arith.addf %17, %19 : vector<256x512xf32>
    %cst_13 = arith.constant 5.000000e-01 : f32
    %21 = vector.broadcast %cst_13 : f32 to vector<256x512xf32>
    %22 = arith.mulf %20, %21 : vector<256x512xf32>
    %23 = math.tanh %22 : vector<256x512xf32>
    %cst_14 = arith.constant 1.000000e+00 : f32
    %24 = vector.broadcast %cst_14 : f32 to vector<256x512xf32>
    %25 = arith.addf %23, %24 : vector<256x512xf32>
    %cst_15 = arith.constant 5.000000e-01 : f32
    %26 = vector.broadcast %cst_15 : f32 to vector<256x512xf32>
    %27 = arith.mulf %26, %25 : vector<256x512xf32>
    %28 = arith.mulf %20, %27 : vector<256x512xf32>
    %29 = arith.truncf %28 : vector<256x512xf32> to vector<256x512xbf16>
    %c0_16 = arith.constant 0 : index
    %c0_17 = arith.constant 0 : index
    %30 = vector.load %arg6[%c0_16, %c0_17] : memref<512x128xbf16, #tpu.memory_space<vmem>>, vector<512x128xbf16>
    %cst_18 = arith.constant dense<0.000000e+00> : vector<256x128xf32>
    %31 = tpu.matmul %29, %30, %cst_18 {dimension_numbers = #tpu.dot_dimension_numbers<[1], [0], [0], [1], [0, 0, 1, 1], [], []>} : vector<256x512xbf16>, vector<512x128xbf16>, vector<256x128xf32> -> vector<256x128xf32>
    %c0_19 = arith.constant 0 : index
    %c0_20 = arith.constant 0 : index
    %32 = vector.load %arg7[%c0_19, %c0_20] : memref<1x128xf32, #tpu.memory_space<vmem>>, vector<1x128xf32>
    %33 = vector.broadcast %32 : vector<1x128xf32> to vector<256x128xf32>
    %34 = arith.addf %31, %33 : vector<256x128xf32>
    %c0_21 = arith.constant 0 : index
    %c0_22 = arith.constant 0 : index
    %35 = vector.load %arg8[%c0_21, %c0_22] : memref<256x128xf32, #tpu.memory_space<vmem>>, vector<256x128xf32>
    tpu.vector_store %arg8[%c0_21, %c0_22], %34 {strides = array<i32>} : memref<256x128xf32, #tpu.memory_space<vmem>>, vector<256x128xf32>,
    return
  }
  func.func @transform_0(%arg0: i32) -> (i32, i32) {
    %c0_i32 = arith.constant 0 : i32
    %c0_i32_0 = arith.constant 0 : i32
    return %arg0, %c0_i32 : i32, i32
  }
  func.func @transform_1(%arg0: i32) -> (i32, i32) {
    %c0_i32 = arith.constant 0 : i32
    %c0_i32_0 = arith.constant 0 : i32
    %c0_i32_1 = arith.constant 0 : i32
    return %c0_i32, %c0_i32_0 : i32, i32
  }
  func.func @transform_2(%arg0: i32) -> (i32, i32) {
    %c0_i32 = arith.constant 0 : i32
    %c0_i32_0 = arith.constant 0 : i32
    %c0_i32_1 = arith.constant 0 : i32
    return %c0_i32, %c0_i32_0 : i32, i32
  }
  func.func @transform_3(%arg0: i32) -> (i32, i32) {
    %c0_i32 = arith.constant 0 : i32
    %c0_i32_0 = arith.constant 0 : i32
    %c0_i32_1 = arith.constant 0 : i32
    return %c0_i32, %c0_i32_0 : i32, i32
  }
  func.func @transform_4(%arg0: i32) -> (i32, i32) {
    %c0_i32 = arith.constant 0 : i32
    %c0_i32_0 = arith.constant 0 : i32
    %c0_i32_1 = arith.constant 0 : i32
    return %c0_i32, %c0_i32_0 : i32, i32
  }
  func.func @transform_5(%arg0: i32) -> (i32, i32) {
    %c0_i32 = arith.constant 0 : i32
    %c0_i32_0 = arith.constant 0 : i32
    %c0_i32_1 = arith.constant 0 : i32
    return %c0_i32, %c0_i32_0 : i32, i32
  }
  func.func @transform_6(%arg0: i32) -> (i32, i32) {
    %c0_i32 = arith.constant 0 : i32
    %c0_i32_0 = arith.constant 0 : i32
    %c0_i32_1 = arith.constant 0 : i32
    return %c0_i32, %c0_i32_0 : i32, i32
  }
  func.func @transform_7(%arg0: i32) -> (i32, i32) {
    %c0_i32 = arith.constant 0 : i32
    %c0_i32_0 = arith.constant 0 : i32
    return %arg0, %c0_i32 : i32, i32
  }
}

</mosaic_0001>

<llo_original>
// kernel: tpu_custom_call.1
$region0: #{tpu_custom_call.1}
  #allocation0 [shape = 'u32[]', space=smem, size = 0x4, offset = 0x4, fixed_abs, tag = 'smem constant byte address 0x4 - core index']
  #allocation1 [shape = 'u32[144,128]{1,0:T(1,128)}', space=vmem, size = 0x12000, scoped, tag = 'internal scratch']
  %s0 = inlined_call_operand.hbm [shape: f32[256,128], index: 0, kind: input, shape index: {}]
  %s1 = inlined_call_operand.hbm [shape: bf16[128,512], index: 1, kind: input, shape index: {}]
  %s2 = inlined_call_operand.vmem [shape: f32[1,512], index: 2, kind: input, shape index: {}]
  %s3 = inlined_call_operand.hbm [shape: bf16[512,512], index: 3, kind: input, shape index: {}]
  %s4 = inlined_call_operand.vmem [shape: f32[1,512], index: 4, kind: input, shape index: {}]
  %s5 = inlined_call_operand.hbm [shape: bf16[512,128], index: 5, kind: input, shape index: {}]
  %s6 = inlined_call_operand.vmem [shape: f32[1,128], index: 6, kind: input, shape index: {}]
  %s7 = inlined_call_operand.hbm [shape: f32[256,128], index: 7, kind: output, shape index: {}]
  %s8 = sld [smem:[#allocation0]]
  $region54: #{tpu_custom_call.1} parent=0
    _
  %s10 = ssub.s32 1, %s8
  %s11 = scalar_select 0, %s10, %s8
  $region1: #{tpu_custom_call.1} parent=0
    #allocation2 [shape = 'u8[131072]{0}', space=vmem, size = 0x20000, scoped, tag = 'input window, operand 0, single buffered']
    #allocation3 [shape = 's32[1]{0}', space=sflag, size = 0x4, scoped, tag = 'scoped memory for tpu_custom_call.1']
    #allocation4 [shape = 's32[1]{0}', space=sflag, size = 0x4, scoped, tag = 'scoped memory for tpu_custom_call.1']
    #allocation5 [shape = 'u8[131072]{0}', space=vmem, size = 0x20000, scoped, tag = 'input window, operand 1, single buffered']
    #allocation6 [shape = 's32[1]{0}', space=sflag, size = 0x4, scoped, tag = 'scoped memory for tpu_custom_call.1']
    #allocation7 [shape = 'u8[524288]{0}', space=vmem, size = 0x80000, scoped, tag = 'input window, operand 3, single buffered']
    #allocation8 [shape = 'u8[131072]{0}', space=vmem, size = 0x20000, scoped, tag = 'input window, operand 5, single buffered']
    #allocation9 [shape = 's32[1]{0}', space=sflag, size = 0x4, scoped, tag = 'scoped memory for tpu_custom_call.1']
    #allocation10 [shape = 'u8[131072]{0}', space=vmem, size = 0x20000, scoped, tag = 'output window, operand 0, single buffered']
    %12 = vsyncpa [#allocation3], 0
    %13 = vsyncpa [#allocation6], 0
    %14 = vsyncpa [#allocation9], 0
    %15 = vsyncpa [#allocation4], 0
    // Predicated region
    $region2: #{tpu_custom_call.1} parent=1 // pred_check
      _
    $region3: #{tpu_custom_call.1} parent=1 // pred_check_branch
      %17 = sbr.rel (0) target = $region5
    $region4: #{tpu_custom_call.1} parent=1 // pred_region
      %s19 = ssub.s32 4096, 4096
      %20 = vsyncadd [#allocation3], %s19
      %s21 = sshll.u32 [#allocation2], 4
      %s22 = int_to_ptr.vmem [resolvable:$true] %s21
      %27 = dma.hbm_to_vmem [thread:$0]  %s0, 4096, %s22, [#allocation3], 128, 128, 8
    $region5: #{tpu_custom_call.1} parent=1 // pred_fallthru
      _
    // Predicated region
    $region6: #{tpu_custom_call.1} parent=1 // pred_check
      _
    $region7: #{tpu_custom_call.1} parent=1 // pred_check_branch
      %29 = sbr.rel (0) target = $region9
    $region8: #{tpu_custom_call.1} parent=1 // pred_region
      %s31 = ssub.s32 4096, 4096
      %32 = vsyncadd [#allocation6], %s31
      %s33 = sshll.u32 [#allocation5], 4
      %s34 = int_to_ptr.vmem [resolvable:$true] %s33
      %39 = dma.hbm_to_vmem [thread:$0]  %s1, 4096, %s34, [#allocation6], 256, 256, 16
    $region9: #{tpu_custom_call.1} parent=1 // pred_fallthru
      _
    // Predicated region
    $region10: #{tpu_custom_call.1} parent=1 // pred_check
      _
    $region11: #{tpu_custom_call.1} parent=1 // pred_check_branch
      %41 = sbr.rel (0) target = $region13
    $region12: #{tpu_custom_call.1} parent=1 // pred_region
      _
    $region13: #{tpu_custom_call.1} parent=1 // pred_fallthru
      _
    // Predicated region
    $region14: #{tpu_custom_call.1} parent=1 // pred_check
      _
    $region15: #{tpu_custom_call.1} parent=1 // pred_check_branch
      %43 = sbr.rel (0) target = $region17
    $region16: #{tpu_custom_call.1} parent=1 // pred_region
      %s45 = ssub.s32 16384, 16384
      %46 = vsyncadd [#allocation6], %s45
      %s47 = sshll.u32 [#allocation7], 4
      %s48 = int_to_ptr.vmem [resolvable:$true] %s47
      %53 = dma.hbm_to_vmem [thread:$0]  %s3, 16384, %s48, [#allocation6], 256, 256, 16
    $region17: #{tpu_custom_call.1} parent=1 // pred_fallthru
      _
    // Predicated region
    $region18: #{tpu_custom_call.1} parent=1 // pred_check
      _
    $region19: #{tpu_custom_call.1} parent=1 // pred_check_branch
      %55 = sbr.rel (0) target = $region21
    $region20: #{tpu_custom_call.1} parent=1 // pred_region
      _
    $region21: #{tpu_custom_call.1} parent=1 // pred_fallthru
      _
    // Predicated region
    $region22: #{tpu_custom_call.1} parent=1 // pred_check
      _
    $region23: #{tpu_custom_call.1} parent=1 // pred_check_branch
      %57 = sbr.rel (0) target = $region25
    $region24: #{tpu_custom_call.1} parent=1 // pred_region
      %s59 = ssub.s32 4096, 4096
      %60 = vsyncadd [#allocation9], %s59
      %s61 = sshll.u32 [#allocation8], 4
      %s62 = int_to_ptr.vmem [resolvable:$true] %s61
      %67 = dma.hbm_to_vmem [thread:$0]  %s5, 4096, %s62, [#allocation9], 64, 64, 4
    $region25: #{tpu_custom_call.1} parent=1 // pred_fallthru
      _
    // Predicated region
    $region26: #{tpu_custom_call.1} parent=1 // pred_check
      _
    $region27: #{tpu_custom_call.1} parent=1 // pred_check_branch
      %69 = sbr.rel (0) target = $region29
    $region28: #{tpu_custom_call.1} parent=1 // pred_region
      _
    $region29: #{tpu_custom_call.1} parent=1 // pred_fallthru
      _
    // Predicated region
    $region30: #{tpu_custom_call.1} parent=1 // pred_check
      _
    $region31: #{tpu_custom_call.1} parent=1 // pred_check_branch
      %71 = sbr.rel (0) target = $region33
    $region32: #{tpu_custom_call.1} parent=1 // pred_region
      %72 = dma.done [#allocation3], 4096
    $region33: #{tpu_custom_call.1} parent=1 // pred_fallthru
      _
    // Predicated region
    $region34: #{tpu_custom_call.1} parent=1 // pred_check
      _
    $region35: #{tpu_custom_call.1} parent=1 // pred_check_branch
      %74 = sbr.rel (0) target = $region37
    $region36: #{tpu_custom_call.1} parent=1 // pred_region
      %75 = dma.done [#allocation6], 4096
    $region37: #{tpu_custom_call.1} parent=1 // pred_fallthru
      _
    // Predicated region
    $region38: #{tpu_custom_call.1} parent=1 // pred_check
      _
    $region39: #{tpu_custom_call.1} parent=1 // pred_check_branch
      %77 = sbr.rel (0) target = $region41
    $region40: #{tpu_custom_call.1} parent=1 // pred_region
      %78 = dma.done [#allocation6], 16384
    $region41: #{tpu_custom_call.1} parent=1 // pred_fallthru
      _
    // Predicated region
    $region42: #{tpu_custom_call.1} parent=1 // pred_check
      _
    $region43: #{tpu_custom_call.1} parent=1 // pred_check_branch
      %80 = sbr.rel (0) target = $region45
    $region44: #{tpu_custom_call.1} parent=1 // pred_region
      %81 = dma.done [#allocation9], 4096
    $region45: #{tpu_custom_call.1} parent=1 // pred_fallthru
      _
    %v83 = vld [vmem:[#allocation2] sm:$0xff]
    %v84 = vld [vmem:[#allocation2 + $0x8] sm:$0xff]
    %v85 = vld [vmem:[#allocation2 + $0x10] sm:$0xff]
    %v86 = vld [vmem:[#allocation2 + $0x18] sm:$0xff]
    %v87 = vld [vmem:[#allocation2 + $0x20] sm:$0xff]
    %v88 = vld [vmem:[#allocation2 + $0x28] sm:$0xff]
    %v89 = vld [vmem:[#allocation2 + $0x30] sm:$0xff]
    %v90 = vld [vmem:[#allocation2 + $0x38] sm:$0xff]
    %v91 = vld [vmem:[#allocation2 + $0x40] sm:$0xff]
    %v92 = vld [vmem:[#allocation2 + $0x48] sm:$0xff]
    %v93 = vld [vmem:[#allocation2 + $0x50] sm:$0xff]
    %v94 = vld [vmem:[#allocation2 + $0x58] sm:$0xff]
    %v95 = vld [vmem:[#allocation2 + $0x60] sm:$0xff]
    %v96 = vld [vmem:[#allocation2 + $0x68] sm:$0xff]
    %v97 = vld [vmem:[#allocation2 + $0x70] sm:$0xff]
    %v98 = vld [vmem:[#allocation2 + $0x78] sm:$0xff]
    %v99 = vld [vmem:[#allocation2 + $0x80] sm:$0xff]
    %v100 = vld [vmem:[#allocation2 + $0x88] sm:$0xff]
    %v101 = vld [vmem:[#allocation2 + $0x90] sm:$0xff]
    %v102 = vld [vmem:[#allocation2 + $0x98] sm:$0xff]
    %v103 = vld [vmem:[#allocation2 + $0xa0] sm:$0xff]
    %v104 = vld [vmem:[#allocation2 + $0xa8] sm:$0xff]
    %v105 = vld [vmem:[#allocation2 + $0xb0] sm:$0xff]
    %v106 = vld [vmem:[#allocation2 + $0xb8] sm:$0xff]
    %v107 = vld [vmem:[#allocation2 + $0xc0] sm:$0xff]
    %v108 = vld [vmem:[#allocation2 + $0xc8] sm:$0xff]
    %v109 = vld [vmem:[#allocation2 + $0xd0] sm:$0xff]
    %v110 = vld [vmem:[#allocation2 + $0xd8] sm:$0xff]
    %v111 = vld [vmem:[#allocation2 + $0xe0] sm:$0xff]
    %v112 = vld [vmem:[#allocation2 + $0xe8] sm:$0xff]
    %v113 = vld [vmem:[#allocation2 + $0xf0] sm:$0xff]
    %v114 = vld [vmem:[#allocation2 + $0xf8] sm:$0xff]
    %v115 = vpack.c.bf16 %v84, %v83
    %v116 = vpack.c.bf16 %v86, %v85
    %v117 = vpack.c.bf16 %v88, %v87
    %v118 = vpack.c.bf16 %v90, %v89
    %v119 = vpack.c.bf16 %v92, %v91
    %v120 = vpack.c.bf16 %v94, %v93
    %v121 = vpack.c.bf16 %v96, %v95
    %v122 = vpack.c.bf16 %v98, %v97
    %v123 = vpack.c.bf16 %v100, %v99
    %v124 = vpack.c.bf16 %v102, %v101
    %v125 = vpack.c.bf16 %v104, %v103
    %v126 = vpack.c.bf16 %v106, %v105
    %v127 = vpack.c.bf16 %v108, %v107
    %v128 = vpack.c.bf16 %v110, %v109
    %v129 = vpack.c.bf16 %v112, %v111
    %v130 = vpack.c.bf16 %v114, %v113
    %v131 = vld [vmem:[#allocation5] sm:$0xff]
    %v132 = vld [vmem:[#allocation5 + $0x8] sm:$0xff]
    %v133 = vld [vmem:[#allocation5 + $0x10] sm:$0xff]
    %v134 = vld [vmem:[#allocation5 + $0x18] sm:$0xff]
    %v135 = vld [vmem:[#allocation5 + $0x20] sm:$0xff]
    %v136 = vld [vmem:[#allocation5 + $0x28] sm:$0xff]
    %v137 = vld [vmem:[#allocation5 + $0x30] sm:$0xff]
    %v138 = vld [vmem:[#allocation5 + $0x38] sm:$0xff]
    %v139 = vld [vmem:[#allocation5 + $0x40] sm:$0xff]
    %v140 = vld [vmem:[#allocation5 + $0x48] sm:$0xff]
    %v141 = vld [vmem:[#allocation5 + $0x50] sm:$0xff]
    %v142 = vld [vmem:[#allocation5 + $0x58] sm:$0xff]
    %v143 = vld [vmem:[#allocation5 + $0x60] sm:$0xff]
    %v144 = vld [vmem:[#allocation5 + $0x68] sm:$0xff]
    %v145 = vld [vmem:[#allocation5 + $0x70] sm:$0xff]
    %v146 = vld [vmem:[#allocation5 + $0x78] sm:$0xff]
    %v147 = vld [vmem:[#allocation5 + $0x80] sm:$0xff]
    %v148 = vld [vmem:[#allocation5 + $0x88] sm:$0xff]
    %v149 = vld [vmem:[#allocation5 + $0x90] sm:$0xff]
    %v150 = vld [vmem:[#allocation5 + $0x98] sm:$0xff]
    %v151 = vld [vmem:[#allocation5 + $0xa0] sm:$0xff]
    %v152 = vld [vmem:[#allocation5 + $0xa8] sm:$0xff]
    %v153 = vld [vmem:[#allocation5 + $0xb0] sm:$0xff]
    %v154 = vld [vmem:[#allocation5 + $0xb8] sm:$0xff]
    %v155 = vld [vmem:[#allocation5 + $0xc0] sm:$0xff]
    %v156 = vld [vmem:[#allocation5 + $0xc8] sm:$0xff]
    %v157 = vld [vmem:[#allocation5 + $0xd0] sm:$0xff]
    %v158 = vld [vmem:[#allocation5 + $0xd8] sm:$0xff]
    %v159 = vld [vmem:[#allocation5 + $0xe0] sm:$0xff]
    %v160 = vld [vmem:[#allocation5 + $0xe8] sm:$0xff]
    %v161 = vld [vmem:[#allocation5 + $0xf0] sm:$0xff]
    %v162 = vld [vmem:[#allocation5 + $0xf8] sm:$0xff]
    %v163 = vld [vmem:[%s2] sm:$0xf]
    %v165 = vlaneseq
    %v166 = vshrl.u32 %v165, 7
    %v167 = vsub.s32 0, %v166
    %v168 = vrot.slane %v163, %v167
    %v169 = vlaneseq
    %v170 = vshrl.u32 %v169, 7
    %v171 = vsub.s32 1, %v170
    %v172 = vrot.slane %v163, %v171
    %v173 = vlaneseq
    %v174 = vshrl.u32 %v173, 7
    %v175 = vsub.s32 2, %v174
    %v176 = vrot.slane %v163, %v175
    %v177 = vlaneseq
    %v178 = vshrl.u32 %v177, 7
    %v179 = vsub.s32 3, %v178
    %v180 = vrot.slane %v163, %v179
    %v217 = vunpack.c.l.b16 %v131
    %v218 = vunpack.c.h.b16 %v131
    %v219 = vunpack.c.l.b16 %v132
    %v220 = vunpack.c.h.b16 %v132
    %v221 = vunpack.c.l.b16 %v133
    %v222 = vunpack.c.h.b16 %v133
    %v223 = vunpack.c.l.b16 %v134
    %v224 = vunpack.c.h.b16 %v134
    %v225 = vunpack.c.l.b16 %v135
    %v226 = vunpack.c.h.b16 %v135
    %v227 = vunpack.c.l.b16 %v136
    %v228 = vunpack.c.h.b16 %v136
    %v229 = vunpack.c.l.b16 %v137
    %v230 = vunpack.c.h.b16 %v137
    %v231 = vunpack.c.l.b16 %v138
    %v232 = vunpack.c.h.b16 %v138
    %v233 = vunpack.c.l.b16 %v139
    %v234 = vunpack.c.h.b16 %v139
    %v235 = vunpack.c.l.b16 %v140
    %v236 = vunpack.c.h.b16 %v140
    %v237 = vunpack.c.l.b16 %v141
    %v238 = vunpack.c.h.b16 %v141
    %v239 = vunpack.c.l.b16 %v142
    %v240 = vunpack.c.h.b16 %v142
    %v241 = vunpack.c.l.b16 %v143
    %v242 = vunpack.c.h.b16 %v143
    %v243 = vunpack.c.l.b16 %v144
    %v244 = vunpack.c.h.b16 %v144
    %v245 = vunpack.c.l.b16 %v145
    %v246 = vunpack.c.h.b16 %v145
    %v247 = vunpack.c.l.b16 %v146
    %v248 = vunpack.c.h.b16 %v146
    %v249 = vunpack.c.l.b16 %v147
    %v250 = vunpack.c.h.b16 %v147
    %v251 = vunpack.c.l.b16 %v148
    %v252 = vunpack.c.h.b16 %v148
    %v253 = vunpack.c.l.b16 %v149
    %v254 = vunpack.c.h.b16 %v149
    %v255 = vunpack.c.l.b16 %v150
    %v256 = vunpack.c.h.b16 %v150
    %v257 = vunpack.c.l.b16 %v151
    %v258 = vunpack.c.h.b16 %v151
    %v259 = vunpack.c.l.b16 %v152
    %v260 = vunpack.c.h.b16 %v152
    %v261 = vunpack.c.l.b16 %v153
    %v262 = vunpack.c.h.b16 %v153
    %v263 = vunpack.c.l.b16 %v154
    %v264 = vunpack.c.h.b16 %v154
    %v265 = vunpack.c.l.b16 %v155
    %v266 = vunpack.c.h.b16 %v155
    %v267 = vunpack.c.l.b16 %v156
    %v268 = vunpack.c.h.b16 %v156
    %v269 = vunpack.c.l.b16 %v157
    %v270 = vunpack.c.h.b16 %v157
    %v271 = vunpack.c.l.b16 %v158
    %v272 = vunpack.c.h.b16 %v158
    %v273 = vunpack.c.l.b16 %v159
    %v274 = vunpack.c.h.b16 %v159
    %v275 = vunpack.c.l.b16 %v160
    %v276 = vunpack.c.h.b16 %v160
    %v277 = vunpack.c.l.b16 %v161
    %v278 = vunpack.c.h.b16 %v161
    %v279 = vunpack.c.l.b16 %v162
    %v280 = vunpack.c.h.b16 %v162
    %v281 = vpack.c.b16 %v221, %v217
    %v282 = vpack.c.b16 %v222, %v218
    %v283 = vpack.c.b16 %v223, %v219
    %v284 = vpack.c.b16 %v224, %v220
    %v285 = vpack.c.b16 %v229, %v225
    %v286 = vpack.c.b16 %v230, %v226
    %v287 = vpack.c.b16 %v231, %v227
    %v288 = vpack.c.b16 %v232, %v228
    %v289 = vpack.c.b16 %v237, %v233
    %v290 = vpack.c.b16 %v238, %v234
    %v291 = vpack.c.b16 %v239, %v235
    %v292 = vpack.c.b16 %v240, %v236
    %v293 = vpack.c.b16 %v245, %v241
    %v294 = vpack.c.b16 %v246, %v242
    %v295 = vpack.c.b16 %v247, %v243
    %v296 = vpack.c.b16 %v248, %v244
    %v297 = vpack.c.b16 %v253, %v249
    %v298 = vpack.c.b16 %v254, %v250
    %v299 = vpack.c.b16 %v255, %v251
    %v300 = vpack.c.b16 %v256, %v252
    %v301 = vpack.c.b16 %v261, %v257
    %v302 = vpack.c.b16 %v262, %v258
    %v303 = vpack.c.b16 %v263, %v259
    %v304 = vpack.c.b16 %v264, %v260
    %v305 = vpack.c.b16 %v269, %v265
    %v306 = vpack.c.b16 %v270, %v266
    %v307 = vpack.c.b16 %v271, %v267
    %v308 = vpack.c.b16 %v272, %v268
    %v309 = vpack.c.b16 %v277, %v273
    %v310 = vpack.c.b16 %v278, %v274
    %v311 = vpack.c.b16 %v279, %v275
    %v312 = vpack.c.b16 %v280, %v276
    %345 = vmatprep.subr.bf16.mxu0 %v282
    %346 = vmatpush1.bf16.msra.mxu0 %v281
    %347 = vmatprep.subr.bf16.mxu0 %v286
    %348 = vmatpush1.bf16.msra.mxu0 %v285
    %349 = vmatprep.subr.bf16.mxu0 %v290
    %350 = vmatpush1.bf16.msra.mxu0 %v289
    %351 = vmatprep.subr.bf16.mxu0 %v294
    %352 = vmatpush1.bf16.msra.mxu0 %v293
    %353 = vmatprep.subr.bf16.mxu0 %v298
    %354 = vmatpush1.bf16.msra.mxu0 %v297
    %355 = vmatprep.subr.bf16.mxu0 %v302
    %356 = vmatpush1.bf16.msra.mxu0 %v301
    %357 = vmatprep.subr.bf16.mxu0 %v306
    %358 = vmatpush1.bf16.msra.mxu0 %v305
    %359 = vmatprep.subr.bf16.mxu0 %v310
    %360 = vmatpush1.bf16.msra.mxu0 %v309
    %361 = vmatprep.subr.bf16.mxu0 0
    %362 = vmatpush1.bf16.msra.mxu0 0
    %363 = vmatprep.subr.bf16.mxu0 0
    %364 = vmatpush1.bf16.msra.mxu0 0
    %365 = vmatprep.subr.bf16.mxu0 0
    %366 = vmatpush1.bf16.msra.mxu0 0
    %367 = vmatprep.subr.bf16.mxu0 0
    %368 = vmatpush1.bf16.msra.mxu0 0
    %369 = vmatprep.subr.bf16.mxu0 0
    %370 = vmatpush1.bf16.msra.mxu0 0
    %371 = vmatprep.subr.bf16.mxu0 0
    %372 = vmatpush1.bf16.msra.mxu0 0
    %373 = vmatprep.subr.bf16.mxu0 0
    %374 = vmatpush1.bf16.msra.mxu0 0
    %375 = vmatprep.subr.bf16.mxu0 0
    %376 = vmatpush1.bf16.msra.mxu0 0
    %377 = vmatprep.mubr.bf16.mxu0 0
    %378 = vmatmul.mubr.bf16.gmra.mrb[0].mxu0 %v115
    %v379 = vpop.f32.mrb[0].mxu0
    %v380 = vadd.f32 %v168, %v379
    %v381 = vpop.f32.mrb[0].mxu0
    %v382 = vadd.f32 %v172, %v381
    %v383 = vpop.f32.mrb[0].mxu0
    %v384 = vadd.f32 %v168, %v383
    %v385 = vpop.f32.mrb[0].mxu0
    %v386 = vadd.f32 %v172, %v385
    %387 = vmatprep.mubr.bf16.mxu0 0
    %388 = vmatmul.mubr.bf16.gmra.mrb[0].mxu0 %v116
    %v389 = vpop.f32.mrb[0].mxu0
    %v390 = vadd.f32 %v168, %v389
    %v391 = vpop.f32.mrb[0].mxu0
    %v392 = vadd.f32 %v172, %v391
    %v393 = vpop.f32.mrb[0].mxu0
    %v394 = vadd.f32 %v168, %v393
    %v395 = vpop.f32.mrb[0].mxu0
    %v396 = vadd.f32 %v172, %v395
    %397 = vmatprep.mubr.bf16.mxu0 0
    %398 = vmatmul.mubr.bf16.gmra.mrb[0].mxu0 %v117
    %v399 = vpop.f32.mrb[0].mxu0
    %v400 = vadd.f32 %v168, %v399
    %v401 = vpop.f32.mrb[0].mxu0
    %v402 = vadd.f32 %v172, %v401
    %v403 = vpop.f32.mrb[0].mxu0
    %v404 = vadd.f32 %v168, %v403
    %v405 = vpop.f32.mrb[0].mxu0
    %v406 = vadd.f32 %v172, %v405
    %407 = vmatprep.mubr.bf16.mxu0 0
    %408 = vmatmul.mubr.bf16.gmra.mrb[0].mxu0 %v118
    %v409 = vpop.f32.mrb[0].mxu0
    %v410 = vadd.f32 %v168, %v409
    %v411 = vpop.f32.mrb[0].mxu0
    %v412 = vadd.f32 %v172, %v411
    %v413 = vpop.f32.mrb[0].mxu0
    %v414 = vadd.f32 %v168, %v413
    %v415 = vpop.f32.mrb[0].mxu0
    %v416 = vadd.f32 %v172, %v415
    %417 = vmatprep.mubr.bf16.mxu0 0
    %418 = vmatmul.mubr.bf16.gmra.mrb[0].mxu0 %v119
    %v419 = vpop.f32.mrb[0].mxu0
    %v420 = vadd.f32 %v168, %v419
    %v421 = vpop.f32.mrb[0].mxu0
    %v422 = vadd.f32 %v172, %v421
    %v423 = vpop.f32.mrb[0].mxu0
    %v424 = vadd.f32 %v168, %v423
    %v425 = vpop.f32.mrb[0].mxu0
    %v426 = vadd.f32 %v172, %v425
    %427 = vmatprep.mubr.bf16.mxu0 0
    %428 = vmatmul.mubr.bf16.gmra.mrb[0].mxu0 %v120
    %v429 = vpop.f32.mrb[0].mxu0
    %v430 = vadd.f32 %v168, %v429
    %v431 = vpop.f32.mrb[0].mxu0
    %v432 = vadd.f32 %v172, %v431
    %v433 = vpop.f32.mrb[0].mxu0
    %v434 = vadd.f32 %v168, %v433
    %v435 = vpop.f32.mrb[0].mxu0
    %v436 = vadd.f32 %v172, %v435
    %437 = vmatprep.mubr.bf16.mxu0 0
    %438 = vmatmul.mubr.bf16.gmra.mrb[0].mxu0 %v121
    %v439 = vpop.f32.mrb[0].mxu0
    %v440 = vadd.f32 %v168, %v439
    %v441 = vpop.f32.mrb[0].mxu0
    %v442 = vadd.f32 %v172, %v441
    %v443 = vpop.f32.mrb[0].mxu0
    %v444 = vadd.f32 %v168, %v443
    %v445 = vpop.f32.mrb[0].mxu0
    %v446 = vadd.f32 %v172, %v445
    %447 = vmatprep.mubr.bf16.mxu0 0
    %448 = vmatmul.mubr.bf16.gmra.mrb[0].mxu0 %v122
    %v449 = vpop.f32.mrb[0].mxu0
    %v450 = vadd.f32 %v168, %v449
    %v451 = vpop.f32.mrb[0].mxu0
    %v452 = vadd.f32 %v172, %v451
    %v453 = vpop.f32.mrb[0].mxu0
    %v454 = vadd.f32 %v168, %v453
    %v455 = vpop.f32.mrb[0].mxu0
    %v456 = vadd.f32 %v172, %v455
    %457 = vmatprep.mubr.bf16.mxu0 0
    %458 = vmatmul.mubr.bf16.gmra.mrb[0].mxu0 %v123
    %v459 = vpop.f32.mrb[0].mxu0
    %v460 = vadd.f32 %v168, %v459
    %v461 = vpop.f32.mrb[0].mxu0
    %v462 = vadd.f32 %v172, %v461
    %v463 = vpop.f32.mrb[0].mxu0
    %v464 = vadd.f32 %v168, %v463
    %v465 = vpop.f32.mrb[0].mxu0
    %v466 = vadd.f32 %v172, %v465
    %467 = vmatprep.mubr.bf16.mxu0 0
    %468 = vmatmul.mubr.bf16.gmra.mrb[0].mxu0 %v124
    %v469 = vpop.f32.mrb[0].mxu0
    %v470 = vadd.f32 %v168, %v469
    %v471 = vpop.f32.mrb[0].mxu0
    %v472 = vadd.f32 %v172, %v471
    %v473 = vpop.f32.mrb[0].mxu0
    %v474 = vadd.f32 %v168, %v473
    %v475 = vpop.f32.mrb[0].mxu0
    %v476 = vadd.f32 %v172, %v475
    %477 = vmatprep.mubr.bf16.mxu0 0
    %478 = vmatmul.mubr.bf16.gmra.mrb[0].mxu0 %v125
    %v479 = vpop.f32.mrb[0].mxu0
    %v480 = vadd.f32 %v168, %v479
    %v481 = vpop.f32.mrb[0].mxu0
    %v482 = vadd.f32 %v172, %v481
    %v483 = vpop.f32.mrb[0].mxu0
    %v484 = vadd.f32 %v168, %v483
    %v485 = vpop.f32.mrb[0].mxu0
    %v486 = vadd.f32 %v172, %v485
    %487 = vmatprep.mubr.bf16.mxu0 0
    %488 = vmatmul.mubr.bf16.gmra.mrb[0].mxu0 %v126
    %v489 = vpop.f32.mrb[0].mxu0
    %v490 = vadd.f32 %v168, %v489
    %v491 = vpop.f32.mrb[0].mxu0
    %v492 = vadd.f32 %v172, %v491
    %v493 = vpop.f32.mrb[0].mxu0
    %v494 = vadd.f32 %v168, %v493
    %v495 = vpop.f32.mrb[0].mxu0
    %v496 = vadd.f32 %v172, %v495
    %497 = vmatprep.mubr.bf16.mxu0 0
    %498 = vmatmul.mubr.bf16.gmra.mrb[0].mxu0 %v127
    %v499 = vpop.f32.mrb[0].mxu0
    %v500 = vadd.f32 %v168, %v499
    %v501 = vpop.f32.mrb[0].mxu0
    %v502 = vadd.f32 %v172, %v501
    %v503 = vpop.f32.mrb[0].mxu0
    %v504 = vadd.f32 %v168, %v503
    %v505 = vpop.f32.mrb[0].mxu0
    %v506 = vadd.f32 %v172, %v505
    %507 = vmatprep.mubr.bf16.mxu0 0
    %508 = vmatmul.mubr.bf16.gmra.mrb[0].mxu0 %v128
    %v509 = vpop.f32.mrb[0].mxu0
    %v510 = vadd.f32 %v168, %v509
    %v511 = vpop.f32.mrb[0].mxu0
    %v512 = vadd.f32 %v172, %v511
    %v513 = vpop.f32.mrb[0].mxu0
    %v514 = vadd.f32 %v168, %v513
    %v515 = vpop.f32.mrb[0].mxu0
    %v516 = vadd.f32 %v172, %v515
    %517 = vmatprep.mubr.bf16.mxu0 0
    %518 = vmatmul.mubr.bf16.gmra.mrb[0].mxu0 %v129
    %v519 = vpop.f32.mrb[0].mxu0
    %v520 = vadd.f32 %v168, %v519
    %v521 = vpop.f32.mrb[0].mxu0
    %v522 = vadd.f32 %v172, %v521
    %v523 = vpop.f32.mrb[0].mxu0
    %v524 = vadd.f32 %v168, %v523
    %v525 = vpop.f32.mrb[0].mxu0
    %v526 = vadd.f32 %v172, %v525
    %527 = vmatprep.mubr.bf16.mxu0 0
    %528 = vmatmul.mubr.bf16.gmra.mrb[0].mxu0 %v130
    %v529 = vpop.f32.mrb[0].mxu0
    %v530 = vadd.f32 %v168, %v529
    %v531 = vpop.f32.mrb[0].mxu0
    %v532 = vadd.f32 %v172, %v531
    %v533 = vpop.f32.mrb[0].mxu0
    %v534 = vadd.f32 %v168, %v533
    %v535 = vpop.f32.mrb[0].mxu0
    %v536 = vadd.f32 %v172, %v535
    %537 = vdwg.mxu0
    %538 = vmatprep.subr.bf16.mxu0 %v284
    %539 = vmatpush1.bf16.msra.mxu0 %v283
    %540 = vmatprep.subr.bf16.mxu0 %v288
    %541 = vmatpush1.bf16.msra.mxu0 %v287
    %542 = vmatprep.subr.bf16.mxu0 %v292
    %543 = vmatpush1.bf16.msra.mxu0 %v291
    %544 = vmatprep.subr.bf16.mxu0 %v296
    %545 = vmatpush1.bf16.msra.mxu0 %v295
    %546 = vmatprep.subr.bf16.mxu0 %v300
    %547 = vmatpush1.bf16.msra.mxu0 %v299
    %548 = vmatprep.subr.bf16.mxu0 %v304
    %549 = vmatpush1.bf16.msra.mxu0 %v303
    %550 = vmatprep.subr.bf16.mxu0 %v308
    %551 = vmatpush1.bf16.msra.mxu0 %v307
    %552 = vmatprep.subr.bf16.mxu0 %v312
    %553 = vmatpush1.bf16.msra.mxu0 %v311
    %554 = vmatprep.subr.bf16.mxu0 0
    %555 = vmatpush1.bf16.msra.mxu0 0
    %556 = vmatprep.subr.bf16.mxu0 0
    %557 = vmatpush1.bf16.msra.mxu0 0
    %558 = vmatprep.subr.bf16.mxu0 0
    %559 = vmatpush1.bf16.msra.mxu0 0
    %560 = vmatprep.subr.bf16.mxu0 0
    %561 = vmatpush1.bf16.msra.mxu0 0
    %562 = vmatprep.subr.bf16.mxu0 0
    %563 = vmatpush1.bf16.msra.mxu0 0
    %564 = vmatprep.subr.bf16.mxu0 0
    %565 = vmatpush1.bf16.msra.mxu0 0
    %566 = vmatprep.subr.bf16.mxu0 0
    %567 = vmatpush1.bf16.msra.mxu0 0
    %568 = vmatprep.subr.bf16.mxu0 0
    %569 = vmatpush1.bf16.msra.mxu0 0
    %570 = vmatprep.mubr.bf16.mxu0 0
    %571 = vmatmul.mubr.bf16.gmra.mrb[0].mxu0 %v115
    %v572 = vpop.f32.mrb[0].mxu0
    %v573 = vadd.f32 %v176, %v572
    %v574 = vpop.f32.mrb[0].mxu0
    %v575 = vadd.f32 %v180, %v574
    %v576 = vpop.f32.mrb[0].mxu0
    %v577 = vadd.f32 %v176, %v576
    %v578 = vpop.f32.mrb[0].mxu0
    %v579 = vadd.f32 %v180, %v578
    %580 = vmatprep.mubr.bf16.mxu0 0
    %581 = vmatmul.mubr.bf16.gmra.mrb[0].mxu0 %v116
    %v582 = vpop.f32.mrb[0].mxu0
    %v583 = vadd.f32 %v176, %v582
    %v584 = vpop.f32.mrb[0].mxu0
    %v585 = vadd.f32 %v180, %v584
    %v586 = vpop.f32.mrb[0].mxu0
    %v587 = vadd.f32 %v176, %v586
    %v588 = vpop.f32.mrb[0].mxu0
    %v589 = vadd.f32 %v180, %v588
    %590 = vmatprep.mubr.bf16.mxu0 0
    %591 = vmatmul.mubr.bf16.gmra.mrb[0].mxu0 %v117
    %v592 = vpop.f32.mrb[0].mxu0
    %v593 = vadd.f32 %v176, %v592
    %v594 = vpop.f32.mrb[0].mxu0
    %v595 = vadd.f32 %v180, %v594
    %v596 = vpop.f32.mrb[0].mxu0
    %v597 = vadd.f32 %v176, %v596
    %v598 = vpop.f32.mrb[0].mxu0
    %v599 = vadd.f32 %v180, %v598
    %600 = vmatprep.mubr.bf16.mxu0 0
    %601 = vmatmul.mubr.bf16.gmra.mrb[0].mxu0 %v118
    %v602 = vpop.f32.mrb[0].mxu0
    %v603 = vadd.f32 %v176, %v602
    %v604 = vpop.f32.mrb[0].mxu0
    %v605 = vadd.f32 %v180, %v604
    %v606 = vpop.f32.mrb[0].mxu0
    %v607 = vadd.f32 %v176, %v606
    %v608 = vpop.f32.mrb[0].mxu0
    %v609 = vadd.f32 %v180, %v608
    %610 = vmatprep.mubr.bf16.mxu0 0
    %611 = vmatmul.mubr.bf16.gmra.mrb[0].mxu0 %v119
    %v612 = vpop.f32.mrb[0].mxu0
    %v613 = vadd.f32 %v176, %v612
    %v614 = vpop.f32.mrb[0].mxu0
    %v615 = vadd.f32 %v180, %v614
    %v616 = vpop.f32.mrb[0].mxu0
    %v617 = vadd.f32 %v176, %v616
    %v618 = vpop.f32.mrb[0].mxu0
    %v619 = vadd.f32 %v180, %v618
    %620 = vmatprep.mubr.bf16.mxu0 0
    %621 = vmatmul.mubr.bf16.gmra.mrb[0].mxu0 %v120
    %v622 = vpop.f32.mrb[0].mxu0
    %v623 = vadd.f32 %v176, %v622
    %v624 = vpop.f32.mrb[0].mxu0
    %v625 = vadd.f32 %v180, %v624
    %v626 = vpop.f32.mrb[0].mxu0
    %v627 = vadd.f32 %v176, %v626
    %v628 = vpop.f32.mrb[0].mxu0
    %v629 = vadd.f32 %v180, %v628
    %630 = vmatprep.mubr.bf16.mxu0 0
    %631 = vmatmul.mubr.bf16.gmra.mrb[0].mxu0 %v121
    %v632 = vpop.f32.mrb[0].mxu0
    %v633 = vadd.f32 %v176, %v632
    %v634 = vpop.f32.mrb[0].mxu0
    %v635 = vadd.f32 %v180, %v634
    %v636 = vpop.f32.mrb[0].mxu0
    %v637 = vadd.f32 %v176, %v636
    %v638 = vpop.f32.mrb[0].mxu0
    %v639 = vadd.f32 %v180, %v638
    %640 = vmatprep.mubr.bf16.mxu0 0
    %641 = vmatmul.mubr.bf16.gmra.mrb[0].mxu0 %v122
    %v642 = vpop.f32.mrb[0].mxu0
    %v643 = vadd.f32 %v176, %v642
    %v644 = vpop.f32.mrb[0].mxu0
    %v645 = vadd.f32 %v180, %v644
    %v646 = vpop.f32.mrb[0].mxu0
    %v647 = vadd.f32 %v176, %v646
    %v648 = vpop.f32.mrb[0].mxu0
    %v649 = vadd.f32 %v180, %v648
    %650 = vmatprep.mubr.bf16.mxu0 0
    %651 = vmatmul.mubr.bf16.gmra.mrb[0].mxu0 %v123
    %v652 = vpop.f32.mrb[0].mxu0
    %v653 = vadd.f32 %v176, %v652
    %v654 = vpop.f32.mrb[0].mxu0
    %v655 = vadd.f32 %v180, %v654
    %v656 = vpop.f32.mrb[0].mxu0
    %v657 = vadd.f32 %v176, %v656
    %v658 = vpop.f32.mrb[0].mxu0
    %v659 = vadd.f32 %v180, %v658
    %660 = vmatprep.mubr.bf16.mxu0 0
    %661 = vmatmul.mubr.bf16.gmra.mrb[0].mxu0 %v124
    %v662 = vpop.f32.mrb[0].mxu0
    %v663 = vadd.f32 %v176, %v662
    %v664 = vpop.f32.mrb[0].mxu0
    %v665 = vadd.f32 %v180, %v664
    %v666 = vpop.f32.mrb[0].mxu0
    %v667 = vadd.f32 %v176, %v666
    %v668 = vpop.f32.mrb[0].mxu0
    %v669 = vadd.f32 %v180, %v668
    %670 = vmatprep.mubr.bf16.mxu0 0
    %671 = vmatmul.mubr.bf16.gmra.mrb[0].mxu0 %v125
    %v672 = vpop.f32.mrb[0].mxu0
    %v673 = vadd.f32 %v176, %v672
    %v674 = vpop.f32.mrb[0].mxu0
    %v675 = vadd.f32 %v180, %v674
    %v676 = vpop.f32.mrb[0].mxu0
    %v677 = vadd.f32 %v176, %v676
    %v678 = vpop.f32.mrb[0].mxu0
    %v679 = vadd.f32 %v180, %v678
    %680 = vmatprep.mubr.bf16.mxu0 0
    %681 = vmatmul.mubr.bf16.gmra.mrb[0].mxu0 %v126
    %v682 = vpop.f32.mrb[0].mxu0
    %v683 = vadd.f32 %v176, %v682
    %v684 = vpop.f32.mrb[0].mxu0
    %v685 = vadd.f32 %v180, %v684
    %v686 = vpop.f32.mrb[0].mxu0
    %v687 = vadd.f32 %v176, %v686
    %v688 = vpop.f32.mrb[0].mxu0
    %v689 = vadd.f32 %v180, %v688
    %690 = vmatprep.mubr.bf16.mxu0 0
    %691 = vmatmul.mubr.bf16.gmra.mrb[0].mxu0 %v127
    %v692 = vpop.f32.mrb[0].mxu0
    %v693 = vadd.f32 %v176, %v692
    %v694 = vpop.f32.mrb[0].mxu0
    %v695 = vadd.f32 %v180, %v694
    %v696 = vpop.f32.mrb[0].mxu0
    %v697 = vadd.f32 %v176, %v696
    %v698 = vpop.f32.mrb[0].mxu0
    %v699 = vadd.f32 %v180, %v698
    %700 = vmatprep.mubr.bf16.mxu0 0
    %701 = vmatmul.mubr.bf16.gmra.mrb[0].mxu0 %v128
    %v702 = vpop.f32.mrb[0].mxu0
    %v703 = vadd.f32 %v176, %v702
    %v704 = vpop.f32.mrb[0].mxu0
    %v705 = vadd.f32 %v180, %v704
    %v706 = vpop.f32.mrb[0].mxu0
    %v707 = vadd.f32 %v176, %v706
    %v708 = vpop.f32.mrb[0].mxu0
    %v709 = vadd.f32 %v180, %v708
    %710 = vmatprep.mubr.bf16.mxu0 0
    %711 = vmatmul.mubr.bf16.gmra.mrb[0].mxu0 %v129
    %v712 = vpop.f32.mrb[0].mxu0
    %v713 = vadd.f32 %v176, %v712
    %v714 = vpop.f32.mrb[0].mxu0
    %v715 = vadd.f32 %v180, %v714
    %v716 = vpop.f32.mrb[0].mxu0
    %v717 = vadd.f32 %v176, %v716
    %v718 = vpop.f32.mrb[0].mxu0
    %v719 = vadd.f32 %v180, %v718
    %720 = vmatprep.mubr.bf16.mxu0 0
    %721 = vmatmul.mubr.bf16.gmra.mrb[0].mxu0 %v130
    %v722 = vpop.f32.mrb[0].mxu0
    %v723 = vadd.f32 %v176, %v722
    %v724 = vpop.f32.mrb[0].mxu0
    %v725 = vadd.f32 %v180, %v724
    %v726 = vpop.f32.mrb[0].mxu0
    %v727 = vadd.f32 %v176, %v726
    %v728 = vpop.f32.mrb[0].mxu0
    %v729 = vadd.f32 %v180, %v728
    %730 = vdwg.mxu0
    %v731 = vmul.f32 %v380, 0.5
    %v732 = vmul.f32 %v382, 0.5
    %v733 = vmul.f32 %v573, 0.5
    %v734 = vmul.f32 %v575, 0.5
    %v735 = vmul.f32 %v384, 0.5
    %v736 = vmul.f32 %v386, 0.5
    %v737 = vmul.f32 %v577, 0.5
    %v738 = vmul.f32 %v579, 0.5
    %v739 = vmul.f32 %v390, 0.5
    %v740 = vmul.f32 %v392, 0.5
    %v741 = vmul.f32 %v583, 0.5
    %v742 = vmul.f32 %v585, 0.5
    %v743 = vmul.f32 %v394, 0.5
    %v744 = vmul.f32 %v396, 0.5
    %v745 = vmul.f32 %v587, 0.5
    %v746 = vmul.f32 %v589, 0.5
    %v747 = vmul.f32 %v400, 0.5
    %v748 = vmul.f32 %v402, 0.5
    %v749 = vmul.f32 %v593, 0.5
    %v750 = vmul.f32 %v595, 0.5
    %v751 = vmul.f32 %v404, 0.5
    %v752 = vmul.f32 %v406, 0.5
    %v753 = vmul.f32 %v597, 0.5
    %v754 = vmul.f32 %v599, 0.5
    %v755 = vmul.f32 %v410, 0.5
    %v756 = vmul.f32 %v412, 0.5
    %v757 = vmul.f32 %v603, 0.5
    %v758 = vmul.f32 %v605, 0.5
    %v759 = vmul.f32 %v414, 0.5
    %v760 = vmul.f32 %v416, 0.5
    %v761 = vmul.f32 %v607, 0.5
    %v762 = vmul.f32 %v609, 0.5
    %v763 = vmul.f32 %v420, 0.5
    %v764 = vmul.f32 %v422, 0.5
    %v765 = vmul.f32 %v613, 0.5
    %v766 = vmul.f32 %v615, 0.5
    %v767 = vmul.f32 %v424, 0.5
    %v768 = vmul.f32 %v426, 0.5
    %v769 = vmul.f32 %v617, 0.5
    %v770 = vmul.f32 %v619, 0.5
    %v771 = vmul.f32 %v430, 0.5
    %v772 = vmul.f32 %v432, 0.5
    %v773 = vmul.f32 %v623, 0.5
    %v774 = vmul.f32 %v625, 0.5
    %v775 = vmul.f32 %v434, 0.5
    %v776 = vmul.f32 %v436, 0.5
    %v777 = vmul.f32 %v627, 0.5
    %v778 = vmul.f32 %v629, 0.5
    %v779 = vmul.f32 %v440, 0.5
    %v780 = vmul.f32 %v442, 0.5
    %v781 = vmul.f32 %v633, 0.5
    %v782 = vmul.f32 %v635, 0.5
    %v783 = vmul.f32 %v444, 0.5
    %v784 = vmul.f32 %v446, 0.5
    %v785 = vmul.f32 %v637, 0.5
    %v786 = vmul.f32 %v639, 0.5
    %v787 = vmul.f32 %v450, 0.5
    %v788 = vmul.f32 %v452, 0.5
    %v789 = vmul.f32 %v643, 0.5
    %v790 = vmul.f32 %v645, 0.5
    %v791 = vmul.f32 %v454, 0.5
    %v792 = vmul.f32 %v456, 0.5
    %v793 = vmul.f32 %v647, 0.5
    %v794 = vmul.f32 %v649, 0.5
    %v795 = vmul.f32 %v460, 0.5
    %v796 = vmul.f32 %v462, 0.5
    %v797 = vmul.f32 %v653, 0.5
    %v798 = vmul.f32 %v655, 0.5
    %v799 = vmul.f32 %v464, 0.5
    %v800 = vmul.f32 %v466, 0.5
    %v801 = vmul.f32 %v657, 0.5
    %v802 = vmul.f32 %v659, 0.5
    %v803 = vmul.f32 %v470, 0.5
    %v804 = vmul.f32 %v472, 0.5
    %v805 = vmul.f32 %v663, 0.5
    %v806 = vmul.f32 %v665, 0.5
    %v807 = vmul.f32 %v474, 0.5
    %v808 = vmul.f32 %v476, 0.5
    %v809 = vmul.f32 %v667, 0.5
    %v810 = vmul.f32 %v669, 0.5
    %v811 = vmul.f32 %v480, 0.5
    %v812 = vmul.f32 %v482, 0.5
    %v813 = vmul.f32 %v673, 0.5
    %v814 = vmul.f32 %v675, 0.5
    %v815 = vmul.f32 %v484, 0.5
    %v816 = vmul.f32 %v486, 0.5
    %v817 = vmul.f32 %v677, 0.5
    %v818 = vmul.f32 %v679, 0.5
    %v819 = vmul.f32 %v490, 0.5
    %v820 = vmul.f32 %v492, 0.5
    %v821 = vmul.f32 %v683, 0.5
    %v822 = vmul.f32 %v685, 0.5
    %v823 = vmul.f32 %v494, 0.5
    %v824 = vmul.f32 %v496, 0.5
    %v825 = vmul.f32 %v687, 0.5
    %v826 = vmul.f32 %v689, 0.5
    %v827 = vmul.f32 %v500, 0.5
    %v828 = vmul.f32 %v502, 0.5
    %v829 = vmul.f32 %v693, 0.5
    %v830 = vmul.f32 %v695, 0.5
    %v831 = vmul.f32 %v504, 0.5
    %v832 = vmul.f32 %v506, 0.5
    %v833 = vmul.f32 %v697, 0.5
    %v834 = vmul.f32 %v699, 0.5
    %v835 = vmul.f32 %v510, 0.5
    %v836 = vmul.f32 %v512, 0.5
    %v837 = vmul.f32 %v703, 0.5
    %v838 = vmul.f32 %v705, 0.5
    %v839 = vmul.f32 %v514, 0.5
    %v840 = vmul.f32 %v516, 0.5
    %v841 = vmul.f32 %v707, 0.5
    %v842 = vmul.f32 %v709, 0.5
    %v843 = vmul.f32 %v520, 0.5
    %v844 = vmul.f32 %v522, 0.5
    %v845 = vmul.f32 %v713, 0.5
    %v846 = vmul.f32 %v715, 0.5
    %v847 = vmul.f32 %v524, 0.5
    %v848 = vmul.f32 %v526, 0.5
    %v849 = vmul.f32 %v717, 0.5
    %v850 = vmul.f32 %v719, 0.5
    %v851 = vmul.f32 %v530, 0.5
    %v852 = vmul.f32 %v532, 0.5
    %v853 = vmul.f32 %v723, 0.5
    %v854 = vmul.f32 %v725, 0.5
    %v855 = vmul.f32 %v534, 0.5
    %v856 = vmul.f32 %v536, 0.5
    %v857 = vmul.f32 %v727, 0.5
    %v858 = vmul.f32 %v729, 0.5
    %v859 = vtanh.pop %v731
    %v860 = vtanh.pop %v732
    %v861 = vtanh.pop %v733
    %v862 = vtanh.pop %v734
    %v863 = vtanh.pop %v735
    %v864 = vtanh.pop %v736
    %v865 = vtanh.pop %v737
    %v866 = vtanh.pop %v738
    %v867 = vtanh.pop %v739
    %v868 = vtanh.pop %v740
    %v869 = vtanh.pop %v741
    %v870 = vtanh.pop %v742
    %v871 = vtanh.pop %v743
    %v872 = vtanh.pop %v744
    %v873 = vtanh.pop %v745
    %v874 = vtanh.pop %v746
    %v875 = vtanh.pop %v747
    %v876 = vtanh.pop %v748
    %v877 = vtanh.pop %v749
    %v878 = vtanh.pop %v750
    %v879 = vtanh.pop %v751
    %v880 = vtanh.pop %v752
    %v881 = vtanh.pop %v753
    %v882 = vtanh.pop %v754
    %v883 = vtanh.pop %v755
    %v884 = vtanh.pop %v756
    %v885 = vtanh.pop %v757
    %v886 = vtanh.pop %v758
    %v887 = vtanh.pop %v759
    %v888 = vtanh.pop %v760
    %v889 = vtanh.pop %v761
    %v890 = vtanh.pop %v762
    %v891 = vtanh.pop %v763
    %v892 = vtanh.pop %v764
    %v893 = vtanh.pop %v765
    %v894 = vtanh.pop %v766
    %v895 = vtanh.pop %v767
    %v896 = vtanh.pop %v768
    %v897 = vtanh.pop %v769
    %v898 = vtanh.pop %v770
    %v899 = vtanh.pop %v771
    %v900 = vtanh.pop %v772
    %v901 = vtanh.pop %v773
    %v902 = vtanh.pop %v774
    %v903 = vtanh.pop %v775
    %v904 = vtanh.pop %v776
    %v905 = vtanh.pop %v777
    %v906 = vtanh.pop %v778
    %v907 = vtanh.pop %v779
    %v908 = vtanh.pop %v780
    %v909 = vtanh.pop %v781
    %v910 = vtanh.pop %v782
    %v911 = vtanh.pop %v783
    %v912 = vtanh.pop %v784
    %v913 = vtanh.pop %v785
    %v914 = vtanh.pop %v786
    %v915 = vtanh.pop %v787
    %v916 = vtanh.pop %v788
    %v917 = vtanh.pop %v789
    %v918 = vtanh.pop %v790
    %v919 = vtanh.pop %v791
    %v920 = vtanh.pop %v792
    %v921 = vtanh.pop %v793
    %v922 = vtanh.pop %v794
    %v923 = vtanh.pop %v795
    %v924 = vtanh.pop %v796
    %v925 = vtanh.pop %v797
    %v926 = vtanh.pop %v798
    %v927 = vtanh.pop %v799
    %v928 = vtanh.pop %v800
    %v929 = vtanh.pop %v801
    %v930 = vtanh.pop %v802
    %v931 = vtanh.pop %v803
    %v932 = vtanh.pop %v804
    %v933 = vtanh.pop %v805
    %v934 = vtanh.pop %v806
    %v935 = vtanh.pop %v807
    %v936 = vtanh.pop %v808
    %v937 = vtanh.pop %v809
    %v938 = vtanh.pop %v810
    %v939 = vtanh.pop %v811
    %v940 = vtanh.pop %v812
    %v941 = vtanh.pop %v813
    %v942 = vtanh.pop %v814
    %v943 = vtanh.pop %v815
    %v944 = vtanh.pop %v816
    %v945 = vtanh.pop %v817
    %v946 = vtanh.pop %v818
    %v947 = vtanh.pop %v819
    %v948 = vtanh.pop %v820
    %v949 = vtanh.pop %v821
    %v950 = vtanh.pop %v822
    %v951 = vtanh.pop %v823
    %v952 = vtanh.pop %v824
    %v953 = vtanh.pop %v825
    %v954 = vtanh.pop %v826
    %v955 = vtanh.pop %v827
    %v956 = vtanh.pop %v828
    %v957 = vtanh.pop %v829
    %v958 = vtanh.pop %v830
    %v959 = vtanh.pop %v831
    %v960 = vtanh.pop %v832
    %v961 = vtanh.pop %v833
    %v962 = vtanh.pop %v834
    %v963 = vtanh.pop %v835
    %v964 = vtanh.pop %v836
    %v965 = vtanh.pop %v837
    %v966 = vtanh.pop %v838
    %v967 = vtanh.pop %v839
    %v968 = vtanh.pop %v840
    %v969 = vtanh.pop %v841
    %v970 = vtanh.pop %v842
    %v971 = vtanh.pop %v843
    %v972 = vtanh.pop %v844
    %v973 = vtanh.pop %v845
    %v974 = vtanh.pop %v846
    %v975 = vtanh.pop %v847
    %v976 = vtanh.pop %v848
    %v977 = vtanh.pop %v849
    %v978 = vtanh.pop %v850
    %v979 = vtanh.pop %v851
    %v980 = vtanh.pop %v852
    %v981 = vtanh.pop %v853
    %v982 = vtanh.pop %v854
    %v983 = vtanh.pop %v855
    %v984 = vtanh.pop %v856
    %v985 = vtanh.pop %v857
    %v986 = vtanh.pop %v858
    %v987 = vadd.f32 %v859, 1.0
    %v988 = vadd.f32 %v860, 1.0
    %v989 = vadd.f32 %v861, 1.0
    %v990 = vadd.f32 %v862, 1.0
    %v991 = vadd.f32 %v863, 1.0
    %v992 = vadd.f32 %v864, 1.0
    %v993 = vadd.f32 %v865, 1.0
    %v994 = vadd.f32 %v866, 1.0
    %v995 = vadd.f32 %v867, 1.0
    %v996 = vadd.f32 %v868, 1.0
    %v997 = vadd.f32 %v869, 1.0
    %v998 = vadd.f32 %v870, 1.0
    %v999 = vadd.f32 %v871, 1.0
    %v1000 = vadd.f32 %v872, 1.0
    %v1001 = vadd.f32 %v873, 1.0
    %v1002 = vadd.f32 %v874, 1.0
    %v1003 = vadd.f32 %v875, 1.0
    %v1004 = vadd.f32 %v876, 1.0
    %v1005 = vadd.f32 %v877, 1.0
    %v1006 = vadd.f32 %v878, 1.0
    %v1007 = vadd.f32 %v879, 1.0
    %v1008 = vadd.f32 %v880, 1.0
    %v1009 = vadd.f32 %v881, 1.0
    %v1010 = vadd.f32 %v882, 1.0
    %v1011 = vadd.f32 %v883, 1.0
    %v1012 = vadd.f32 %v884, 1.0
    %v1013 = vadd.f32 %v885, 1.0
    %v1014 = vadd.f32 %v886, 1.0
    %v1015 = vadd.f32 %v887, 1.0
    %v1016 = vadd.f32 %v888, 1.0
    %v1017 = vadd.f32 %v889, 1.0
    %v1018 = vadd.f32 %v890, 1.0
    %v1019 = vadd.f32 %v891, 1.0
    %v1020 = vadd.f32 %v892, 1.0
    %v1021 = vadd.f32 %v893, 1.0
    %v1022 = vadd.f32 %v894, 1.0
    %v1023 = vadd.f32 %v895, 1.0
    %v1024 = vadd.f32 %v896, 1.0
    %v1025 = vadd.f32 %v897, 1.0
    %v1026 = vadd.f32 %v898, 1.0
    %v1027 = vadd.f32 %v899, 1.0
    %v1028 = vadd.f32 %v900, 1.0
    %v1029 = vadd.f32 %v901, 1.0
    %v1030 = vadd.f32 %v902, 1.0
    %v1031 = vadd.f32 %v903, 1.0
    %v1032 = vadd.f32 %v904, 1.0
    %v1033 = vadd.f32 %v905, 1.0
    %v1034 = vadd.f32 %v906, 1.0
    %v1035 = vadd.f32 %v907, 1.0
    %v1036 = vadd.f32 %v908, 1.0
    %v1037 = vadd.f32 %v909, 1.0
    %v1038 = vadd.f32 %v910, 1.0
    %v1039 = vadd.f32 %v911, 1.0
    %v1040 = vadd.f32 %v912, 1.0
    %v1041 = vadd.f32 %v913, 1.0
    %v1042 = vadd.f32 %v914, 1.0
    %v1043 = vadd.f32 %v915, 1.0
    %v1044 = vadd.f32 %v916, 1.0
    %v1045 = vadd.f32 %v917, 1.0
    %v1046 = vadd.f32 %v918, 1.0
    %v1047 = vadd.f32 %v919, 1.0
    %v1048 = vadd.f32 %v920, 1.0
    %v1049 = vadd.f32 %v921, 1.0
    %v1050 = vadd.f32 %v922, 1.0
    %v1051 = vadd.f32 %v923, 1.0
    %v1052 = vadd.f32 %v924, 1.0
    %v1053 = vadd.f32 %v925, 1.0
    %v1054 = vadd.f32 %v926, 1.0
    %v1055 = vadd.f32 %v927, 1.0
    %v1056 = vadd.f32 %v928, 1.0
    %v1057 = vadd.f32 %v929, 1.0
    %v1058 = vadd.f32 %v930, 1.0
    %v1059 = vadd.f32 %v931, 1.0
    %v1060 = vadd.f32 %v932, 1.0
    %v1061 = vadd.f32 %v933, 1.0
    %v1062 = vadd.f32 %v934, 1.0
    %v1063 = vadd.f32 %v935, 1.0
    %v1064 = vadd.f32 %v936, 1.0
    %v1065 = vadd.f32 %v937, 1.0
    %v1066 = vadd.f32 %v938, 1.0
    %v1067 = vadd.f32 %v939, 1.0
    %v1068 = vadd.f32 %v940, 1.0
    %v1069 = vadd.f32 %v941, 1.0
    %v1070 = vadd.f32 %v942, 1.0
    %v1071 = vadd.f32 %v943, 1.0
    %v1072 = vadd.f32 %v944, 1.0
    %v1073 = vadd.f32 %v945, 1.0
    %v1074 = vadd.f32 %v946, 1.0
    %v1075 = vadd.f32 %v947, 1.0
    %v1076 = vadd.f32 %v948, 1.0
    %v1077 = vadd.f32 %v949, 1.0
    %v1078 = vadd.f32 %v950, 1.0
    %v1079 = vadd.f32 %v951, 1.0
    %v1080 = vadd.f32 %v952, 1.0
    %v1081 = vadd.f32 %v953, 1.0
    %v1082 = vadd.f32 %v954, 1.0
    %v1083 = vadd.f32 %v955, 1.0
    %v1084 = vadd.f32 %v956, 1.0
    %v1085 = vadd.f32 %v957, 1.0
    %v1086 = vadd.f32 %v958, 1.0
    %v1087 = vadd.f32 %v959, 1.0
    %v1088 = vadd.f32 %v960, 1.0
    %v1089 = vadd.f32 %v961, 1.0
    %v1090 = vadd.f32 %v962, 1.0
    %v1091 = vadd.f32 %v963, 1.0
    %v1092 = vadd.f32 %v964, 1.0
    %v1093 = vadd.f32 %v965, 1.0
    %v1094 = vadd.f32 %v966, 1.0
    %v1095 = vadd.f32 %v967, 1.0
    %v1096 = vadd.f32 %v968, 1.0
    %v1097 = vadd.f32 %v969, 1.0
    %v1098 = vadd.f32 %v970, 1.0
    %v1099 = vadd.f32 %v971, 1.0
    %v1100 = vadd.f32 %v972, 1.0
    %v1101 = vadd.f32 %v973, 1.0
    %v1102 = vadd.f32 %v974, 1.0
    %v1103 = vadd.f32 %v975, 1.0
    %v1104 = vadd.f32 %v976, 1.0
    %v1105 = vadd.f32 %v977, 1.0
    %v1106 = vadd.f32 %v978, 1.0
    %v1107 = vadd.f32 %v979, 1.0
    %v1108 = vadd.f32 %v980, 1.0
    %v1109 = vadd.f32 %v981, 1.0
    %v1110 = vadd.f32 %v982, 1.0
    %v1111 = vadd.f32 %v983, 1.0
    %v1112 = vadd.f32 %v984, 1.0
    %v1113 = vadd.f32 %v985, 1.0
    %v1114 = vadd.f32 %v986, 1.0
    %v1115 = vmul.f32 %v987, 0.5
    %v1116 = vmul.f32 %v988, 0.5
    %v1117 = vmul.f32 %v989, 0.5
    %v1118 = vmul.f32 %v990, 0.5
    %v1119 = vmul.f32 %v991, 0.5
    %v1120 = vmul.f32 %v992, 0.5
    %v1121 = vmul.f32 %v993, 0.5
    %v1122 = vmul.f32 %v994, 0.5
    %v1123 = vmul.f32 %v995, 0.5
    %v1124 = vmul.f32 %v996, 0.5
    %v1125 = vmul.f32 %v997, 0.5
    %v1126 = vmul.f32 %v998, 0.5
    %v1127 = vmul.f32 %v999, 0.5
    %v1128 = vmul.f32 %v1000, 0.5
    %v1129 = vmul.f32 %v1001, 0.5
    %v1130 = vmul.f32 %v1002, 0.5
    %v1131 = vmul.f32 %v1003, 0.5
    %v1132 = vmul.f32 %v1004, 0.5
    %v1133 = vmul.f32 %v1005, 0.5
    %v1134 = vmul.f32 %v1006, 0.5
    %v1135 = vmul.f32 %v1007, 0.5
    %v1136 = vmul.f32 %v1008, 0.5
    %v1137 = vmul.f32 %v1009, 0.5
    %v1138 = vmul.f32 %v1010, 0.5
    %v1139 = vmul.f32 %v1011, 0.5
    %v1140 = vmul.f32 %v1012, 0.5
    %v1141 = vmul.f32 %v1013, 0.5
    %v1142 = vmul.f32 %v1014, 0.5
    %v1143 = vmul.f32 %v1015, 0.5
    %v1144 = vmul.f32 %v1016, 0.5
    %v1145 = vmul.f32 %v1017, 0.5
    %v1146 = vmul.f32 %v1018, 0.5
    %v1147 = vmul.f32 %v1019, 0.5
    %v1148 = vmul.f32 %v1020, 0.5
    %v1149 = vmul.f32 %v1021, 0.5
    %v1150 = vmul.f32 %v1022, 0.5
    %v1151 = vmul.f32 %v1023, 0.5
    %v1152 = vmul.f32 %v1024, 0.5
    %v1153 = vmul.f32 %v1025, 0.5
    %v1154 = vmul.f32 %v1026, 0.5
    %v1155 = vmul.f32 %v1027, 0.5
    %v1156 = vmul.f32 %v1028, 0.5
    %v1157 = vmul.f32 %v1029, 0.5
    %v1158 = vmul.f32 %v1030, 0.5
    %v1159 = vmul.f32 %v1031, 0.5
    %v1160 = vmul.f32 %v1032, 0.5
    %v1161 = vmul.f32 %v1033, 0.5
    %v1162 = vmul.f32 %v1034, 0.5
    %v1163 = vmul.f32 %v1035, 0.5
    %v1164 = vmul.f32 %v1036, 0.5
    %v1165 = vmul.f32 %v1037, 0.5
    %v1166 = vmul.f32 %v1038, 0.5
    %v1167 = vmul.f32 %v1039, 0.5
    %v1168 = vmul.f32 %v1040, 0.5
    %v1169 = vmul.f32 %v1041, 0.5
    %v1170 = vmul.f32 %v1042, 0.5
    %v1171 = vmul.f32 %v1043, 0.5
    %v1172 = vmul.f32 %v1044, 0.5
    %v1173 = vmul.f32 %v1045, 0.5
    %v1174 = vmul.f32 %v1046, 0.5
    %v1175 = vmul.f32 %v1047, 0.5
    %v1176 = vmul.f32 %v1048, 0.5
    %v1177 = vmul.f32 %v1049, 0.5
    %v1178 = vmul.f32 %v1050, 0.5
    %v1179 = vmul.f32 %v1051, 0.5
    %v1180 = vmul.f32 %v1052, 0.5
    %v1181 = vmul.f32 %v1053, 0.5
    %v1182 = vmul.f32 %v1054, 0.5
    %v1183 = vmul.f32 %v1055, 0.5
    %v1184 = vmul.f32 %v1056, 0.5
    %v1185 = vmul.f32 %v1057, 0.5
    %v1186 = vmul.f32 %v1058, 0.5
    %v1187 = vmul.f32 %v1059, 0.5
    %v1188 = vmul.f32 %v1060, 0.5
    %v1189 = vmul.f32 %v1061, 0.5
    %v1190 = vmul.f32 %v1062, 0.5
    %v1191 = vmul.f32 %v1063, 0.5
    %v1192 = vmul.f32 %v1064, 0.5
    %v1193 = vmul.f32 %v1065, 0.5
    %v1194 = vmul.f32 %v1066, 0.5
    %v1195 = vmul.f32 %v1067, 0.5
    %v1196 = vmul.f32 %v1068, 0.5
    %v1197 = vmul.f32 %v1069, 0.5
    %v1198 = vmul.f32 %v1070, 0.5
    %v1199 = vmul.f32 %v1071, 0.5
    %v1200 = vmul.f32 %v1072, 0.5
    %v1201 = vmul.f32 %v1073, 0.5
    %v1202 = vmul.f32 %v1074, 0.5
    %v1203 = vmul.f32 %v1075, 0.5
    %v1204 = vmul.f32 %v1076, 0.5
    %v1205 = vmul.f32 %v1077, 0.5
    %v1206 = vmul.f32 %v1078, 0.5
    %v1207 = vmul.f32 %v1079, 0.5
    %v1208 = vmul.f32 %v1080, 0.5
    %v1209 = vmul.f32 %v1081, 0.5
    %v1210 = vmul.f32 %v1082, 0.5
    %v1211 = vmul.f32 %v1083, 0.5
    %v1212 = vmul.f32 %v1084, 0.5
    %v1213 = vmul.f32 %v1085, 0.5
    %v1214 = vmul.f32 %v1086, 0.5
    %v1215 = vmul.f32 %v1087, 0.5
    %v1216 = vmul.f32 %v1088, 0.5
    %v1217 = vmul.f32 %v1089, 0.5
    %v1218 = vmul.f32 %v1090, 0.5
    %v1219 = vmul.f32 %v1091, 0.5
    %v1220 = vmul.f32 %v1092, 0.5
    %v1221 = vmul.f32 %v1093, 0.5
    %v1222 = vmul.f32 %v1094, 0.5
    %v1223 = vmul.f32 %v1095, 0.5
    %v1224 = vmul.f32 %v1096, 0.5
    %v1225 = vmul.f32 %v1097, 0.5
    %v1226 = vmul.f32 %v1098, 0.5
    %v1227 = vmul.f32 %v1099, 0.5
    %v1228 = vmul.f32 %v1100, 0.5
    %v1229 = vmul.f32 %v1101, 0.5
    %v1230 = vmul.f32 %v1102, 0.5
    %v1231 = vmul.f32 %v1103, 0.5
    %v1232 = vmul.f32 %v1104, 0.5
    %v1233 = vmul.f32 %v1105, 0.5
    %v1234 = vmul.f32 %v1106, 0.5
    %v1235 = vmul.f32 %v1107, 0.5
    %v1236 = vmul.f32 %v1108, 0.5
    %v1237 = vmul.f32 %v1109, 0.5
    %v1238 = vmul.f32 %v1110, 0.5
    %v1239 = vmul.f32 %v1111, 0.5
    %v1240 = vmul.f32 %v1112, 0.5
    %v1241 = vmul.f32 %v1113, 0.5
    %v1242 = vmul.f32 %v1114, 0.5
    %v1243 = vmul.f32 %v380, %v1115
    %v1244 = vmul.f32 %v382, %v1116
    %v1245 = vmul.f32 %v573, %v1117
    %v1246 = vmul.f32 %v575, %v1118
    %v1247 = vmul.f32 %v384, %v1119
    %v1248 = vmul.f32 %v386, %v1120
    %v1249 = vmul.f32 %v577, %v1121
    %v1250 = vmul.f32 %v579, %v1122
    %v1251 = vmul.f32 %v390, %v1123
    %v1252 = vmul.f32 %v392, %v1124
    %v1253 = vmul.f32 %v583, %v1125
    %v1254 = vmul.f32 %v585, %v1126
    %v1255 = vmul.f32 %v394, %v1127
    %v1256 = vmul.f32 %v396, %v1128
    %v1257 = vmul.f32 %v587, %v1129
    %v1258 = vmul.f32 %v589, %v1130
    %v1259 = vmul.f32 %v400, %v1131
    %v1260 = vmul.f32 %v402, %v1132
    %v1261 = vmul.f32 %v593, %v1133
    %v1262 = vmul.f32 %v595, %v1134
    %v1263 = vmul.f32 %v404, %v1135
    %v1264 = vmul.f32 %v406, %v1136
    %v1265 = vmul.f32 %v597, %v1137
    %v1266 = vmul.f32 %v599, %v1138
    %v1267 = vmul.f32 %v410, %v1139
    %v1268 = vmul.f32 %v412, %v1140
    %v1269 = vmul.f32 %v603, %v1141
    %v1270 = vmul.f32 %v605, %v1142
    %v1271 = vmul.f32 %v414, %v1143
    %v1272 = vmul.f32 %v416, %v1144
    %v1273 = vmul.f32 %v607, %v1145
    %v1274 = vmul.f32 %v609, %v1146
    %v1275 = vmul.f32 %v420, %v1147
    %v1276 = vmul.f32 %v422, %v1148
    %v1277 = vmul.f32 %v613, %v1149
    %v1278 = vmul.f32 %v615, %v1150
    %v1279 = vmul.f32 %v424, %v1151
    %v1280 = vmul.f32 %v426, %v1152
    %v1281 = vmul.f32 %v617, %v1153
    %v1282 = vmul.f32 %v619, %v1154
    %v1283 = vmul.f32 %v430, %v1155
    %v1284 = vmul.f32 %v432, %v1156
    %v1285 = vmul.f32 %v623, %v1157
    %v1286 = vmul.f32 %v625, %v1158
    %v1287 = vmul.f32 %v434, %v1159
    %v1288 = vmul.f32 %v436, %v1160
    %v1289 = vmul.f32 %v627, %v1161
    %v1290 = vmul.f32 %v629, %v1162
    %v1291 = vmul.f32 %v440, %v1163
    %v1292 = vmul.f32 %v442, %v1164
    %v1293 = vmul.f32 %v633, %v1165
    %v1294 = vmul.f32 %v635, %v1166
    %v1295 = vmul.f32 %v444, %v1167
    %v1296 = vmul.f32 %v446, %v1168
    %v1297 = vmul.f32 %v637, %v1169
    %v1298 = vmul.f32 %v639, %v1170
    %v1299 = vmul.f32 %v450, %v1171
    %v1300 = vmul.f32 %v452, %v1172
    %v1301 = vmul.f32 %v643, %v1173
    %v1302 = vmul.f32 %v645, %v1174
    %v1303 = vmul.f32 %v454, %v1175
    %v1304 = vmul.f32 %v456, %v1176
    %v1305 = vmul.f32 %v647, %v1177
    %v1306 = vmul.f32 %v649, %v1178
    %v1307 = vmul.f32 %v460, %v1179
    %v1308 = vmul.f32 %v462, %v1180
    %v1309 = vmul.f32 %v653, %v1181
    %v1310 = vmul.f32 %v655, %v1182
    %v1311 = vmul.f32 %v464, %v1183
    %v1312 = vmul.f32 %v466, %v1184
    %v1313 = vmul.f32 %v657, %v1185
    %v1314 = vmul.f32 %v659, %v1186
    %v1315 = vmul.f32 %v470, %v1187
    %v1316 = vmul.f32 %v472, %v1188
    %v1317 = vmul.f32 %v663, %v1189
    %v1318 = vmul.f32 %v665, %v1190
    %v1319 = vmul.f32 %v474, %v1191
    %v1320 = vmul.f32 %v476, %v1192
    %v1321 = vmul.f32 %v667, %v1193
    %v1322 = vmul.f32 %v669, %v1194
    %v1323 = vmul.f32 %v480, %v1195
    %v1324 = vmul.f32 %v482, %v1196
    %v1325 = vmul.f32 %v673, %v1197
    %v1326 = vmul.f32 %v675, %v1198
    %v1327 = vmul.f32 %v484, %v1199
    %v1328 = vmul.f32 %v486, %v1200
    %v1329 = vmul.f32 %v677, %v1201
    %v1330 = vmul.f32 %v679, %v1202
    %v1331 = vmul.f32 %v490, %v1203
    %v1332 = vmul.f32 %v492, %v1204
    %v1333 = vmul.f32 %v683, %v1205
    %v1334 = vmul.f32 %v685, %v1206
    %v1335 = vmul.f32 %v494, %v1207
    %v1336 = vmul.f32 %v496, %v1208
    %v1337 = vmul.f32 %v687, %v1209
    %v1338 = vmul.f32 %v689, %v1210
    %v1339 = vmul.f32 %v500, %v1211
    %v1340 = vmul.f32 %v502, %v1212
    %v1341 = vmul.f32 %v693, %v1213
    %v1342 = vmul.f32 %v695, %v1214
    %v1343 = vmul.f32 %v504, %v1215
    %v1344 = vmul.f32 %v506, %v1216
    %v1345 = vmul.f32 %v697, %v1217
    %v1346 = vmul.f32 %v699, %v1218
    %v1347 = vmul.f32 %v510, %v1219
    %v1348 = vmul.f32 %v512, %v1220
    %v1349 = vmul.f32 %v703, %v1221
    %v1350 = vmul.f32 %v705, %v1222
    %v1351 = vmul.f32 %v514, %v1223
    %v1352 = vmul.f32 %v516, %v1224
    %v1353 = vmul.f32 %v707, %v1225
    %v1354 = vmul.f32 %v709, %v1226
    %v1355 = vmul.f32 %v520, %v1227
    %v1356 = vmul.f32 %v522, %v1228
    %v1357 = vmul.f32 %v713, %v1229
    %v1358 = vmul.f32 %v715, %v1230
    %v1359 = vmul.f32 %v524, %v1231
    %v1360 = vmul.f32 %v526, %v1232
    %v1361 = vmul.f32 %v717, %v1233
    %v1362 = vmul.f32 %v719, %v1234
    %v1363 = vmul.f32 %v530, %v1235
    %v1364 = vmul.f32 %v532, %v1236
    %v1365 = vmul.f32 %v723, %v1237
    %v1366 = vmul.f32 %v725, %v1238
    %v1367 = vmul.f32 %v534, %v1239
    %v1368 = vmul.f32 %v536, %v1240
    %v1369 = vmul.f32 %v727, %v1241
    %v1370 = vmul.f32 %v729, %v1242
    %v1371 = vpack.c.bf16 %v1247, %v1243
    %v1372 = vpack.c.bf16 %v1248, %v1244
    %v1373 = vpack.c.bf16 %v1249, %v1245
    %v1374 = vpack.c.bf16 %v1250, %v1246
    %v1375 = vpack.c.bf16 %v1255, %v1251
    %v1376 = vpack.c.bf16 %v1256, %v1252
    %v1377 = vpack.c.bf16 %v1257, %v1253
    %v1378 = vpack.c.bf16 %v1258, %v1254
    %v1379 = vpack.c.bf16 %v1263, %v1259
    %v1380 = vpack.c.bf16 %v1264, %v1260
    %v1381 = vpack.c.bf16 %v1265, %v1261
    %v1382 = vpack.c.bf16 %v1266, %v1262
    %v1383 = vpack.c.bf16 %v1271, %v1267
    %v1384 = vpack.c.bf16 %v1272, %v1268
    %v1385 = vpack.c.bf16 %v1273, %v1269
    %v1386 = vpack.c.bf16 %v1274, %v1270
    %v1387 = vpack.c.bf16 %v1279, %v1275
    %v1388 = vpack.c.bf16 %v1280, %v1276
    %v1389 = vpack.c.bf16 %v1281, %v1277
    %v1390 = vpack.c.bf16 %v1282, %v1278
    %v1391 = vpack.c.bf16 %v1287, %v1283
    %v1392 = vpack.c.bf16 %v1288, %v1284
    %v1393 = vpack.c.bf16 %v1289, %v1285
    %v1394 = vpack.c.bf16 %v1290, %v1286
    %v1395 = vpack.c.bf16 %v1295, %v1291
    %v1396 = vpack.c.bf16 %v1296, %v1292
    %v1397 = vpack.c.bf16 %v1297, %v1293
    %v1398 = vpack.c.bf16 %v1298, %v1294
    %v1399 = vpack.c.bf16 %v1303, %v1299
    %v1400 = vpack.c.bf16 %v1304, %v1300
    %v1401 = vpack.c.bf16 %v1305, %v1301
    %v1402 = vpack.c.bf16 %v1306, %v1302
    %v1403 = vpack.c.bf16 %v1311, %v1307
    %v1404 = vpack.c.bf16 %v1312, %v1308
    %v1405 = vpack.c.bf16 %v1313, %v1309
    %v1406 = vpack.c.bf16 %v1314, %v1310
    %v1407 = vpack.c.bf16 %v1319, %v1315
    %v1408 = vpack.c.bf16 %v1320, %v1316
    %v1409 = vpack.c.bf16 %v1321, %v1317
    %v1410 = vpack.c.bf16 %v1322, %v1318
    %v1411 = vpack.c.bf16 %v1327, %v1323
    %v1412 = vpack.c.bf16 %v1328, %v1324
    %v1413 = vpack.c.bf16 %v1329, %v1325
    %v1414 = vpack.c.bf16 %v1330, %v1326
    %v1415 = vpack.c.bf16 %v1335, %v1331
    %v1416 = vpack.c.bf16 %v1336, %v1332
    %v1417 = vpack.c.bf16 %v1337, %v1333
    %v1418 = vpack.c.bf16 %v1338, %v1334
    %v1419 = vpack.c.bf16 %v1343, %v1339
    %v1420 = vpack.c.bf16 %v1344, %v1340
    %v1421 = vpack.c.bf16 %v1345, %v1341
    %v1422 = vpack.c.bf16 %v1346, %v1342
    %v1423 = vpack.c.bf16 %v1351, %v1347
    %v1424 = vpack.c.bf16 %v1352, %v1348
    %v1425 = vpack.c.bf16 %v1353, %v1349
    %v1426 = vpack.c.bf16 %v1354, %v1350
    %v1427 = vpack.c.bf16 %v1359, %v1355
    %v1428 = vpack.c.bf16 %v1360, %v1356
    %v1429 = vpack.c.bf16 %v1361, %v1357
    %v1430 = vpack.c.bf16 %v1362, %v1358
    %v1431 = vpack.c.bf16 %v1367, %v1363
    %v1432 = vpack.c.bf16 %v1368, %v1364
    %v1433 = vpack.c.bf16 %v1369, %v1365
    %v1434 = vpack.c.bf16 %v1370, %v1366
    %v1435 = vld [vmem:[#allocation7] sm:$0xff]
    %v1436 = vld [vmem:[#allocation7 + $0x8] sm:$0xff]
    %v1437 = vld [vmem:[#allocation7 + $0x10] sm:$0xff]
    %v1438 = vld [vmem:[#allocation7 + $0x18] sm:$0xff]
    %v1439 = vld [vmem:[#allocation7 + $0x20] sm:$0xff]
    %v1440 = vld [vmem:[#allocation7 + $0x28] sm:$0xff]
    %v1441 = vld [vmem:[#allocation7 + $0x30] sm:$0xff]
    %v1442 = vld [vmem:[#allocation7 + $0x38] sm:$0xff]
    %v1443 = vld [vmem:[#allocation7 + $0x40] sm:$0xff]
    %v1444 = vld [vmem:[#allocation7 + $0x48] sm:$0xff]
    %v1445 = vld [vmem:[#allocation7 + $0x50] sm:$0xff]
    %v1446 = vld [vmem:[#allocation7 + $0x58] sm:$0xff]
    %v1447 = vld [vmem:[#allocation7 + $0x60] sm:$0xff]
    %v1448 = vld [vmem:[#allocation7 + $0x68] sm:$0xff]
    %v1449 = vld [vmem:[#allocation7 + $0x70] sm:$0xff]
    %v1450 = vld [vmem:[#allocation7 + $0x78] sm:$0xff]
    %v1451 = vld [vmem:[#allocation7 + $0x80] sm:$0xff]
    %v1452 = vld [vmem:[#allocation7 + $0x88] sm:$0xff]
    %v1453 = vld [vmem:[#allocation7 + $0x90] sm:$0xff]
    %v1454 = vld [vmem:[#allocation7 + $0x98] sm:$0xff]
    %v1455 = vld [vmem:[#allocation7 + $0xa0] sm:$0xff]
    %v1456 = vld [vmem:[#allocation7 + $0xa8] sm:$0xff]
    %v1457 = vld [vmem:[#allocation7 + $0xb0] sm:$0xff]
    %v1458 = vld [vmem:[#allocation7 + $0xb8] sm:$0xff]
    %v1459 = vld [vmem:[#allocation7 + $0xc0] sm:$0xff]
    %v1460 = vld [vmem:[#allocation7 + $0xc8] sm:$0xff]
    %v1461 = vld [vmem:[#allocation7 + $0xd0] sm:$0xff]
    %v1462 = vld [vmem:[#allocation7 + $0xd8] sm:$0xff]
    %v1463 = vld [vmem:[#allocation7 + $0xe0] sm:$0xff]
    %v1464 = vld [vmem:[#allocation7 + $0xe8] sm:$0xff]
    %v1465 = vld [vmem:[#allocation7 + $0xf0] sm:$0xff]
    %v1466 = vld [vmem:[#allocation7 + $0xf8] sm:$0xff]
    %v1467 = vld [vmem:[#allocation7 + $0x100] sm:$0xff]
    %v1468 = vld [vmem:[#allocation7 + $0x108] sm:$0xff]
    %v1469 = vld [vmem:[#allocation7 + $0x110] sm:$0xff]
    %v1470 = vld [vmem:[#allocation7 + $0x118] sm:$0xff]
    %v1471 = vld [vmem:[#allocation7 + $0x120] sm:$0xff]
    %v1472 = vld [vmem:[#allocation7 + $0x128] sm:$0xff]
    %v1473 = vld [vmem:[#allocation7 + $0x130] sm:$0xff]
    %v1474 = vld [vmem:[#allocation7 + $0x138] sm:$0xff]
    %v1475 = vld [vmem:[#allocation7 + $0x140] sm:$0xff]
    %v1476 = vld [vmem:[#allocation7 + $0x148] sm:$0xff]
    %v1477 = vld [vmem:[#allocation7 + $0x150] sm:$0xff]
    %v1478 = vld [vmem:[#allocation7 + $0x158] sm:$0xff]
    %v1479 = vld [vmem:[#allocation7 + $0x160] sm:$0xff]
    %v1480 = vld [vmem:[#allocation7 + $0x168] sm:$0xff]
    %v1481 = vld [vmem:[#allocation7 + $0x170] sm:$0xff]
    %v1482 = vld [vmem:[#allocation7 + $0x178] sm:$0xff]
    %v1483 = vld [vmem:[#allocation7 + $0x180] sm:$0xff]
    %v1484 = vld [vmem:[#allocation7 + $0x188] sm:$0xff]
    %v1485 = vld [vmem:[#allocation7 + $0x190] sm:$0xff]
    %v1486 = vld [vmem:[#allocation7 + $0x198] sm:$0xff]
    %v1487 = vld [vmem:[#allocation7 + $0x1a0] sm:$0xff]
    %v1488 = vld [vmem:[#allocation7 + $0x1a8] sm:$0xff]
    %v1489 = vld [vmem:[#allocation7 + $0x1b0] sm:$0xff]
    %v1490 = vld [vmem:[#allocation7 + $0x1b8] sm:$0xff]
    %v1491 = vld [vmem:[#allocation7 + $0x1c0] sm:$0xff]
    %v1492 = vld [vmem:[#allocation7 + $0x1c8] sm:$0xff]
    %v1493 = vld [vmem:[#allocation7 + $0x1d0] sm:$0xff]
    %v1494 = vld [vmem:[#allocation7 + $0x1d8] sm:$0xff]
    %v1495 = vld [vmem:[#allocation7 + $0x1e0] sm:$0xff]
    %v1496 = vld [vmem:[#allocation7 + $0x1e8] sm:$0xff]
    %v1497 = vld [vmem:[#allocation7 + $0x1f0] sm:$0xff]
    %v1498 = vld [vmem:[#allocation7 + $0x1f8] sm:$0xff]
    %v1499 = vld [vmem:[#allocation7 + $0x200] sm:$0xff]
    %v1500 = vld [vmem:[#allocation7 + $0x208] sm:$0xff]
    %v1501 = vld [vmem:[#allocation7 + $0x210] sm:$0xff]
    %v1502 = vld [vmem:[#allocation7 + $0x218] sm:$0xff]
    %v1503 = vld [vmem:[#allocation7 + $0x220] sm:$0xff]
    %v1504 = vld [vmem:[#allocation7 + $0x228] sm:$0xff]
    %v1505 = vld [vmem:[#allocation7 + $0x230] sm:$0xff]
    %v1506 = vld [vmem:[#allocation7 + $0x238] sm:$0xff]
    %v1507 = vld [vmem:[#allocation7 + $0x240] sm:$0xff]
    %v1508 = vld [vmem:[#allocation7 + $0x248] sm:$0xff]
    %v1509 = vld [vmem:[#allocation7 + $0x250] sm:$0xff]
    %v1510 = vld [vmem:[#allocation7 + $0x258] sm:$0xff]
    %v1511 = vld [vmem:[#allocation7 + $0x260] sm:$0xff]
    %v1512 = vld [vmem:[#allocation7 + $0x268] sm:$0xff]
    %v1513 = vld [vmem:[#allocation7 + $0x270] sm:$0xff]
    %v1514 = vld [vmem:[#allocation7 + $0x278] sm:$0xff]
    %v1515 = vld [vmem:[#allocation7 + $0x280] sm:$0xff]
    %v1516 = vld [vmem:[#allocation7 + $0x288] sm:$0xff]
    %v1517 = vld [vmem:[#allocation7 + $0x290] sm:$0xff]
    %v1518 = vld [vmem:[#allocation7 + $0x298] sm:$0xff]
    %v1519 = vld [vmem:[#allocation7 + $0x2a0] sm:$0xff]
    %v1520 = vld [vmem:[#allocation7 + $0x2a8] sm:$0xff]
    %v1521 = vld [vmem:[#allocation7 + $0x2b0] sm:$0xff]
    %v1522 = vld [vmem:[#allocation7 + $0x2b8] sm:$0xff]
    %v1523 = vld [vmem:[#allocation7 + $0x2c0] sm:$0xff]
    %v1524 = vld [vmem:[#allocation7 + $0x2c8] sm:$0xff]
    %v1525 = vld [vmem:[#allocation7 + $0x2d0] sm:$0xff]
    %v1526 = vld [vmem:[#allocation7 + $0x2d8] sm:$0xff]
    %v1527 = vld [vmem:[#allocation7 + $0x2e0] sm:$0xff]
    %v1528 = vld [vmem:[#allocation7 + $0x2e8] sm:$0xff]
    %v1529 = vld [vmem:[#allocation7 + $0x2f0] sm:$0xff]
    %v1530 = vld [vmem:[#allocation7 + $0x2f8] sm:$0xff]
    %v1531 = vld [vmem:[#allocation7 + $0x300] sm:$0xff]
    %v1532 = vld [vmem:[#allocation7 + $0x308] sm:$0xff]
    %v1533 = vld [vmem:[#allocation7 + $0x310] sm:$0xff]
    %v1534 = vld [vmem:[#allocation7 + $0x318] sm:$0xff]
    %v1535 = vld [vmem:[#allocation7 + $0x320] sm:$0xff]
    %v1536 = vld [vmem:[#allocation7 + $0x328] sm:$0xff]
    %v1537 = vld [vmem:[#allocation7 + $0x330] sm:$0xff]
    %v1538 = vld [vmem:[#allocation7 + $0x338] sm:$0xff]
    %v1539 = vld [vmem:[#allocation7 + $0x340] sm:$0xff]
    %v1540 = vld [vmem:[#allocation7 + $0x348] sm:$0xff]
    %v1541 = vld [vmem:[#allocation7 + $0x350] sm:$0xff]
    %v1542 = vld [vmem:[#allocation7 + $0x358] sm:$0xff]
    %v1543 = vld [vmem:[#allocation7 + $0x360] sm:$0xff]
    %v1544 = vld [vmem:[#allocation7 + $0x368] sm:$0xff]
    %v1545 = vld [vmem:[#allocation7 + $0x370] sm:$0xff]
    %v1546 = vld [vmem:[#allocation7 + $0x378] sm:$0xff]
    %v1547 = vld [vmem:[#allocation7 + $0x380] sm:$0xff]
    %v1548 = vld [vmem:[#allocation7 + $0x388] sm:$0xff]
    %v1549 = vld [vmem:[#allocation7 + $0x390] sm:$0xff]
    %v1550 = vld [vmem:[#allocation7 + $0x398] sm:$0xff]
    %v1551 = vld [vmem:[#allocation7 + $0x3a0] sm:$0xff]
    %v1552 = vld [vmem:[#allocation7 + $0x3a8] sm:$0xff]
    %v1553 = vld [vmem:[#allocation7 + $0x3b0] sm:$0xff]
    %v1554 = vld [vmem:[#allocation7 + $0x3b8] sm:$0xff]
    %v1555 = vld [vmem:[#allocation7 + $0x3c0] sm:$0xff]
    %v1556 = vld [vmem:[#allocation7 + $0x3c8] sm:$0xff]
    %v1557 = vld [vmem:[#allocation7 + $0x3d0] sm:$0xff]
    %v1558 = vld [vmem:[#allocation7 + $0x3d8] sm:$0xff]
    %v1559 = vld [vmem:[#allocation7 + $0x3e0] sm:$0xff]
    %v1560 = vld [vmem:[#allocation7 + $0x3e8] sm:$0xff]
    %v1561 = vld [vmem:[#allocation7 + $0x3f0] sm:$0xff]
    %v1562 = vld [vmem:[#allocation7 + $0x3f8] sm:$0xff]
    %v1563 = vld [vmem:[%s4] sm:$0xf]
    %v1565 = vlaneseq
    %v1566 = vshrl.u32 %v1565, 7
    %v1567 = vsub.s32 0, %v1566
    %v1568 = vrot.slane %v1563, %v1567
    %v1569 = vlaneseq
    %v1570 = vshrl.u32 %v1569, 7
    %v1571 = vsub.s32 1, %v1570
    %v1572 = vrot.slane %v1563, %v1571
    %v1573 = vlaneseq
    %v1574 = vshrl.u32 %v1573, 7
    %v1575 = vsub.s32 2, %v1574
    %v1576 = vrot.slane %v1563, %v1575
    %v1577 = vlaneseq
    %v1578 = vshrl.u32 %v1577, 7
    %v1579 = vsub.s32 3, %v1578
    %v1580 = vrot.slane %v1563, %v1579
    %v1713 = vunpack.c.l.b16 %v1435
    %v1714 = vunpack.c.h.b16 %v1435
    %v1715 = vunpack.c.l.b16 %v1436
    %v1716 = vunpack.c.h.b16 %v1436
    %v1717 = vunpack.c.l.b16 %v1437
    %v1718 = vunpack.c.h.b16 %v1437
    %v1719 = vunpack.c.l.b16 %v1438
    %v1720 = vunpack.c.h.b16 %v1438
    %v1721 = vunpack.c.l.b16 %v1439
    %v1722 = vunpack.c.h.b16 %v1439
    %v1723 = vunpack.c.l.b16 %v1440
    %v1724 = vunpack.c.h.b16 %v1440
    %v1725 = vunpack.c.l.b16 %v1441
    %v1726 = vunpack.c.h.b16 %v1441
    %v1727 = vunpack.c.l.b16 %v1442
    %v1728 = vunpack.c.h.b16 %v1442
    %v1729 = vunpack.c.l.b16 %v1443
    %v1730 = vunpack.c.h.b16 %v1443
    %v1731 = vunpack.c.l.b16 %v1444
    %v1732 = vunpack.c.h.b16 %v1444
    %v1733 = vunpack.c.l.b16 %v1445
    %v1734 = vunpack.c.h.b16 %v1445
    %v1735 = vunpack.c.l.b16 %v1446
    %v1736 = vunpack.c.h.b16 %v1446
    %v1737 = vunpack.c.l.b16 %v1447
    %v1738 = vunpack.c.h.b16 %v1447
    %v1739 = vunpack.c.l.b16 %v1448
    %v1740 = vunpack.c.h.b16 %v1448
    %v1741 = vunpack.c.l.b16 %v1449
    %v1742 = vunpack.c.h.b16 %v1449
    %v1743 = vunpack.c.l.b16 %v1450
    %v1744 = vunpack.c.h.b16 %v1450
    %v1745 = vunpack.c.l.b16 %v1451
    %v1746 = vunpack.c.h.b16 %v1451
    %v1747 = vunpack.c.l.b16 %v1452
    %v1748 = vunpack.c.h.b16 %v1452
    %v1749 = vunpack.c.l.b16 %v1453
    %v1750 = vunpack.c.h.b16 %v1453
    %v1751 = vunpack.c.l.b16 %v1454
    %v1752 = vunpack.c.h.b16 %v1454
    %v1753 = vunpack.c.l.b16 %v1455
    %v1754 = vunpack.c.h.b16 %v1455
    %v1755 = vunpack.c.l.b16 %v1456
    %v1756 = vunpack.c.h.b16 %v1456
    %v1757 = vunpack.c.l.b16 %v1457
    %v1758 = vunpack.c.h.b16 %v1457
    %v1759 = vunpack.c.l.b16 %v1458
    %v1760 = vunpack.c.h.b16 %v1458
    %v1761 = vunpack.c.l.b16 %v1459
    %v1762 = vunpack.c.h.b16 %v1459
    %v1763 = vunpack.c.l.b16 %v1460
    %v1764 = vunpack.c.h.b16 %v1460
    %v1765 = vunpack.c.l.b16 %v1461
    %v1766 = vunpack.c.h.b16 %v1461
    %v1767 = vunpack.c.l.b16 %v1462
    %v1768 = vunpack.c.h.b16 %v1462
    %v1769 = vunpack.c.l.b16 %v1463
    %v1770 = vunpack.c.h.b16 %v1463
    %v1771 = vunpack.c.l.b16 %v1464
    %v1772 = vunpack.c.h.b16 %v1464
    %v1773 = vunpack.c.l.b16 %v1465
    %v1774 = vunpack.c.h.b16 %v1465
    %v1775 = vunpack.c.l.b16 %v1466
    %v1776 = vunpack.c.h.b16 %v1466
    %v1777 = vunpack.c.l.b16 %v1467
    %v1778 = vunpack.c.h.b16 %v1467
    %v1779 = vunpack.c.l.b16 %v1468
    %v1780 = vunpack.c.h.b16 %v1468
    %v1781 = vunpack.c.l.b16 %v1469
    %v1782 = vunpack.c.h.b16 %v1469
    %v1783 = vunpack.c.l.b16 %v1470
    %v1784 = vunpack.c.h.b16 %v1470
    %v1785 = vunpack.c.l.b16 %v1471
    %v1786 = vunpack.c.h.b16 %v1471
    %v1787 = vunpack.c.l.b16 %v1472
    %v1788 = vunpack.c.h.b16 %v1472
    %v1789 = vunpack.c.l.b16 %v1473
    %v1790 = vunpack.c.h.b16 %v1473
    %v1791 = vunpack.c.l.b16 %v1474
    %v1792 = vunpack.c.h.b16 %v1474
    %v1793 = vunpack.c.l.b16 %v1475
    %v1794 = vunpack.c.h.b16 %v1475
    %v1795 = vunpack.c.l.b16 %v1476
    %v1796 = vunpack.c.h.b16 %v1476
    %v1797 = vunpack.c.l.b16 %v1477
    %v1798 = vunpack.c.h.b16 %v1477
    %v1799 = vunpack.c.l.b16 %v1478
    %v1800 = vunpack.c.h.b16 %v1478
    %v1801 = vunpack.c.l.b16 %v1479
    %v1802 = vunpack.c.h.b16 %v1479
    %v1803 = vunpack.c.l.b16 %v1480
    %v1804 = vunpack.c.h.b16 %v1480
    %v1805 = vunpack.c.l.b16 %v1481
    %v1806 = vunpack.c.h.b16 %v1481
    %v1807 = vunpack.c.l.b16 %v1482
    %v1808 = vunpack.c.h.b16 %v1482
    %v1809 = vunpack.c.l.b16 %v1483
    %v1810 = vunpack.c.h.b16 %v1483
    %v1811 = vunpack.c.l.b16 %v1484
    %v1812 = vunpack.c.h.b16 %v1484
    %v1813 = vunpack.c.l.b16 %v1485
    %v1814 = vunpack.c.h.b16 %v1485
    %v1815 = vunpack.c.l.b16 %v1486
    %v1816 = vunpack.c.h.b16 %v1486
    %v1817 = vunpack.c.l.b16 %v1487
    %v1818 = vunpack.c.h.b16 %v1487
    %v1819 = vunpack.c.l.b16 %v1488
    %v1820 = vunpack.c.h.b16 %v1488
    %v1821 = vunpack.c.l.b16 %v1489
    %v1822 = vunpack.c.h.b16 %v1489
    %v1823 = vunpack.c.l.b16 %v1490
    %v1824 = vunpack.c.h.b16 %v1490
    %v1825 = vunpack.c.l.b16 %v1491
    %v1826 = vunpack.c.h.b16 %v1491
    %v1827 = vunpack.c.l.b16 %v1492
    %v1828 = vunpack.c.h.b16 %v1492
    %v1829 = vunpack.c.l.b16 %v1493
    %v1830 = vunpack.c.h.b16 %v1493
    %v1831 = vunpack.c.l.b16 %v1494
    %v1832 = vunpack.c.h.b16 %v1494
    %v1833 = vunpack.c.l.b16 %v1495
    %v1834 = vunpack.c.h.b16 %v1495
    %v1835 = vunpack.c.l.b16 %v1496
    %v1836 = vunpack.c.h.b16 %v1496
    %v1837 = vunpack.c.l.b16 %v1497
    %v1838 = vunpack.c.h.b16 %v1497
    %v1839 = vunpack.c.l.b16 %v1498
    %v1840 = vunpack.c.h.b16 %v1498
    %v1841 = vunpack.c.l.b16 %v1499
    %v1842 = vunpack.c.h.b16 %v1499
    %v1843 = vunpack.c.l.b16 %v1500
    %v1844 = vunpack.c.h.b16 %v1500
    %v1845 = vunpack.c.l.b16 %v1501
    %v1846 = vunpack.c.h.b16 %v1501
    %v1847 = vunpack.c.l.b16 %v1502
    %v1848 = vunpack.c.h.b16 %v1502
    %v1849 = vunpack.c.l.b16 %v1503
    %v1850 = vunpack.c.h.b16 %v1503
    %v1851 = vunpack.c.l.b16 %v1504
    %v1852 = vunpack.c.h.b16 %v1504
    %v1853 = vunpack.c.l.b16 %v1505
    %v1854 = vunpack.c.h.b16 %v1505
    %v1855 = vunpack.c.l.b16 %v1506
    %v1856 = vunpack.c.h.b16 %v1506
    %v1857 = vunpack.c.l.b16 %v1507
    %v1858 = vunpack.c.h.b16 %v1507
    %v1859 = vunpack.c.l.b16 %v1508
    %v1860 = vunpack.c.h.b16 %v1508
    %v1861 = vunpack.c.l.b16 %v1509
    %v1862 = vunpack.c.h.b16 %v1509
    %v1863 = vunpack.c.l.b16 %v1510
    %v1864 = vunpack.c.h.b16 %v1510
    %v1865 = vunpack.c.l.b16 %v1511
    %v1866 = vunpack.c.h.b16 %v1511
    %v1867 = vunpack.c.l.b16 %v1512
    %v1868 = vunpack.c.h.b16 %v1512
    %v1869 = vunpack.c.l.b16 %v1513
    %v1870 = vunpack.c.h.b16 %v1513
    %v1871 = vunpack.c.l.b16 %v1514
    %v1872 = vunpack.c.h.b16 %v1514
    %v1873 = vunpack.c.l.b16 %v1515
    %v1874 = vunpack.c.h.b16 %v1515
    %v1875 = vunpack.c.l.b16 %v1516
    %v1876 = vunpack.c.h.b16 %v1516
    %v1877 = vunpack.c.l.b16 %v1517
    %v1878 = vunpack.c.h.b16 %v1517
    %v1879 = vunpack.c.l.b16 %v1518
    %v1880 = vunpack.c.h.b16 %v1518
    %v1881 = vunpack.c.l.b16 %v1519
    %v1882 = vunpack.c.h.b16 %v1519
    %v1883 = vunpack.c.l.b16 %v1520
    %v1884 = vunpack.c.h.b16 %v1520
    %v1885 = vunpack.c.l.b16 %v1521
    %v1886 = vunpack.c.h.b16 %v1521
    %v1887 = vunpack.c.l.b16 %v1522
    %v1888 = vunpack.c.h.b16 %v1522
    %v1889 = vunpack.c.l.b16 %v1523
    %v1890 = vunpack.c.h.b16 %v1523
    %v1891 = vunpack.c.l.b16 %v1524
    %v1892 = vunpack.c.h.b16 %v1524
    %v1893 = vunpack.c.l.b16 %v1525
    %v1894 = vunpack.c.h.b16 %v1525
    %v1895 = vunpack.c.l.b16 %v1526
    %v1896 = vunpack.c.h.b16 %v1526
    %v1897 = vunpack.c.l.b16 %v1527
    %v1898 = vunpack.c.h.b16 %v1527
    %v1899 = vunpack.c.l.b16 %v1528
    %v1900 = vunpack.c.h.b16 %v1528
    %v1901 = vunpack.c.l.b16 %v1529
    %v1902 = vunpack.c.h.b16 %v1529
    %v1903 = vunpack.c.l.b16 %v1530
    %v1904 = vunpack.c.h.b16 %v1530
    %v1905 = vunpack.c.l.b16 %v1531
    %v1906 = vunpack.c.h.b16 %v1531
    %v1907 = vunpack.c.l.b16 %v1532
    %v1908 = vunpack.c.h.b16 %v1532
    %v1909 = vunpack.c.l.b16 %v1533
    %v1910 = vunpack.c.h.b16 %v1533
    %v1911 = vunpack.c.l.b16 %v1534
    %v1912 = vunpack.c.h.b16 %v1534
    %v1913 = vunpack.c.l.b16 %v1535
    %v1914 = vunpack.c.h.b16 %v1535
    %v1915 = vunpack.c.l.b16 %v1536
    %v1916 = vunpack.c.h.b16 %v1536
    %v1917 = vunpack.c.l.b16 %v1537
    %v1918 = vunpack.c.h.b16 %v1537
    %v1919 = vunpack.c.l.b16 %v1538
    %v1920 = vunpack.c.h.b16 %v1538
    %v1921 = vunpack.c.l.b16 %v1539
    %v1922 = vunpack.c.h.b16 %v1539
    %v1923 = vunpack.c.l.b16 %v1540
    %v1924 = vunpack.c.h.b16 %v1540
    %v1925 = vunpack.c.l.b16 %v1541
    %v1926 = vunpack.c.h.b16 %v1541
    %v1927 = vunpack.c.l.b16 %v1542
    %v1928 = vunpack.c.h.b16 %v1542
    %v1929 = vunpack.c.l.b16 %v1543
    %v1930 = vunpack.c.h.b16 %v1543
    %v1931 = vunpack.c.l.b16 %v1544
    %v1932 = vunpack.c.h.b16 %v1544
    %v1933 = vunpack.c.l.b16 %v1545
    %v1934 = vunpack.c.h.b16 %v1545
    %v1935 = vunpack.c.l.b16 %v1546
    %v1936 = vunpack.c.h.b16 %v1546
    %v1937 = vunpack.c.l.b16 %v1547
    %v1938 = vunpack.c.h.b16 %v1547
    %v1939 = vunpack.c.l.b16 %v1548
    %v1940 = vunpack.c.h.b16 %v1548
    %v1941 = vunpack.c.l.b16 %v1549
    %v1942 = vunpack.c.h.b16 %v1549
    %v1943 = vunpack.c.l.b16 %v1550
    %v1944 = vunpack.c.h.b16 %v1550
    %v1945 = vunpack.c.l.b16 %v1551
    %v1946 = vunpack.c.h.b16 %v1551
    %v1947 = vunpack.c.l.b16 %v1552
    %v1948 = vunpack.c.h.b16 %v1552
    %v1949 = vunpack.c.l.b16 %v1553
    %v1950 = vunpack.c.h.b16 %v1553
    %v1951 = vunpack.c.l.b16 %v1554
    %v1952 = vunpack.c.h.b16 %v1554
    %v1953 = vunpack.c.l.b16 %v1555
    %v1954 = vunpack.c.h.b16 %v1555
    %v1955 = vunpack.c.l.b16 %v1556
    %v1956 = vunpack.c.h.b16 %v1556
    %v1957 = vunpack.c.l.b16 %v1557
    %v1958 = vunpack.c.h.b16 %v1557
    %v1959 = vunpack.c.l.b16 %v1558
    %v1960 = vunpack.c.h.b16 %v1558
    %v1961 = vunpack.c.l.b16 %v1559
    %v1962 = vunpack.c.h.b16 %v1559
    %v1963 = vunpack.c.l.b16 %v1560
    %v1964 = vunpack.c.h.b16 %v1560
    %v1965 = vunpack.c.l.b16 %v1561
    %v1966 = vunpack.c.h.b16 %v1561
    %v1967 = vunpack.c.l.b16 %v1562
    %v1968 = vunpack.c.h.b16 %v1562
    %v1969 = vpack.c.b16 %v1717, %v1713
    %v1970 = vpack.c.b16 %v1718, %v1714
    %v1971 = vpack.c.b16 %v1719, %v1715
    %v1972 = vpack.c.b16 %v1720, %v1716
    %v1973 = vpack.c.b16 %v1725, %v1721
    %v1974 = vpack.c.b16 %v1726, %v1722
    %v1975 = vpack.c.b16 %v1727, %v1723
    %v1976 = vpack.c.b16 %v1728, %v1724
    %v1977 = vpack.c.b16 %v1733, %v1729
    %v1978 = vpack.c.b16 %v1734, %v1730
    %v1979 = vpack.c.b16 %v1735, %v1731
    %v1980 = vpack.c.b16 %v1736, %v1732
    %v1981 = vpack.c.b16 %v1741, %v1737
    %v1982 = vpack.c.b16 %v1742, %v1738
    %v1983 = vpack.c.b16 %v1743, %v1739
    %v1984 = vpack.c.b16 %v1744, %v1740
    %v1985 = vpack.c.b16 %v1749, %v1745
    %v1986 = vpack.c.b16 %v1750, %v1746
    %v1987 = vpack.c.b16 %v1751, %v1747
    %v1988 = vpack.c.b16 %v1752, %v1748
    %v1989 = vpack.c.b16 %v1757, %v1753
    %v1990 = vpack.c.b16 %v1758, %v1754
    %v1991 = vpack.c.b16 %v1759, %v1755
    %v1992 = vpack.c.b16 %v1760, %v1756
    %v1993 = vpack.c.b16 %v1765, %v1761
    %v1994 = vpack.c.b16 %v1766, %v1762
    %v1995 = vpack.c.b16 %v1767, %v1763
    %v1996 = vpack.c.b16 %v1768, %v1764
    %v1997 = vpack.c.b16 %v1773, %v1769
    %v1998 = vpack.c.b16 %v1774, %v1770
    %v1999 = vpack.c.b16 %v1775, %v1771
    %v2000 = vpack.c.b16 %v1776, %v1772
    %v2001 = vpack.c.b16 %v1781, %v1777
    %v2002 = vpack.c.b16 %v1782, %v1778
    %v2003 = vpack.c.b16 %v1783, %v1779
    %v2004 = vpack.c.b16 %v1784, %v1780
    %v2005 = vpack.c.b16 %v1789, %v1785
    %v2006 = vpack.c.b16 %v1790, %v1786
    %v2007 = vpack.c.b16 %v1791, %v1787
    %v2008 = vpack.c.b16 %v1792, %v1788
    %v2009 = vpack.c.b16 %v1797, %v1793
    %v2010 = vpack.c.b16 %v1798, %v1794
    %v2011 = vpack.c.b16 %v1799, %v1795
    %v2012 = vpack.c.b16 %v1800, %v1796
    %v2013 = vpack.c.b16 %v1805, %v1801
    %v2014 = vpack.c.b16 %v1806, %v1802
    %v2015 = vpack.c.b16 %v1807, %v1803
    %v2016 = vpack.c.b16 %v1808, %v1804
    %v2017 = vpack.c.b16 %v1813, %v1809
    %v2018 = vpack.c.b16 %v1814, %v1810
    %v2019 = vpack.c.b16 %v1815, %v1811
    %v2020 = vpack.c.b16 %v1816, %v1812
    %v2021 = vpack.c.b16 %v1821, %v1817
    %v2022 = vpack.c.b16 %v1822, %v1818
    %v2023 = vpack.c.b16 %v1823, %v1819
    %v2024 = vpack.c.b16 %v1824, %v1820
    %v2025 = vpack.c.b16 %v1829, %v1825
    %v2026 = vpack.c.b16 %v1830, %v1826
    %v2027 = vpack.c.b16 %v1831, %v1827
    %v2028 = vpack.c.b16 %v1832, %v1828
    %v2029 = vpack.c.b16 %v1837, %v1833
    %v2030 = vpack.c.b16 %v1838, %v1834
    %v2031 = vpack.c.b16 %v1839, %v1835
    %v2032 = vpack.c.b16 %v1840, %v1836
    %v2033 = vpack.c.b16 %v1845, %v1841
    %v2034 = vpack.c.b16 %v1846, %v1842
    %v2035 = vpack.c.b16 %v1847, %v1843
    %v2036 = vpack.c.b16 %v1848, %v1844
    %v2037 = vpack.c.b16 %v1853, %v1849
    %v2038 = vpack.c.b16 %v1854, %v1850
    %v2039 = vpack.c.b16 %v1855, %v1851
    %v2040 = vpack.c.b16 %v1856, %v1852
    %v2041 = vpack.c.b16 %v1861, %v1857
    %v2042 = vpack.c.b16 %v1862, %v1858
    %v2043 = vpack.c.b16 %v1863, %v1859
    %v2044 = vpack.c.b16 %v1864, %v1860
    %v2045 = vpack.c.b16 %v1869, %v1865
    %v2046 = vpack.c.b16 %v1870, %v1866
    %v2047 = vpack.c.b16 %v1871, %v1867
    %v2048 = vpack.c.b16 %v1872, %v1868
    %v2049 = vpack.c.b16 %v1877, %v1873
    %v2050 = vpack.c.b16 %v1878, %v1874
    %v2051 = vpack.c.b16 %v1879, %v1875
    %v2052 = vpack.c.b16 %v1880, %v1876
    %v2053 = vpack.c.b16 %v1885, %v1881
    %v2054 = vpack.c.b16 %v1886, %v1882
    %v2055 = vpack.c.b16 %v1887, %v1883
    %v2056 = vpack.c.b16 %v1888, %v1884
    %v2057 = vpack.c.b16 %v1893, %v1889
    %v2058 = vpack.c.b16 %v1894, %v1890
    %v2059 = vpack.c.b16 %v1895, %v1891
    %v2060 = vpack.c.b16 %v1896, %v1892
    %v2061 = vpack.c.b16 %v1901, %v1897
    %v2062 = vpack.c.b16 %v1902, %v1898
    %v2063 = vpack.c.b16 %v1903, %v1899
    %v2064 = vpack.c.b16 %v1904, %v1900
    %v2065 = vpack.c.b16 %v1909, %v1905
    %v2066 = vpack.c.b16 %v1910, %v1906
    %v2067 = vpack.c.b16 %v1911, %v1907
    %v2068 = vpack.c.b16 %v1912, %v1908
    %v2069 = vpack.c.b16 %v1917, %v1913
    %v2070 = vpack.c.b16 %v1918, %v1914
    %v2071 = vpack.c.b16 %v1919, %v1915
    %v2072 = vpack.c.b16 %v1920, %v1916
    %v2073 = vpack.c.b16 %v1925, %v1921
    %v2074 = vpack.c.b16 %v1926, %v1922
    %v2075 = vpack.c.b16 %v1927, %v1923
    %v2076 = vpack.c.b16 %v1928, %v1924
    %v2077 = vpack.c.b16 %v1933, %v1929
    %v2078 = vpack.c.b16 %v1934, %v1930
    %v2079 = vpack.c.b16 %v1935, %v1931
    %v2080 = vpack.c.b16 %v1936, %v1932
    %v2081 = vpack.c.b16 %v1941, %v1937
    %v2082 = vpack.c.b16 %v1942, %v1938
    %v2083 = vpack.c.b16 %v1943, %v1939
    %v2084 = vpack.c.b16 %v1944, %v1940
    %v2085 = vpack.c.b16 %v1949, %v1945
    %v2086 = vpack.c.b16 %v1950, %v1946
    %v2087 = vpack.c.b16 %v1951, %v1947
    %v2088 = vpack.c.b16 %v1952, %v1948
    %v2089 = vpack.c.b16 %v1957, %v1953
    %v2090 = vpack.c.b16 %v1958, %v1954
    %v2091 = vpack.c.b16 %v1959, %v1955
    %v2092 = vpack.c.b16 %v1960, %v1956
    %v2093 = vpack.c.b16 %v1965, %v1961
    %v2094 = vpack.c.b16 %v1966, %v1962
    %v2095 = vpack.c.b16 %v1967, %v1963
    %v2096 = vpack.c.b16 %v1968, %v1964
    %2225 = vmatprep.subr.bf16.mxu0 %v1970
    %2226 = vmatpush1.bf16.msra.mxu0 %v1969
    %2227 = vmatprep.subr.bf16.mxu0 %v1974
    %2228 = vmatpush1.bf16.msra.mxu0 %v1973
    %2229 = vmatprep.subr.bf16.mxu0 %v1978
    %2230 = vmatpush1.bf16.msra.mxu0 %v1977
    %2231 = vmatprep.subr.bf16.mxu0 %v1982
    %2232 = vmatpush1.bf16.msra.mxu0 %v1981
    %2233 = vmatprep.subr.bf16.mxu0 %v1986
    %2234 = vmatpush1.bf16.msra.mxu0 %v1985
    %2235 = vmatprep.subr.bf16.mxu0 %v1990
    %2236 = vmatpush1.bf16.msra.mxu0 %v1989
    %2237 = vmatprep.subr.bf16.mxu0 %v1994
    %2238 = vmatpush1.bf16.msra.mxu0 %v1993
    %2239 = vmatprep.subr.bf16.mxu0 %v1998
    %2240 = vmatpush1.bf16.msra.mxu0 %v1997
    %2241 = vmatprep.subr.bf16.mxu0 %v2002
    %2242 = vmatpush1.bf16.msra.mxu0 %v2001
    %2243 = vmatprep.subr.bf16.mxu0 %v2006
    %2244 = vmatpush1.bf16.msra.mxu0 %v2005
    %2245 = vmatprep.subr.bf16.mxu0 %v2010
    %2246 = vmatpush1.bf16.msra.mxu0 %v2009
    %2247 = vmatprep.subr.bf16.mxu0 %v2014
    %2248 = vmatpush1.bf16.msra.mxu0 %v2013
    %2249 = vmatprep.subr.bf16.mxu0 %v2018
    %2250 = vmatpush1.bf16.msra.mxu0 %v2017
    %2251 = vmatprep.subr.bf16.mxu0 %v2022
    %2252 = vmatpush1.bf16.msra.mxu0 %v2021
    %2253 = vmatprep.subr.bf16.mxu0 %v2026
    %2254 = vmatpush1.bf16.msra.mxu0 %v2025
    %2255 = vmatprep.subr.bf16.mxu0 %v2030
    %2256 = vmatpush1.bf16.msra.mxu0 %v2029
    %2257 = vmatprep.mubr.bf16.mxu0 %v1372
    %2258 = vmatmul.mubr.bf16.gmra.mrb[0].mxu0 %v1371
    %v2259 = vpop.f32.mrb[0].mxu0
    %v2260 = vadd.f32 %v1568, %v2259
    %v2261 = vpop.f32.mrb[0].mxu0
    %v2262 = vadd.f32 %v1572, %v2261
    %v2263 = vpop.f32.mrb[0].mxu0
    %v2264 = vadd.f32 %v1568, %v2263
    %v2265 = vpop.f32.mrb[0].mxu0
    %v2266 = vadd.f32 %v1572, %v2265
    %2267 = vmatprep.mubr.bf16.mxu0 %v1376
    %2268 = vmatmul.mubr.bf16.gmra.mrb[0].mxu0 %v1375
    %v2269 = vpop.f32.mrb[0].mxu0
    %v2270 = vadd.f32 %v1568, %v2269
    %v2271 = vpop.f32.mrb[0].mxu0
    %v2272 = vadd.f32 %v1572, %v2271
    %v2273 = vpop.f32.mrb[0].mxu0
    %v2274 = vadd.f32 %v1568, %v2273
    %v2275 = vpop.f32.mrb[0].mxu0
    %v2276 = vadd.f32 %v1572, %v2275
    %2277 = vmatprep.mubr.bf16.mxu0 %v1380
    %2278 = vmatmul.mubr.bf16.gmra.mrb[0].mxu0 %v1379
    %v2279 = vpop.f32.mrb[0].mxu0
    %v2280 = vadd.f32 %v1568, %v2279
    %v2281 = vpop.f32.mrb[0].mxu0
    %v2282 = vadd.f32 %v1572, %v2281
    %v2283 = vpop.f32.mrb[0].mxu0
    %v2284 = vadd.f32 %v1568, %v2283
    %v2285 = vpop.f32.mrb[0].mxu0
    %v2286 = vadd.f32 %v1572, %v2285
    %2287 = vmatprep.mubr.bf16.mxu0 %v1384
    %2288 = vmatmul.mubr.bf16.gmra.mrb[0].mxu0 %v1383
    %v2289 = vpop.f32.mrb[0].mxu0
    %v2290 = vadd.f32 %v1568, %v2289
    %v2291 = vpop.f32.mrb[0].mxu0
    %v2292 = vadd.f32 %v1572, %v2291
    %v2293 = vpop.f32.mrb[0].mxu0
    %v2294 = vadd.f32 %v1568, %v2293
    %v2295 = vpop.f32.mrb[0].mxu0
    %v2296 = vadd.f32 %v1572, %v2295
    %2297 = vmatprep.mubr.bf16.mxu0 %v1388
    %2298 = vmatmul.mubr.bf16.gmra.mrb[0].mxu0 %v1387
    %v2299 = vpop.f32.mrb[0].mxu0
    %v2300 = vadd.f32 %v1568, %v2299
    %v2301 = vpop.f32.mrb[0].mxu0
    %v2302 = vadd.f32 %v1572, %v2301
    %v2303 = vpop.f32.mrb[0].mxu0
    %v2304 = vadd.f32 %v1568, %v2303
    %v2305 = vpop.f32.mrb[0].mxu0
    %v2306 = vadd.f32 %v1572, %v2305
    %2307 = vmatprep.mubr.bf16.mxu0 %v1392
    %2308 = vmatmul.mubr.bf16.gmra.mrb[0].mxu0 %v1391
    %v2309 = vpop.f32.mrb[0].mxu0
    %v2310 = vadd.f32 %v1568, %v2309
    %v2311 = vpop.f32.mrb[0].mxu0
    %v2312 = vadd.f32 %v1572, %v2311
    %v2313 = vpop.f32.mrb[0].mxu0
    %v2314 = vadd.f32 %v1568, %v2313
    %v2315 = vpop.f32.mrb[0].mxu0
    %v2316 = vadd.f32 %v1572, %v2315
    %2317 = vmatprep.mubr.bf16.mxu0 %v1396
    %2318 = vmatmul.mubr.bf16.gmra.mrb[0].mxu0 %v1395
    %v2319 = vpop.f32.mrb[0].mxu0
    %v2320 = vadd.f32 %v1568, %v2319
    %v2321 = vpop.f32.mrb[0].mxu0
    %v2322 = vadd.f32 %v1572, %v2321
    %v2323 = vpop.f32.mrb[0].mxu0
    %v2324 = vadd.f32 %v1568, %v2323
    %v2325 = vpop.f32.mrb[0].mxu0
    %v2326 = vadd.f32 %v1572, %v2325
    %2327 = vmatprep.mubr.bf16.mxu0 %v1400
    %2328 = vmatmul.mubr.bf16.gmra.mrb[0].mxu0 %v1399
    %v2329 = vpop.f32.mrb[0].mxu0
    %v2330 = vadd.f32 %v1568, %v2329
    %v2331 = vpop.f32.mrb[0].mxu0
    %v2332 = vadd.f32 %v1572, %v2331
    %v2333 = vpop.f32.mrb[0].mxu0
    %v2334 = vadd.f32 %v1568, %v2333
    %v2335 = vpop.f32.mrb[0].mxu0
    %v2336 = vadd.f32 %v1572, %v2335
    %2337 = vmatprep.mubr.bf16.mxu0 %v1404
    %2338 = vmatmul.mubr.bf16.gmra.mrb[0].mxu0 %v1403
    %v2339 = vpop.f32.mrb[0].mxu0
    %v2340 = vadd.f32 %v1568, %v2339
    %v2341 = vpop.f32.mrb[0].mxu0
    %v2342 = vadd.f32 %v1572, %v2341
    %v2343 = vpop.f32.mrb[0].mxu0
    %v2344 = vadd.f32 %v1568, %v2343
    %v2345 = vpop.f32.mrb[0].mxu0
    %v2346 = vadd.f32 %v1572, %v2345
    %2347 = vmatprep.mubr.bf16.mxu0 %v1408
    %2348 = vmatmul.mubr.bf16.gmra.mrb[0].mxu0 %v1407
    %v2349 = vpop.f32.mrb[0].mxu0
    %v2350 = vadd.f32 %v1568, %v2349
    %v2351 = vpop.f32.mrb[0].mxu0
    %v2352 = vadd.f32 %v1572, %v2351
    %v2353 = vpop.f32.mrb[0].mxu0
    %v2354 = vadd.f32 %v1568, %v2353
    %v2355 = vpop.f32.mrb[0].mxu0
    %v2356 = vadd.f32 %v1572, %v2355
    %2357 = vmatprep.mubr.bf16.mxu0 %v1412
    %2358 = vmatmul.mubr.bf16.gmra.mrb[0].mxu0 %v1411
    %v2359 = vpop.f32.mrb[0].mxu0
    %v2360 = vadd.f32 %v1568, %v2359
    %v2361 = vpop.f32.mrb[0].mxu0
    %v2362 = vadd.f32 %v1572, %v2361
    %v2363 = vpop.f32.mrb[0].mxu0
    %v2364 = vadd.f32 %v1568, %v2363
    %v2365 = vpop.f32.mrb[0].mxu0
    %v2366 = vadd.f32 %v1572, %v2365
    %2367 = vmatprep.mubr.bf16.mxu0 %v1416
    %2368 = vmatmul.mubr.bf16.gmra.mrb[0].mxu0 %v1415
    %v2369 = vpop.f32.mrb[0].mxu0
    %v2370 = vadd.f32 %v1568, %v2369
    %v2371 = vpop.f32.mrb[0].mxu0
    %v2372 = vadd.f32 %v1572, %v2371
    %v2373 = vpop.f32.mrb[0].mxu0
    %v2374 = vadd.f32 %v1568, %v2373
    %v2375 = vpop.f32.mrb[0].mxu0
    %v2376 = vadd.f32 %v1572, %v2375
    %2377 = vmatprep.mubr.bf16.mxu0 %v1420
    %2378 = vmatmul.mubr.bf16.gmra.mrb[0].mxu0 %v1419
    %v2379 = vpop.f32.mrb[0].mxu0
    %v2380 = vadd.f32 %v1568, %v2379
    %v2381 = vpop.f32.mrb[0].mxu0
    %v2382 = vadd.f32 %v1572, %v2381
    %v2383 = vpop.f32.mrb[0].mxu0
    %v2384 = vadd.f32 %v1568, %v2383
    %v2385 = vpop.f32.mrb[0].mxu0
    %v2386 = vadd.f32 %v1572, %v2385
    %2387 = vmatprep.mubr.bf16.mxu0 %v1424
    %2388 = vmatmul.mubr.bf16.gmra.mrb[0].mxu0 %v1423
    %v2389 = vpop.f32.mrb[0].mxu0
    %v2390 = vadd.f32 %v1568, %v2389
    %v2391 = vpop.f32.mrb[0].mxu0
    %v2392 = vadd.f32 %v1572, %v2391
    %v2393 = vpop.f32.mrb[0].mxu0
    %v2394 = vadd.f32 %v1568, %v2393
    %v2395 = vpop.f32.mrb[0].mxu0
    %v2396 = vadd.f32 %v1572, %v2395
    %2397 = vmatprep.mubr.bf16.mxu0 %v1428
    %2398 = vmatmul.mubr.bf16.gmra.mrb[0].mxu0 %v1427
    %v2399 = vpop.f32.mrb[0].mxu0
    %v2400 = vadd.f32 %v1568, %v2399
    %v2401 = vpop.f32.mrb[0].mxu0
    %v2402 = vadd.f32 %v1572, %v2401
    %v2403 = vpop.f32.mrb[0].mxu0
    %v2404 = vadd.f32 %v1568, %v2403
    %v2405 = vpop.f32.mrb[0].mxu0
    %v2406 = vadd.f32 %v1572, %v2405
    %2407 = vmatprep.mubr.bf16.mxu0 %v1432
    %2408 = vmatmul.mubr.bf16.gmra.mrb[0].mxu0 %v1431
    %v2409 = vpop.f32.mrb[0].mxu0
    %v2410 = vadd.f32 %v1568, %v2409
    %v2411 = vpop.f32.mrb[0].mxu0
    %v2412 = vadd.f32 %v1572, %v2411
    %v2413 = vpop.f32.mrb[0].mxu0
    %v2414 = vadd.f32 %v1568, %v2413
    %v2415 = vpop.f32.mrb[0].mxu0
    %v2416 = vadd.f32 %v1572, %v2415
    %2417 = vdwg.mxu0
    %2418 = vmatprep.subr.bf16.mxu0 %v2034
    %2419 = vmatpush1.bf16.msra.mxu0 %v2033
    %2420 = vmatprep.subr.bf16.mxu0 %v2038
    %2421 = vmatpush1.bf16.msra.mxu0 %v2037
    %2422 = vmatprep.subr.bf16.mxu0 %v2042
    %2423 = vmatpush1.bf16.msra.mxu0 %v2041
    %2424 = vmatprep.subr.bf16.mxu0 %v2046
    %2425 = vmatpush1.bf16.msra.mxu0 %v2045
    %2426 = vmatprep.subr.bf16.mxu0 %v2050
    %2427 = vmatpush1.bf16.msra.mxu0 %v2049
    %2428 = vmatprep.subr.bf16.mxu0 %v2054
    %2429 = vmatpush1.bf16.msra.mxu0 %v2053
    %2430 = vmatprep.subr.bf16.mxu0 %v2058
    %2431 = vmatpush1.bf16.msra.mxu0 %v2057
    %2432 = vmatprep.subr.bf16.mxu0 %v2062
    %2433 = vmatpush1.bf16.msra.mxu0 %v2061
    %2434 = vmatprep.subr.bf16.mxu0 %v2066
    %2435 = vmatpush1.bf16.msra.mxu0 %v2065
    %2436 = vmatprep.subr.bf16.mxu0 %v2070
    %2437 = vmatpush1.bf16.msra.mxu0 %v2069
    %2438 = vmatprep.subr.bf16.mxu0 %v2074
    %2439 = vmatpush1.bf16.msra.mxu0 %v2073
    %2440 = vmatprep.subr.bf16.mxu0 %v2078
    %2441 = vmatpush1.bf16.msra.mxu0 %v2077
    %2442 = vmatprep.subr.bf16.mxu0 %v2082
    %2443 = vmatpush1.bf16.msra.mxu0 %v2081
    %2444 = vmatprep.subr.bf16.mxu0 %v2086
    %2445 = vmatpush1.bf16.msra.mxu0 %v2085
    %2446 = vmatprep.subr.bf16.mxu0 %v2090
    %2447 = vmatpush1.bf16.msra.mxu0 %v2089
    %2448 = vmatprep.subr.bf16.mxu0 %v2094
    %2449 = vmatpush1.bf16.msra.mxu0 %v2093
    %2450 = vmatprep.mubr.bf16.mxu0 %v1374
    %2451 = vmatmul.mubr.bf16.gmra.mrb[0].mxu0 %v1373
    %v2452 = vpop.f32.mrb[0].mxu0
    %v2453 = vadd.f32 %v2260, %v2452
    %v2454 = vpop.f32.mrb[0].mxu0
    %v2455 = vadd.f32 %v2262, %v2454
    %v2456 = vpop.f32.mrb[0].mxu0
    %v2457 = vadd.f32 %v2264, %v2456
    %v2458 = vpop.f32.mrb[0].mxu0
    %v2459 = vadd.f32 %v2266, %v2458
    %2460 = vmatprep.mubr.bf16.mxu0 %v1378
    %2461 = vmatmul.mubr.bf16.gmra.mrb[0].mxu0 %v1377
    %v2462 = vpop.f32.mrb[0].mxu0
    %v2463 = vadd.f32 %v2270, %v2462
    %v2464 = vpop.f32.mrb[0].mxu0
    %v2465 = vadd.f32 %v2272, %v2464
    %v2466 = vpop.f32.mrb[0].mxu0
    %v2467 = vadd.f32 %v2274, %v2466
    %v2468 = vpop.f32.mrb[0].mxu0
    %v2469 = vadd.f32 %v2276, %v2468
    %2470 = vmatprep.mubr.bf16.mxu0 %v1382
    %2471 = vmatmul.mubr.bf16.gmra.mrb[0].mxu0 %v1381
    %v2472 = vpop.f32.mrb[0].mxu0
    %v2473 = vadd.f32 %v2280, %v2472
    %v2474 = vpop.f32.mrb[0].mxu0
    %v2475 = vadd.f32 %v2282, %v2474
    %v2476 = vpop.f32.mrb[0].mxu0
    %v2477 = vadd.f32 %v2284, %v2476
    %v2478 = vpop.f32.mrb[0].mxu0
    %v2479 = vadd.f32 %v2286, %v2478
    %2480 = vmatprep.mubr.bf16.mxu0 %v1386
    %2481 = vmatmul.mubr.bf16.gmra.mrb[0].mxu0 %v1385
    %v2482 = vpop.f32.mrb[0].mxu0
    %v2483 = vadd.f32 %v2290, %v2482
    %v2484 = vpop.f32.mrb[0].mxu0
    %v2485 = vadd.f32 %v2292, %v2484
    %v2486 = vpop.f32.mrb[0].mxu0
    %v2487 = vadd.f32 %v2294, %v2486
    %v2488 = vpop.f32.mrb[0].mxu0
    %v2489 = vadd.f32 %v2296, %v2488
    %2490 = vmatprep.mubr.bf16.mxu0 %v1390
    %2491 = vmatmul.mubr.bf16.gmra.mrb[0].mxu0 %v1389
    %v2492 = vpop.f32.mrb[0].mxu0
    %v2493 = vadd.f32 %v2300, %v2492
    %v2494 = vpop.f32.mrb[0].mxu0
    %v2495 = vadd.f32 %v2302, %v2494
    %v2496 = vpop.f32.mrb[0].mxu0
    %v2497 = vadd.f32 %v2304, %v2496
    %v2498 = vpop.f32.mrb[0].mxu0
    %v2499 = vadd.f32 %v2306, %v2498
    %2500 = vmatprep.mubr.bf16.mxu0 %v1394
    %2501 = vmatmul.mubr.bf16.gmra.mrb[0].mxu0 %v1393
    %v2502 = vpop.f32.mrb[0].mxu0
    %v2503 = vadd.f32 %v2310, %v2502
    %v2504 = vpop.f32.mrb[0].mxu0
    %v2505 = vadd.f32 %v2312, %v2504
    %v2506 = vpop.f32.mrb[0].mxu0
    %v2507 = vadd.f32 %v2314, %v2506
    %v2508 = vpop.f32.mrb[0].mxu0
    %v2509 = vadd.f32 %v2316, %v2508
    %2510 = vmatprep.mubr.bf16.mxu0 %v1398
    %2511 = vmatmul.mubr.bf16.gmra.mrb[0].mxu0 %v1397
    %v2512 = vpop.f32.mrb[0].mxu0
    %v2513 = vadd.f32 %v2320, %v2512
    %v2514 = vpop.f32.mrb[0].mxu0
    %v2515 = vadd.f32 %v2322, %v2514
    %v2516 = vpop.f32.mrb[0].mxu0
    %v2517 = vadd.f32 %v2324, %v2516
    %v2518 = vpop.f32.mrb[0].mxu0
    %v2519 = vadd.f32 %v2326, %v2518
    %2520 = vmatprep.mubr.bf16.mxu0 %v1402
    %2521 = vmatmul.mubr.bf16.gmra.mrb[0].mxu0 %v1401
    %v2522 = vpop.f32.mrb[0].mxu0
    %v2523 = vadd.f32 %v2330, %v2522
    %v2524 = vpop.f32.mrb[0].mxu0
    %v2525 = vadd.f32 %v2332, %v2524
    %v2526 = vpop.f32.mrb[0].mxu0
    %v2527 = vadd.f32 %v2334, %v2526
    %v2528 = vpop.f32.mrb[0].mxu0
    %v2529 = vadd.f32 %v2336, %v2528
    %2530 = vmatprep.mubr.bf16.mxu0 %v1406
    %2531 = vmatmul.mubr.bf16.gmra.mrb[0].mxu0 %v1405
    %v2532 = vpop.f32.mrb[0].mxu0
    %v2533 = vadd.f32 %v2340, %v2532
    %v2534 = vpop.f32.mrb[0].mxu0
    %v2535 = vadd.f32 %v2342, %v2534
    %v2536 = vpop.f32.mrb[0].mxu0
    %v2537 = vadd.f32 %v2344, %v2536
    %v2538 = vpop.f32.mrb[0].mxu0
    %v2539 = vadd.f32 %v2346, %v2538
    %2540 = vmatprep.mubr.bf16.mxu0 %v1410
    %2541 = vmatmul.mubr.bf16.gmra.mrb[0].mxu0 %v1409
    %v2542 = vpop.f32.mrb[0].mxu0
    %v2543 = vadd.f32 %v2350, %v2542
    %v2544 = vpop.f32.mrb[0].mxu0
    %v2545 = vadd.f32 %v2352, %v2544
    %v2546 = vpop.f32.mrb[0].mxu0
    %v2547 = vadd.f32 %v2354, %v2546
    %v2548 = vpop.f32.mrb[0].mxu0
    %v2549 = vadd.f32 %v2356, %v2548
    %2550 = vmatprep.mubr.bf16.mxu0 %v1414
    %2551 = vmatmul.mubr.bf16.gmra.mrb[0].mxu0 %v1413
    %v2552 = vpop.f32.mrb[0].mxu0
    %v2553 = vadd.f32 %v2360, %v2552
    %v2554 = vpop.f32.mrb[0].mxu0
    %v2555 = vadd.f32 %v2362, %v2554
    %v2556 = vpop.f32.mrb[0].mxu0
    %v2557 = vadd.f32 %v2364, %v2556
    %v2558 = vpop.f32.mrb[0].mxu0
    %v2559 = vadd.f32 %v2366, %v2558
    %2560 = vmatprep.mubr.bf16.mxu0 %v1418
    %2561 = vmatmul.mubr.bf16.gmra.mrb[0].mxu0 %v1417
    %v2562 = vpop.f32.mrb[0].mxu0
    %v2563 = vadd.f32 %v2370, %v2562
    %v2564 = vpop.f32.mrb[0].mxu0
    %v2565 = vadd.f32 %v2372, %v2564
    %v2566 = vpop.f32.mrb[0].mxu0
    %v2567 = vadd.f32 %v2374, %v2566
    %v2568 = vpop.f32.mrb[0].mxu0
    %v2569 = vadd.f32 %v2376, %v2568
    %2570 = vmatprep.mubr.bf16.mxu0 %v1422
    %2571 = vmatmul.mubr.bf16.gmra.mrb[0].mxu0 %v1421
    %v2572 = vpop.f32.mrb[0].mxu0
    %v2573 = vadd.f32 %v2380, %v2572
    %v2574 = vpop.f32.mrb[0].mxu0
    %v2575 = vadd.f32 %v2382, %v2574
    %v2576 = vpop.f32.mrb[0].mxu0
    %v2577 = vadd.f32 %v2384, %v2576
    %v2578 = vpop.f32.mrb[0].mxu0
    %v2579 = vadd.f32 %v2386, %v2578
    %2580 = vmatprep.mubr.bf16.mxu0 %v1426
    %2581 = vmatmul.mubr.bf16.gmra.mrb[0].mxu0 %v1425
    %v2582 = vpop.f32.mrb[0].mxu0
    %v2583 = vadd.f32 %v2390, %v2582
    %v2584 = vpop.f32.mrb[0].mxu0
    %v2585 = vadd.f32 %v2392, %v2584
    %v2586 = vpop.f32.mrb[0].mxu0
    %v2587 = vadd.f32 %v2394, %v2586
    %v2588 = vpop.f32.mrb[0].mxu0
    %v2589 = vadd.f32 %v2396, %v2588
    %2590 = vmatprep.mubr.bf16.mxu0 %v1430
    %2591 = vmatmul.mubr.bf16.gmra.mrb[0].mxu0 %v1429
    %v2592 = vpop.f32.mrb[0].mxu0
    %v2593 = vadd.f32 %v2400, %v2592
    %v2594 = vpop.f32.mrb[0].mxu0
    %v2595 = vadd.f32 %v2402, %v2594
    %v2596 = vpop.f32.mrb[0].mxu0
    %v2597 = vadd.f32 %v2404, %v2596
    %v2598 = vpop.f32.mrb[0].mxu0
    %v2599 = vadd.f32 %v2406, %v2598
    %2600 = vmatprep.mubr.bf16.mxu0 %v1434
    %2601 = vmatmul.mubr.bf16.gmra.mrb[0].mxu0 %v1433
    %v2602 = vpop.f32.mrb[0].mxu0
    %v2603 = vadd.f32 %v2410, %v2602
    %v2604 = vpop.f32.mrb[0].mxu0
    %v2605 = vadd.f32 %v2412, %v2604
    %v2606 = vpop.f32.mrb[0].mxu0
    %v2607 = vadd.f32 %v2414, %v2606
    %v2608 = vpop.f32.mrb[0].mxu0
    %v2609 = vadd.f32 %v2416, %v2608
    %2610 = vdwg.mxu0
    %2611 = vmatprep.subr.bf16.mxu0 %v1972
    %2612 = vmatpush1.bf16.msra.mxu0 %v1971
    %2613 = vmatprep.subr.bf16.mxu0 %v1976
    %2614 = vmatpush1.bf16.msra.mxu0 %v1975
    %2615 = vmatprep.subr.bf16.mxu0 %v1980
    %2616 = vmatpush1.bf16.msra.mxu0 %v1979
    %2617 = vmatprep.subr.bf16.mxu0 %v1984
    %2618 = vmatpush1.bf16.msra.mxu0 %v1983
    %2619 = vmatprep.subr.bf16.mxu0 %v1988
    %2620 = vmatpush1.bf16.msra.mxu0 %v1987
    %2621 = vmatprep.subr.bf16.mxu0 %v1992
    %2622 = vmatpush1.bf16.msra.mxu0 %v1991
    %2623 = vmatprep.subr.bf16.mxu0 %v1996
    %2624 = vmatpush1.bf16.msra.mxu0 %v1995
    %2625 = vmatprep.subr.bf16.mxu0 %v2000
    %2626 = vmatpush1.bf16.msra.mxu0 %v1999
    %2627 = vmatprep.subr.bf16.mxu0 %v2004
    %2628 = vmatpush1.bf16.msra.mxu0 %v2003
    %2629 = vmatprep.subr.bf16.mxu0 %v2008
    %2630 = vmatpush1.bf16.msra.mxu0 %v2007
    %2631 = vmatprep.subr.bf16.mxu0 %v2012
    %2632 = vmatpush1.bf16.msra.mxu0 %v2011
    %2633 = vmatprep.subr.bf16.mxu0 %v2016
    %2634 = vmatpush1.bf16.msra.mxu0 %v2015
    %2635 = vmatprep.subr.bf16.mxu0 %v2020
    %2636 = vmatpush1.bf16.msra.mxu0 %v2019
    %2637 = vmatprep.subr.bf16.mxu0 %v2024
    %2638 = vmatpush1.bf16.msra.mxu0 %v2023
    %2639 = vmatprep.subr.bf16.mxu0 %v2028
    %2640 = vmatpush1.bf16.msra.mxu0 %v2027
    %2641 = vmatprep.subr.bf16.mxu0 %v2032
    %2642 = vmatpush1.bf16.msra.mxu0 %v2031
    %2643 = vmatprep.mubr.bf16.mxu0 %v1372
    %2644 = vmatmul.mubr.bf16.gmra.mrb[0].mxu0 %v1371
    %v2645 = vpop.f32.mrb[0].mxu0
    %v2646 = vadd.f32 %v1576, %v2645
    %v2647 = vpop.f32.mrb[0].mxu0
    %v2648 = vadd.f32 %v1580, %v2647
    %v2649 = vpop.f32.mrb[0].mxu0
    %v2650 = vadd.f32 %v1576, %v2649
    %v2651 = vpop.f32.mrb[0].mxu0
    %v2652 = vadd.f32 %v1580, %v2651
    %2653 = vmatprep.mubr.bf16.mxu0 %v1376
    %2654 = vmatmul.mubr.bf16.gmra.mrb[0].mxu0 %v1375
    %v2655 = vpop.f32.mrb[0].mxu0
    %v2656 = vadd.f32 %v1576, %v2655
    %v2657 = vpop.f32.mrb[0].mxu0
    %v2658 = vadd.f32 %v1580, %v2657
    %v2659 = vpop.f32.mrb[0].mxu0
    %v2660 = vadd.f32 %v1576, %v2659
    %v2661 = vpop.f32.mrb[0].mxu0
    %v2662 = vadd.f32 %v1580, %v2661
    %2663 = vmatprep.mubr.bf16.mxu0 %v1380
    %2664 = vmatmul.mubr.bf16.gmra.mrb[0].mxu0 %v1379
    %v2665 = vpop.f32.mrb[0].mxu0
    %v2666 = vadd.f32 %v1576, %v2665
    %v2667 = vpop.f32.mrb[0].mxu0
    %v2668 = vadd.f32 %v1580, %v2667
    %v2669 = vpop.f32.mrb[0].mxu0
    %v2670 = vadd.f32 %v1576, %v2669
    %v2671 = vpop.f32.mrb[0].mxu0
    %v2672 = vadd.f32 %v1580, %v2671
    %2673 = vmatprep.mubr.bf16.mxu0 %v1384
    %2674 = vmatmul.mubr.bf16.gmra.mrb[0].mxu0 %v1383
    %v2675 = vpop.f32.mrb[0].mxu0
    %v2676 = vadd.f32 %v1576, %v2675
    %v2677 = vpop.f32.mrb[0].mxu0
    %v2678 = vadd.f32 %v1580, %v2677
    %v2679 = vpop.f32.mrb[0].mxu0
    %v2680 = vadd.f32 %v1576, %v2679
    %v2681 = vpop.f32.mrb[0].mxu0
    %v2682 = vadd.f32 %v1580, %v2681
    %2683 = vmatprep.mubr.bf16.mxu0 %v1388
    %2684 = vmatmul.mubr.bf16.gmra.mrb[0].mxu0 %v1387
    %v2685 = vpop.f32.mrb[0].mxu0
    %v2686 = vadd.f32 %v1576, %v2685
    %v2687 = vpop.f32.mrb[0].mxu0
    %v2688 = vadd.f32 %v1580, %v2687
    %v2689 = vpop.f32.mrb[0].mxu0
    %v2690 = vadd.f32 %v1576, %v2689
    %v2691 = vpop.f32.mrb[0].mxu0
    %v2692 = vadd.f32 %v1580, %v2691
    %2693 = vmatprep.mubr.bf16.mxu0 %v1392
    %2694 = vmatmul.mubr.bf16.gmra.mrb[0].mxu0 %v1391
    %v2695 = vpop.f32.mrb[0].mxu0
    %v2696 = vadd.f32 %v1576, %v2695
    %v2697 = vpop.f32.mrb[0].mxu0
    %v2698 = vadd.f32 %v1580, %v2697
    %v2699 = vpop.f32.mrb[0].mxu0
    %v2700 = vadd.f32 %v1576, %v2699
    %v2701 = vpop.f32.mrb[0].mxu0
    %v2702 = vadd.f32 %v1580, %v2701
    %2703 = vmatprep.mubr.bf16.mxu0 %v1396
    %2704 = vmatmul.mubr.bf16.gmra.mrb[0].mxu0 %v1395
    %v2705 = vpop.f32.mrb[0].mxu0
    %v2706 = vadd.f32 %v1576, %v2705
    %v2707 = vpop.f32.mrb[0].mxu0
    %v2708 = vadd.f32 %v1580, %v2707
    %v2709 = vpop.f32.mrb[0].mxu0
    %v2710 = vadd.f32 %v1576, %v2709
    %v2711 = vpop.f32.mrb[0].mxu0
    %v2712 = vadd.f32 %v1580, %v2711
    %2713 = vmatprep.mubr.bf16.mxu0 %v1400
    %2714 = vmatmul.mubr.bf16.gmra.mrb[0].mxu0 %v1399
    %v2715 = vpop.f32.mrb[0].mxu0
    %v2716 = vadd.f32 %v1576, %v2715
    %v2717 = vpop.f32.mrb[0].mxu0
    %v2718 = vadd.f32 %v1580, %v2717
    %v2719 = vpop.f32.mrb[0].mxu0
    %v2720 = vadd.f32 %v1576, %v2719
    %v2721 = vpop.f32.mrb[0].mxu0
    %v2722 = vadd.f32 %v1580, %v2721
    %2723 = vmatprep.mubr.bf16.mxu0 %v1404
    %2724 = vmatmul.mubr.bf16.gmra.mrb[0].mxu0 %v1403
    %v2725 = vpop.f32.mrb[0].mxu0
    %v2726 = vadd.f32 %v1576, %v2725
    %v2727 = vpop.f32.mrb[0].mxu0
    %v2728 = vadd.f32 %v1580, %v2727
    %v2729 = vpop.f32.mrb[0].mxu0
    %v2730 = vadd.f32 %v1576, %v2729
    %v2731 = vpop.f32.mrb[0].mxu0
    %v2732 = vadd.f32 %v1580, %v2731
    %2733 = vmatprep.mubr.bf16.mxu0 %v1408
    %2734 = vmatmul.mubr.bf16.gmra.mrb[0].mxu0 %v1407
    %v2735 = vpop.f32.mrb[0].mxu0
    %v2736 = vadd.f32 %v1576, %v2735
    %v2737 = vpop.f32.mrb[0].mxu0
    %v2738 = vadd.f32 %v1580, %v2737
    %v2739 = vpop.f32.mrb[0].mxu0
    %v2740 = vadd.f32 %v1576, %v2739
    %v2741 = vpop.f32.mrb[0].mxu0
    %v2742 = vadd.f32 %v1580, %v2741
    %2743 = vmatprep.mubr.bf16.mxu0 %v1412
    %2744 = vmatmul.mubr.bf16.gmra.mrb[0].mxu0 %v1411
    %v2745 = vpop.f32.mrb[0].mxu0
    %v2746 = vadd.f32 %v1576, %v2745
    %v2747 = vpop.f32.mrb[0].mxu0
    %v2748 = vadd.f32 %v1580, %v2747
    %v2749 = vpop.f32.mrb[0].mxu0
    %v2750 = vadd.f32 %v1576, %v2749
    %v2751 = vpop.f32.mrb[0].mxu0
    %v2752 = vadd.f32 %v1580, %v2751
    %2753 = vmatprep.mubr.bf16.mxu0 %v1416
    %2754 = vmatmul.mubr.bf16.gmra.mrb[0].mxu0 %v1415
    %v2755 = vpop.f32.mrb[0].mxu0
    %v2756 = vadd.f32 %v1576, %v2755
    %v2757 = vpop.f32.mrb[0].mxu0
    %v2758 = vadd.f32 %v1580, %v2757
    %v2759 = vpop.f32.mrb[0].mxu0
    %v2760 = vadd.f32 %v1576, %v2759
    %v2761 = vpop.f32.mrb[0].mxu0
    %v2762 = vadd.f32 %v1580, %v2761
    %2763 = vmatprep.mubr.bf16.mxu0 %v1420
    %2764 = vmatmul.mubr.bf16.gmra.mrb[0].mxu0 %v1419
    %v2765 = vpop.f32.mrb[0].mxu0
    %v2766 = vadd.f32 %v1576, %v2765
    %v2767 = vpop.f32.mrb[0].mxu0
    %v2768 = vadd.f32 %v1580, %v2767
    %v2769 = vpop.f32.mrb[0].mxu0
    %v2770 = vadd.f32 %v1576, %v2769
    %v2771 = vpop.f32.mrb[0].mxu0
    %v2772 = vadd.f32 %v1580, %v2771
    %2773 = vmatprep.mubr.bf16.mxu0 %v1424
    %2774 = vmatmul.mubr.bf16.gmra.mrb[0].mxu0 %v1423
    %v2775 = vpop.f32.mrb[0].mxu0
    %v2776 = vadd.f32 %v1576, %v2775
    %v2777 = vpop.f32.mrb[0].mxu0
    %v2778 = vadd.f32 %v1580, %v2777
    %v2779 = vpop.f32.mrb[0].mxu0
    %v2780 = vadd.f32 %v1576, %v2779
    %v2781 = vpop.f32.mrb[0].mxu0
    %v2782 = vadd.f32 %v1580, %v2781
    %2783 = vmatprep.mubr.bf16.mxu0 %v1428
    %2784 = vmatmul.mubr.bf16.gmra.mrb[0].mxu0 %v1427
    %v2785 = vpop.f32.mrb[0].mxu0
    %v2786 = vadd.f32 %v1576, %v2785
    %v2787 = vpop.f32.mrb[0].mxu0
    %v2788 = vadd.f32 %v1580, %v2787
    %v2789 = vpop.f32.mrb[0].mxu0
    %v2790 = vadd.f32 %v1576, %v2789
    %v2791 = vpop.f32.mrb[0].mxu0
    %v2792 = vadd.f32 %v1580, %v2791
    %2793 = vmatprep.mubr.bf16.mxu0 %v1432
    %2794 = vmatmul.mubr.bf16.gmra.mrb[0].mxu0 %v1431
    %v2795 = vpop.f32.mrb[0].mxu0
    %v2796 = vadd.f32 %v1576, %v2795
    %v2797 = vpop.f32.mrb[0].mxu0
    %v2798 = vadd.f32 %v1580, %v2797
    %v2799 = vpop.f32.mrb[0].mxu0
    %v2800 = vadd.f32 %v1576, %v2799
    %v2801 = vpop.f32.mrb[0].mxu0
    %v2802 = vadd.f32 %v1580, %v2801
    %2803 = vdwg.mxu0
    %2804 = vmatprep.subr.bf16.mxu0 %v2036
    %2805 = vmatpush1.bf16.msra.mxu0 %v2035
    %2806 = vmatprep.subr.bf16.mxu0 %v2040
    %2807 = vmatpush1.bf16.msra.mxu0 %v2039
    %2808 = vmatprep.subr.bf16.mxu0 %v2044
    %2809 = vmatpush1.bf16.msra.mxu0 %v2043
    %2810 = vmatprep.subr.bf16.mxu0 %v2048
    %2811 = vmatpush1.bf16.msra.mxu0 %v2047
    %2812 = vmatprep.subr.bf16.mxu0 %v2052
    %2813 = vmatpush1.bf16.msra.mxu0 %v2051
    %2814 = vmatprep.subr.bf16.mxu0 %v2056
    %2815 = vmatpush1.bf16.msra.mxu0 %v2055
    %2816 = vmatprep.subr.bf16.mxu0 %v2060
    %2817 = vmatpush1.bf16.msra.mxu0 %v2059
    %2818 = vmatprep.subr.bf16.mxu0 %v2064
    %2819 = vmatpush1.bf16.msra.mxu0 %v2063
    %2820 = vmatprep.subr.bf16.mxu0 %v2068
    %2821 = vmatpush1.bf16.msra.mxu0 %v2067
    %2822 = vmatprep.subr.bf16.mxu0 %v2072
    %2823 = vmatpush1.bf16.msra.mxu0 %v2071
    %2824 = vmatprep.subr.bf16.mxu0 %v2076
    %2825 = vmatpush1.bf16.msra.mxu0 %v2075
    %2826 = vmatprep.subr.bf16.mxu0 %v2080
    %2827 = vmatpush1.bf16.msra.mxu0 %v2079
    %2828 = vmatprep.subr.bf16.mxu0 %v2084
    %2829 = vmatpush1.bf16.msra.mxu0 %v2083
    %2830 = vmatprep.subr.bf16.mxu0 %v2088
    %2831 = vmatpush1.bf16.msra.mxu0 %v2087
    %2832 = vmatprep.subr.bf16.mxu0 %v2092
    %2833 = vmatpush1.bf16.msra.mxu0 %v2091
    %2834 = vmatprep.subr.bf16.mxu0 %v2096
    %2835 = vmatpush1.bf16.msra.mxu0 %v2095
    %2836 = vmatprep.mubr.bf16.mxu0 %v1374
    %2837 = vmatmul.mubr.bf16.gmra.mrb[0].mxu0 %v1373
    %v2838 = vpop.f32.mrb[0].mxu0
    %v2839 = vadd.f32 %v2646, %v2838
    %v2840 = vpop.f32.mrb[0].mxu0
    %v2841 = vadd.f32 %v2648, %v2840
    %v2842 = vpop.f32.mrb[0].mxu0
    %v2843 = vadd.f32 %v2650, %v2842
    %v2844 = vpop.f32.mrb[0].mxu0
    %v2845 = vadd.f32 %v2652, %v2844
    %2846 = vmatprep.mubr.bf16.mxu0 %v1378
    %2847 = vmatmul.mubr.bf16.gmra.mrb[0].mxu0 %v1377
    %v2848 = vpop.f32.mrb[0].mxu0
    %v2849 = vadd.f32 %v2656, %v2848
    %v2850 = vpop.f32.mrb[0].mxu0
    %v2851 = vadd.f32 %v2658, %v2850
    %v2852 = vpop.f32.mrb[0].mxu0
    %v2853 = vadd.f32 %v2660, %v2852
    %v2854 = vpop.f32.mrb[0].mxu0
    %v2855 = vadd.f32 %v2662, %v2854
    %2856 = vmatprep.mubr.bf16.mxu0 %v1382
    %2857 = vmatmul.mubr.bf16.gmra.mrb[0].mxu0 %v1381
    %v2858 = vpop.f32.mrb[0].mxu0
    %v2859 = vadd.f32 %v2666, %v2858
    %v2860 = vpop.f32.mrb[0].mxu0
    %v2861 = vadd.f32 %v2668, %v2860
    %v2862 = vpop.f32.mrb[0].mxu0
    %v2863 = vadd.f32 %v2670, %v2862
    %v2864 = vpop.f32.mrb[0].mxu0
    %v2865 = vadd.f32 %v2672, %v2864
    %2866 = vmatprep.mubr.bf16.mxu0 %v1386
    %2867 = vmatmul.mubr.bf16.gmra.mrb[0].mxu0 %v1385
    %v2868 = vpop.f32.mrb[0].mxu0
    %v2869 = vadd.f32 %v2676, %v2868
    %v2870 = vpop.f32.mrb[0].mxu0
    %v2871 = vadd.f32 %v2678, %v2870
    %v2872 = vpop.f32.mrb[0].mxu0
    %v2873 = vadd.f32 %v2680, %v2872
    %v2874 = vpop.f32.mrb[0].mxu0
    %v2875 = vadd.f32 %v2682, %v2874
    %2876 = vmatprep.mubr.bf16.mxu0 %v1390
    %2877 = vmatmul.mubr.bf16.gmra.mrb[0].mxu0 %v1389
    %v2878 = vpop.f32.mrb[0].mxu0
    %v2879 = vadd.f32 %v2686, %v2878
    %v2880 = vpop.f32.mrb[0].mxu0
    %v2881 = vadd.f32 %v2688, %v2880
    %v2882 = vpop.f32.mrb[0].mxu0
    %v2883 = vadd.f32 %v2690, %v2882
    %v2884 = vpop.f32.mrb[0].mxu0
    %v2885 = vadd.f32 %v2692, %v2884
    %2886 = vmatprep.mubr.bf16.mxu0 %v1394
    %2887 = vmatmul.mubr.bf16.gmra.mrb[0].mxu0 %v1393
    %v2888 = vpop.f32.mrb[0].mxu0
    %v2889 = vadd.f32 %v2696, %v2888
    %v2890 = vpop.f32.mrb[0].mxu0
    %v2891 = vadd.f32 %v2698, %v2890
    %v2892 = vpop.f32.mrb[0].mxu0
    %v2893 = vadd.f32 %v2700, %v2892
    %v2894 = vpop.f32.mrb[0].mxu0
    %v2895 = vadd.f32 %v2702, %v2894
    %2896 = vmatprep.mubr.bf16.mxu0 %v1398
    %2897 = vmatmul.mubr.bf16.gmra.mrb[0].mxu0 %v1397
    %v2898 = vpop.f32.mrb[0].mxu0
    %v2899 = vadd.f32 %v2706, %v2898
    %v2900 = vpop.f32.mrb[0].mxu0
    %v2901 = vadd.f32 %v2708, %v2900
    %v2902 = vpop.f32.mrb[0].mxu0
    %v2903 = vadd.f32 %v2710, %v2902
    %v2904 = vpop.f32.mrb[0].mxu0
    %v2905 = vadd.f32 %v2712, %v2904
    %2906 = vmatprep.mubr.bf16.mxu0 %v1402
    %2907 = vmatmul.mubr.bf16.gmra.mrb[0].mxu0 %v1401
    %v2908 = vpop.f32.mrb[0].mxu0
    %v2909 = vadd.f32 %v2716, %v2908
    %v2910 = vpop.f32.mrb[0].mxu0
    %v2911 = vadd.f32 %v2718, %v2910
    %v2912 = vpop.f32.mrb[0].mxu0
    %v2913 = vadd.f32 %v2720, %v2912
    %v2914 = vpop.f32.mrb[0].mxu0
    %v2915 = vadd.f32 %v2722, %v2914
    %2916 = vmatprep.mubr.bf16.mxu0 %v1406
    %2917 = vmatmul.mubr.bf16.gmra.mrb[0].mxu0 %v1405
    %v2918 = vpop.f32.mrb[0].mxu0
    %v2919 = vadd.f32 %v2726, %v2918
    %v2920 = vpop.f32.mrb[0].mxu0
    %v2921 = vadd.f32 %v2728, %v2920
    %v2922 = vpop.f32.mrb[0].mxu0
    %v2923 = vadd.f32 %v2730, %v2922
    %v2924 = vpop.f32.mrb[0].mxu0
    %v2925 = vadd.f32 %v2732, %v2924
    %2926 = vmatprep.mubr.bf16.mxu0 %v1410
    %2927 = vmatmul.mubr.bf16.gmra.mrb[0].mxu0 %v1409
    %v2928 = vpop.f32.mrb[0].mxu0
    %v2929 = vadd.f32 %v2736, %v2928
    %v2930 = vpop.f32.mrb[0].mxu0
    %v2931 = vadd.f32 %v2738, %v2930
    %v2932 = vpop.f32.mrb[0].mxu0
    %v2933 = vadd.f32 %v2740, %v2932
    %v2934 = vpop.f32.mrb[0].mxu0
    %v2935 = vadd.f32 %v2742, %v2934
    %2936 = vmatprep.mubr.bf16.mxu0 %v1414
    %2937 = vmatmul.mubr.bf16.gmra.mrb[0].mxu0 %v1413
    %v2938 = vpop.f32.mrb[0].mxu0
    %v2939 = vadd.f32 %v2746, %v2938
    %v2940 = vpop.f32.mrb[0].mxu0
    %v2941 = vadd.f32 %v2748, %v2940
    %v2942 = vpop.f32.mrb[0].mxu0
    %v2943 = vadd.f32 %v2750, %v2942
    %v2944 = vpop.f32.mrb[0].mxu0
    %v2945 = vadd.f32 %v2752, %v2944
    %2946 = vmatprep.mubr.bf16.mxu0 %v1418
    %2947 = vmatmul.mubr.bf16.gmra.mrb[0].mxu0 %v1417
    %v2948 = vpop.f32.mrb[0].mxu0
    %v2949 = vadd.f32 %v2756, %v2948
    %v2950 = vpop.f32.mrb[0].mxu0
    %v2951 = vadd.f32 %v2758, %v2950
    %v2952 = vpop.f32.mrb[0].mxu0
    %v2953 = vadd.f32 %v2760, %v2952
    %v2954 = vpop.f32.mrb[0].mxu0
    %v2955 = vadd.f32 %v2762, %v2954
    %2956 = vmatprep.mubr.bf16.mxu0 %v1422
    %2957 = vmatmul.mubr.bf16.gmra.mrb[0].mxu0 %v1421
    %v2958 = vpop.f32.mrb[0].mxu0
    %v2959 = vadd.f32 %v2766, %v2958
    %v2960 = vpop.f32.mrb[0].mxu0
    %v2961 = vadd.f32 %v2768, %v2960
    %v2962 = vpop.f32.mrb[0].mxu0
    %v2963 = vadd.f32 %v2770, %v2962
    %v2964 = vpop.f32.mrb[0].mxu0
    %v2965 = vadd.f32 %v2772, %v2964
    %2966 = vmatprep.mubr.bf16.mxu0 %v1426
    %2967 = vmatmul.mubr.bf16.gmra.mrb[0].mxu0 %v1425
    %v2968 = vpop.f32.mrb[0].mxu0
    %v2969 = vadd.f32 %v2776, %v2968
    %v2970 = vpop.f32.mrb[0].mxu0
    %v2971 = vadd.f32 %v2778, %v2970
    %v2972 = vpop.f32.mrb[0].mxu0
    %v2973 = vadd.f32 %v2780, %v2972
    %v2974 = vpop.f32.mrb[0].mxu0
    %v2975 = vadd.f32 %v2782, %v2974
    %2976 = vmatprep.mubr.bf16.mxu0 %v1430
    %2977 = vmatmul.mubr.bf16.gmra.mrb[0].mxu0 %v1429
    %v2978 = vpop.f32.mrb[0].mxu0
    %v2979 = vadd.f32 %v2786, %v2978
    %v2980 = vpop.f32.mrb[0].mxu0
    %v2981 = vadd.f32 %v2788, %v2980
    %v2982 = vpop.f32.mrb[0].mxu0
    %v2983 = vadd.f32 %v2790, %v2982
    %v2984 = vpop.f32.mrb[0].mxu0
    %v2985 = vadd.f32 %v2792, %v2984
    %2986 = vmatprep.mubr.bf16.mxu0 %v1434
    %2987 = vmatmul.mubr.bf16.gmra.mrb[0].mxu0 %v1433
    %v2988 = vpop.f32.mrb[0].mxu0
    %v2989 = vadd.f32 %v2796, %v2988
    %v2990 = vpop.f32.mrb[0].mxu0
    %v2991 = vadd.f32 %v2798, %v2990
    %v2992 = vpop.f32.mrb[0].mxu0
    %v2993 = vadd.f32 %v2800, %v2992
    %v2994 = vpop.f32.mrb[0].mxu0
    %v2995 = vadd.f32 %v2802, %v2994
    %2996 = vdwg.mxu0
    %v2997 = vmul.f32 %v2453, 0.5
    %v2998 = vmul.f32 %v2455, 0.5
    %v2999 = vmul.f32 %v2839, 0.5
    %v3000 = vmul.f32 %v2841, 0.5
    %v3001 = vmul.f32 %v2457, 0.5
    %v3002 = vmul.f32 %v2459, 0.5
    %v3003 = vmul.f32 %v2843, 0.5
    %v3004 = vmul.f32 %v2845, 0.5
    %v3005 = vmul.f32 %v2463, 0.5
    %v3006 = vmul.f32 %v2465, 0.5
    %v3007 = vmul.f32 %v2849, 0.5
    %v3008 = vmul.f32 %v2851, 0.5
    %v3009 = vmul.f32 %v2467, 0.5
    %v3010 = vmul.f32 %v2469, 0.5
    %v3011 = vmul.f32 %v2853, 0.5
    %v3012 = vmul.f32 %v2855, 0.5
    %v3013 = vmul.f32 %v2473, 0.5
    %v3014 = vmul.f32 %v2475, 0.5
    %v3015 = vmul.f32 %v2859, 0.5
    %v3016 = vmul.f32 %v2861, 0.5
    %v3017 = vmul.f32 %v2477, 0.5
    %v3018 = vmul.f32 %v2479, 0.5
    %v3019 = vmul.f32 %v2863, 0.5
    %v3020 = vmul.f32 %v2865, 0.5
    %v3021 = vmul.f32 %v2483, 0.5
    %v3022 = vmul.f32 %v2485, 0.5
    %v3023 = vmul.f32 %v2869, 0.5
    %v3024 = vmul.f32 %v2871, 0.5
    %v3025 = vmul.f32 %v2487, 0.5
    %v3026 = vmul.f32 %v2489, 0.5
    %v3027 = vmul.f32 %v2873, 0.5
    %v3028 = vmul.f32 %v2875, 0.5
    %v3029 = vmul.f32 %v2493, 0.5
    %v3030 = vmul.f32 %v2495, 0.5
    %v3031 = vmul.f32 %v2879, 0.5
    %v3032 = vmul.f32 %v2881, 0.5
    %v3033 = vmul.f32 %v2497, 0.5
    %v3034 = vmul.f32 %v2499, 0.5
    %v3035 = vmul.f32 %v2883, 0.5
    %v3036 = vmul.f32 %v2885, 0.5
    %v3037 = vmul.f32 %v2503, 0.5
    %v3038 = vmul.f32 %v2505, 0.5
    %v3039 = vmul.f32 %v2889, 0.5
    %v3040 = vmul.f32 %v2891, 0.5
    %v3041 = vmul.f32 %v2507, 0.5
    %v3042 = vmul.f32 %v2509, 0.5
    %v3043 = vmul.f32 %v2893, 0.5
    %v3044 = vmul.f32 %v2895, 0.5
    %v3045 = vmul.f32 %v2513, 0.5
    %v3046 = vmul.f32 %v2515, 0.5
    %v3047 = vmul.f32 %v2899, 0.5
    %v3048 = vmul.f32 %v2901, 0.5
    %v3049 = vmul.f32 %v2517, 0.5
    %v3050 = vmul.f32 %v2519, 0.5
    %v3051 = vmul.f32 %v2903, 0.5
    %v3052 = vmul.f32 %v2905, 0.5
    %v3053 = vmul.f32 %v2523, 0.5
    %v3054 = vmul.f32 %v2525, 0.5
    %v3055 = vmul.f32 %v2909, 0.5
    %v3056 = vmul.f32 %v2911, 0.5
    %v3057 = vmul.f32 %v2527, 0.5
    %v3058 = vmul.f32 %v2529, 0.5
    %v3059 = vmul.f32 %v2913, 0.5
    %v3060 = vmul.f32 %v2915, 0.5
    %v3061 = vmul.f32 %v2533, 0.5
    %v3062 = vmul.f32 %v2535, 0.5
    %v3063 = vmul.f32 %v2919, 0.5
    %v3064 = vmul.f32 %v2921, 0.5
    %v3065 = vmul.f32 %v2537, 0.5
    %v3066 = vmul.f32 %v2539, 0.5
    %v3067 = vmul.f32 %v2923, 0.5
    %v3068 = vmul.f32 %v2925, 0.5
    %v3069 = vmul.f32 %v2543, 0.5
    %v3070 = vmul.f32 %v2545, 0.5
    %v3071 = vmul.f32 %v2929, 0.5
    %v3072 = vmul.f32 %v2931, 0.5
    %v3073 = vmul.f32 %v2547, 0.5
    %v3074 = vmul.f32 %v2549, 0.5
    %v3075 = vmul.f32 %v2933, 0.5
    %v3076 = vmul.f32 %v2935, 0.5
    %v3077 = vmul.f32 %v2553, 0.5
    %v3078 = vmul.f32 %v2555, 0.5
    %v3079 = vmul.f32 %v2939, 0.5
    %v3080 = vmul.f32 %v2941, 0.5
    %v3081 = vmul.f32 %v2557, 0.5
    %v3082 = vmul.f32 %v2559, 0.5
    %v3083 = vmul.f32 %v2943, 0.5
    %v3084 = vmul.f32 %v2945, 0.5
    %v3085 = vmul.f32 %v2563, 0.5
    %v3086 = vmul.f32 %v2565, 0.5
    %v3087 = vmul.f32 %v2949, 0.5
    %v3088 = vmul.f32 %v2951, 0.5
    %v3089 = vmul.f32 %v2567, 0.5
    %v3090 = vmul.f32 %v2569, 0.5
    %v3091 = vmul.f32 %v2953, 0.5
    %v3092 = vmul.f32 %v2955, 0.5
    %v3093 = vmul.f32 %v2573, 0.5
    %v3094 = vmul.f32 %v2575, 0.5
    %v3095 = vmul.f32 %v2959, 0.5
    %v3096 = vmul.f32 %v2961, 0.5
    %v3097 = vmul.f32 %v2577, 0.5
    %v3098 = vmul.f32 %v2579, 0.5
    %v3099 = vmul.f32 %v2963, 0.5
    %v3100 = vmul.f32 %v2965, 0.5
    %v3101 = vmul.f32 %v2583, 0.5
    %v3102 = vmul.f32 %v2585, 0.5
    %v3103 = vmul.f32 %v2969, 0.5
    %v3104 = vmul.f32 %v2971, 0.5
    %v3105 = vmul.f32 %v2587, 0.5
    %v3106 = vmul.f32 %v2589, 0.5
    %v3107 = vmul.f32 %v2973, 0.5
    %v3108 = vmul.f32 %v2975, 0.5
    %v3109 = vmul.f32 %v2593, 0.5
    %v3110 = vmul.f32 %v2595, 0.5
    %v3111 = vmul.f32 %v2979, 0.5
    %v3112 = vmul.f32 %v2981, 0.5
    %v3113 = vmul.f32 %v2597, 0.5
    %v3114 = vmul.f32 %v2599, 0.5
    %v3115 = vmul.f32 %v2983, 0.5
    %v3116 = vmul.f32 %v2985, 0.5
    %v3117 = vmul.f32 %v2603, 0.5
    %v3118 = vmul.f32 %v2605, 0.5
    %v3119 = vmul.f32 %v2989, 0.5
    %v3120 = vmul.f32 %v2991, 0.5
    %v3121 = vmul.f32 %v2607, 0.5
    %v3122 = vmul.f32 %v2609, 0.5
    %v3123 = vmul.f32 %v2993, 0.5
    %v3124 = vmul.f32 %v2995, 0.5
    %v3125 = vtanh.pop %v2997
    %v3126 = vtanh.pop %v2998
    %v3127 = vtanh.pop %v2999
    %v3128 = vtanh.pop %v3000
    %v3129 = vtanh.pop %v3001
    %v3130 = vtanh.pop %v3002
    %v3131 = vtanh.pop %v3003
    %v3132 = vtanh.pop %v3004
    %v3133 = vtanh.pop %v3005
    %v3134 = vtanh.pop %v3006
    %v3135 = vtanh.pop %v3007
    %v3136 = vtanh.pop %v3008
    %v3137 = vtanh.pop %v3009
    %v3138 = vtanh.pop %v3010
    %v3139 = vtanh.pop %v3011
    %v3140 = vtanh.pop %v3012
    %v3141 = vtanh.pop %v3013
    %v3142 = vtanh.pop %v3014
    %v3143 = vtanh.pop %v3015
    %v3144 = vtanh.pop %v3016
    %v3145 = vtanh.pop %v3017
    %v3146 = vtanh.pop %v3018
    %v3147 = vtanh.pop %v3019
    %v3148 = vtanh.pop %v3020
    %v3149 = vtanh.pop %v3021
    %v3150 = vtanh.pop %v3022
    %v3151 = vtanh.pop %v3023
    %v3152 = vtanh.pop %v3024
    %v3153 = vtanh.pop %v3025
    %v3154 = vtanh.pop %v3026
    %v3155 = vtanh.pop %v3027
    %v3156 = vtanh.pop %v3028
    %v3157 = vtanh.pop %v3029
    %v3158 = vtanh.pop %v3030
    %v3159 = vtanh.pop %v3031
    %v3160 = vtanh.pop %v3032
    %v3161 = vtanh.pop %v3033
    %v3162 = vtanh.pop %v3034
    %v3163 = vtanh.pop %v3035
    %v3164 = vtanh.pop %v3036
    %v3165 = vtanh.pop %v3037
    %v3166 = vtanh.pop %v3038
    %v3167 = vtanh.pop %v3039
    %v3168 = vtanh.pop %v3040
    %v3169 = vtanh.pop %v3041
    %v3170 = vtanh.pop %v3042
    %v3171 = vtanh.pop %v3043
    %v3172 = vtanh.pop %v3044
    %v3173 = vtanh.pop %v3045
    %v3174 = vtanh.pop %v3046
    %v3175 = vtanh.pop %v3047
    %v3176 = vtanh.pop %v3048
    %v3177 = vtanh.pop %v3049
    %v3178 = vtanh.pop %v3050
    %v3179 = vtanh.pop %v3051
    %v3180 = vtanh.pop %v3052
    %v3181 = vtanh.pop %v3053
    %v3182 = vtanh.pop %v3054
    %v3183 = vtanh.pop %v3055
    %v3184 = vtanh.pop %v3056
    %v3185 = vtanh.pop %v3057
    %v3186 = vtanh.pop %v3058
    %v3187 = vtanh.pop %v3059
    %v3188 = vtanh.pop %v3060
    %v3189 = vtanh.pop %v3061
    %v3190 = vtanh.pop %v3062
    %v3191 = vtanh.pop %v3063
    %v3192 = vtanh.pop %v3064
    %v3193 = vtanh.pop %v3065
    %v3194 = vtanh.pop %v3066
    %v3195 = vtanh.pop %v3067
    %v3196 = vtanh.pop %v3068
    %v3197 = vtanh.pop %v3069
    %v3198 = vtanh.pop %v3070
    %v3199 = vtanh.pop %v3071
    %v3200 = vtanh.pop %v3072
    %v3201 = vtanh.pop %v3073
    %v3202 = vtanh.pop %v3074
    %v3203 = vtanh.pop %v3075
    %v3204 = vtanh.pop %v3076
    %v3205 = vtanh.pop %v3077
    %v3206 = vtanh.pop %v3078
    %v3207 = vtanh.pop %v3079
    %v3208 = vtanh.pop %v3080
    %v3209 = vtanh.pop %v3081
    %v3210 = vtanh.pop %v3082
    %v3211 = vtanh.pop %v3083
    %v3212 = vtanh.pop %v3084
    %v3213 = vtanh.pop %v3085
    %v3214 = vtanh.pop %v3086
    %v3215 = vtanh.pop %v3087
    %v3216 = vtanh.pop %v3088
    %v3217 = vtanh.pop %v3089
    %v3218 = vtanh.pop %v3090
    %v3219 = vtanh.pop %v3091
    %v3220 = vtanh.pop %v3092
    %v3221 = vtanh.pop %v3093
    %v3222 = vtanh.pop %v3094
    %v3223 = vtanh.pop %v3095
    %v3224 = vtanh.pop %v3096
    %v3225 = vtanh.pop %v3097
    %v3226 = vtanh.pop %v3098
    %v3227 = vtanh.pop %v3099
    %v3228 = vtanh.pop %v3100
    %v3229 = vtanh.pop %v3101
    %v3230 = vtanh.pop %v3102
    %v3231 = vtanh.pop %v3103
    %v3232 = vtanh.pop %v3104
    %v3233 = vtanh.pop %v3105
    %v3234 = vtanh.pop %v3106
    %v3235 = vtanh.pop %v3107
    %v3236 = vtanh.pop %v3108
    %v3237 = vtanh.pop %v3109
    %v3238 = vtanh.pop %v3110
    %v3239 = vtanh.pop %v3111
    %v3240 = vtanh.pop %v3112
    %v3241 = vtanh.pop %v3113
    %v3242 = vtanh.pop %v3114
    %v3243 = vtanh.pop %v3115
    %v3244 = vtanh.pop %v3116
    %v3245 = vtanh.pop %v3117
    %v3246 = vtanh.pop %v3118
    %v3247 = vtanh.pop %v3119
    %v3248 = vtanh.pop %v3120
    %v3249 = vtanh.pop %v3121
    %v3250 = vtanh.pop %v3122
    %v3251 = vtanh.pop %v3123
    %v3252 = vtanh.pop %v3124
    %v3253 = vadd.f32 %v3125, 1.0
    %v3254 = vadd.f32 %v3126, 1.0
    %v3255 = vadd.f32 %v3127, 1.0
    %v3256 = vadd.f32 %v3128, 1.0
    %v3257 = vadd.f32 %v3129, 1.0
    %v3258 = vadd.f32 %v3130, 1.0
    %v3259 = vadd.f32 %v3131, 1.0
    %v3260 = vadd.f32 %v3132, 1.0
    %v3261 = vadd.f32 %v3133, 1.0
    %v3262 = vadd.f32 %v3134, 1.0
    %v3263 = vadd.f32 %v3135, 1.0
    %v3264 = vadd.f32 %v3136, 1.0
    %v3265 = vadd.f32 %v3137, 1.0
    %v3266 = vadd.f32 %v3138, 1.0
    %v3267 = vadd.f32 %v3139, 1.0
    %v3268 = vadd.f32 %v3140, 1.0
    %v3269 = vadd.f32 %v3141, 1.0
    %v3270 = vadd.f32 %v3142, 1.0
    %v3271 = vadd.f32 %v3143, 1.0
    %v3272 = vadd.f32 %v3144, 1.0
    %v3273 = vadd.f32 %v3145, 1.0
    %v3274 = vadd.f32 %v3146, 1.0
    %v3275 = vadd.f32 %v3147, 1.0
    %v3276 = vadd.f32 %v3148, 1.0
    %v3277 = vadd.f32 %v3149, 1.0
    %v3278 = vadd.f32 %v3150, 1.0
    %v3279 = vadd.f32 %v3151, 1.0
    %v3280 = vadd.f32 %v3152, 1.0
    %v3281 = vadd.f32 %v3153, 1.0
    %v3282 = vadd.f32 %v3154, 1.0
    %v3283 = vadd.f32 %v3155, 1.0
    %v3284 = vadd.f32 %v3156, 1.0
    %v3285 = vadd.f32 %v3157, 1.0
    %v3286 = vadd.f32 %v3158, 1.0
    %v3287 = vadd.f32 %v3159, 1.0
    %v3288 = vadd.f32 %v3160, 1.0
    %v3289 = vadd.f32 %v3161, 1.0
    %v3290 = vadd.f32 %v3162, 1.0
    %v3291 = vadd.f32 %v3163, 1.0
    %v3292 = vadd.f32 %v3164, 1.0
    %v3293 = vadd.f32 %v3165, 1.0
    %v3294 = vadd.f32 %v3166, 1.0
    %v3295 = vadd.f32 %v3167, 1.0
    %v3296 = vadd.f32 %v3168, 1.0
    %v3297 = vadd.f32 %v3169, 1.0
    %v3298 = vadd.f32 %v3170, 1.0
    %v3299 = vadd.f32 %v3171, 1.0
    %v3300 = vadd.f32 %v3172, 1.0
    %v3301 = vadd.f32 %v3173, 1.0
    %v3302 = vadd.f32 %v3174, 1.0
    %v3303 = vadd.f32 %v3175, 1.0
    %v3304 = vadd.f32 %v3176, 1.0
    %v3305 = vadd.f32 %v3177, 1.0
    %v3306 = vadd.f32 %v3178, 1.0
    %v3307 = vadd.f32 %v3179, 1.0
    %v3308 = vadd.f32 %v3180, 1.0
    %v3309 = vadd.f32 %v3181, 1.0
    %v3310 = vadd.f32 %v3182, 1.0
    %v3311 = vadd.f32 %v3183, 1.0
    %v3312 = vadd.f32 %v3184, 1.0
    %v3313 = vadd.f32 %v3185, 1.0
    %v3314 = vadd.f32 %v3186, 1.0
    %v3315 = vadd.f32 %v3187, 1.0
    %v3316 = vadd.f32 %v3188, 1.0
    %v3317 = vadd.f32 %v3189, 1.0
    %v3318 = vadd.f32 %v3190, 1.0
    %v3319 = vadd.f32 %v3191, 1.0
    %v3320 = vadd.f32 %v3192, 1.0
    %v3321 = vadd.f32 %v3193, 1.0
    %v3322 = vadd.f32 %v3194, 1.0
    %v3323 = vadd.f32 %v3195, 1.0
    %v3324 = vadd.f32 %v3196, 1.0
    %v3325 = vadd.f32 %v3197, 1.0
    %v3326 = vadd.f32 %v3198, 1.0
    %v3327 = vadd.f32 %v3199, 1.0
    %v3328 = vadd.f32 %v3200, 1.0
    %v3329 = vadd.f32 %v3201, 1.0
    %v3330 = vadd.f32 %v3202, 1.0
    %v3331 = vadd.f32 %v3203, 1.0
    %v3332 = vadd.f32 %v3204, 1.0
    %v3333 = vadd.f32 %v3205, 1.0
    %v3334 = vadd.f32 %v3206, 1.0
    %v3335 = vadd.f32 %v3207, 1.0
    %v3336 = vadd.f32 %v3208, 1.0
    %v3337 = vadd.f32 %v3209, 1.0
    %v3338 = vadd.f32 %v3210, 1.0
    %v3339 = vadd.f32 %v3211, 1.0
    %v3340 = vadd.f32 %v3212, 1.0
    %v3341 = vadd.f32 %v3213, 1.0
    %v3342 = vadd.f32 %v3214, 1.0
    %v3343 = vadd.f32 %v3215, 1.0
    %v3344 = vadd.f32 %v3216, 1.0
    %v3345 = vadd.f32 %v3217, 1.0
    %v3346 = vadd.f32 %v3218, 1.0
    %v3347 = vadd.f32 %v3219, 1.0
    %v3348 = vadd.f32 %v3220, 1.0
    %v3349 = vadd.f32 %v3221, 1.0
    %v3350 = vadd.f32 %v3222, 1.0
    %v3351 = vadd.f32 %v3223, 1.0
    %v3352 = vadd.f32 %v3224, 1.0
    %v3353 = vadd.f32 %v3225, 1.0
    %v3354 = vadd.f32 %v3226, 1.0
    %v3355 = vadd.f32 %v3227, 1.0
    %v3356 = vadd.f32 %v3228, 1.0
    %v3357 = vadd.f32 %v3229, 1.0
    %v3358 = vadd.f32 %v3230, 1.0
    %v3359 = vadd.f32 %v3231, 1.0
    %v3360 = vadd.f32 %v3232, 1.0
    %v3361 = vadd.f32 %v3233, 1.0
    %v3362 = vadd.f32 %v3234, 1.0
    %v3363 = vadd.f32 %v3235, 1.0
    %v3364 = vadd.f32 %v3236, 1.0
    %v3365 = vadd.f32 %v3237, 1.0
    %v3366 = vadd.f32 %v3238, 1.0
    %v3367 = vadd.f32 %v3239, 1.0
    %v3368 = vadd.f32 %v3240, 1.0
    %v3369 = vadd.f32 %v3241, 1.0
    %v3370 = vadd.f32 %v3242, 1.0
    %v3371 = vadd.f32 %v3243, 1.0
    %v3372 = vadd.f32 %v3244, 1.0
    %v3373 = vadd.f32 %v3245, 1.0
    %v3374 = vadd.f32 %v3246, 1.0
    %v3375 = vadd.f32 %v3247, 1.0
    %v3376 = vadd.f32 %v3248, 1.0
    %v3377 = vadd.f32 %v3249, 1.0
    %v3378 = vadd.f32 %v3250, 1.0
    %v3379 = vadd.f32 %v3251, 1.0
    %v3380 = vadd.f32 %v3252, 1.0
    %v3381 = vmul.f32 %v3253, 0.5
    %v3382 = vmul.f32 %v3254, 0.5
    %v3383 = vmul.f32 %v3255, 0.5
    %v3384 = vmul.f32 %v3256, 0.5
    %v3385 = vmul.f32 %v3257, 0.5
    %v3386 = vmul.f32 %v3258, 0.5
    %v3387 = vmul.f32 %v3259, 0.5
    %v3388 = vmul.f32 %v3260, 0.5
    %v3389 = vmul.f32 %v3261, 0.5
    %v3390 = vmul.f32 %v3262, 0.5
    %v3391 = vmul.f32 %v3263, 0.5
    %v3392 = vmul.f32 %v3264, 0.5
    %v3393 = vmul.f32 %v3265, 0.5
    %v3394 = vmul.f32 %v3266, 0.5
    %v3395 = vmul.f32 %v3267, 0.5
    %v3396 = vmul.f32 %v3268, 0.5
    %v3397 = vmul.f32 %v3269, 0.5
    %v3398 = vmul.f32 %v3270, 0.5
    %v3399 = vmul.f32 %v3271, 0.5
    %v3400 = vmul.f32 %v3272, 0.5
    %v3401 = vmul.f32 %v3273, 0.5
    %v3402 = vmul.f32 %v3274, 0.5
    %v3403 = vmul.f32 %v3275, 0.5
    %v3404 = vmul.f32 %v3276, 0.5
    %v3405 = vmul.f32 %v3277, 0.5
    %v3406 = vmul.f32 %v3278, 0.5
    %v3407 = vmul.f32 %v3279, 0.5
    %v3408 = vmul.f32 %v3280, 0.5
    %v3409 = vmul.f32 %v3281, 0.5
    %v3410 = vmul.f32 %v3282, 0.5
    %v3411 = vmul.f32 %v3283, 0.5
    %v3412 = vmul.f32 %v3284, 0.5
    %v3413 = vmul.f32 %v3285, 0.5
    %v3414 = vmul.f32 %v3286, 0.5
    %v3415 = vmul.f32 %v3287, 0.5
    %v3416 = vmul.f32 %v3288, 0.5
    %v3417 = vmul.f32 %v3289, 0.5
    %v3418 = vmul.f32 %v3290, 0.5
    %v3419 = vmul.f32 %v3291, 0.5
    %v3420 = vmul.f32 %v3292, 0.5
    %v3421 = vmul.f32 %v3293, 0.5
    %v3422 = vmul.f32 %v3294, 0.5
    %v3423 = vmul.f32 %v3295, 0.5
    %v3424 = vmul.f32 %v3296, 0.5
    %v3425 = vmul.f32 %v3297, 0.5
    %v3426 = vmul.f32 %v3298, 0.5
    %v3427 = vmul.f32 %v3299, 0.5
    %v3428 = vmul.f32 %v3300, 0.5
    %v3429 = vmul.f32 %v3301, 0.5
    %v3430 = vmul.f32 %v3302, 0.5
    %v3431 = vmul.f32 %v3303, 0.5
    %v3432 = vmul.f32 %v3304, 0.5
    %v3433 = vmul.f32 %v3305, 0.5
    %v3434 = vmul.f32 %v3306, 0.5
    %v3435 = vmul.f32 %v3307, 0.5
    %v3436 = vmul.f32 %v3308, 0.5
    %v3437 = vmul.f32 %v3309, 0.5
    %v3438 = vmul.f32 %v3310, 0.5
    %v3439 = vmul.f32 %v3311, 0.5
    %v3440 = vmul.f32 %v3312, 0.5
    %v3441 = vmul.f32 %v3313, 0.5
    %v3442 = vmul.f32 %v3314, 0.5
    %v3443 = vmul.f32 %v3315, 0.5
    %v3444 = vmul.f32 %v3316, 0.5
    %v3445 = vmul.f32 %v3317, 0.5
    %v3446 = vmul.f32 %v3318, 0.5
    %v3447 = vmul.f32 %v3319, 0.5
    %v3448 = vmul.f32 %v3320, 0.5
    %v3449 = vmul.f32 %v3321, 0.5
    %v3450 = vmul.f32 %v3322, 0.5
    %v3451 = vmul.f32 %v3323, 0.5
    %v3452 = vmul.f32 %v3324, 0.5
    %v3453 = vmul.f32 %v3325, 0.5
    %v3454 = vmul.f32 %v3326, 0.5
    %v3455 = vmul.f32 %v3327, 0.5
    %v3456 = vmul.f32 %v3328, 0.5
    %v3457 = vmul.f32 %v3329, 0.5
    %v3458 = vmul.f32 %v3330, 0.5
    %v3459 = vmul.f32 %v3331, 0.5
    %v3460 = vmul.f32 %v3332, 0.5
    %v3461 = vmul.f32 %v3333, 0.5
    %v3462 = vmul.f32 %v3334, 0.5
    %v3463 = vmul.f32 %v3335, 0.5
    %v3464 = vmul.f32 %v3336, 0.5
    %v3465 = vmul.f32 %v3337, 0.5
    %v3466 = vmul.f32 %v3338, 0.5
    %v3467 = vmul.f32 %v3339, 0.5
    %v3468 = vmul.f32 %v3340, 0.5
    %v3469 = vmul.f32 %v3341, 0.5
    %v3470 = vmul.f32 %v3342, 0.5
    %v3471 = vmul.f32 %v3343, 0.5
    %v3472 = vmul.f32 %v3344, 0.5
    %v3473 = vmul.f32 %v3345, 0.5
    %v3474 = vmul.f32 %v3346, 0.5
    %v3475 = vmul.f32 %v3347, 0.5
    %v3476 = vmul.f32 %v3348, 0.5
    %v3477 = vmul.f32 %v3349, 0.5
    %v3478 = vmul.f32 %v3350, 0.5
    %v3479 = vmul.f32 %v3351, 0.5
    %v3480 = vmul.f32 %v3352, 0.5
    %v3481 = vmul.f32 %v3353, 0.5
    %v3482 = vmul.f32 %v3354, 0.5
    %v3483 = vmul.f32 %v3355, 0.5
    %v3484 = vmul.f32 %v3356, 0.5
    %v3485 = vmul.f32 %v3357, 0.5
    %v3486 = vmul.f32 %v3358, 0.5
    %v3487 = vmul.f32 %v3359, 0.5
    %v3488 = vmul.f32 %v3360, 0.5
    %v3489 = vmul.f32 %v3361, 0.5
    %v3490 = vmul.f32 %v3362, 0.5
    %v3491 = vmul.f32 %v3363, 0.5
    %v3492 = vmul.f32 %v3364, 0.5
    %v3493 = vmul.f32 %v3365, 0.5
    %v3494 = vmul.f32 %v3366, 0.5
    %v3495 = vmul.f32 %v3367, 0.5
    %v3496 = vmul.f32 %v3368, 0.5
    %v3497 = vmul.f32 %v3369, 0.5
    %v3498 = vmul.f32 %v3370, 0.5
    %v3499 = vmul.f32 %v3371, 0.5
    %v3500 = vmul.f32 %v3372, 0.5
    %v3501 = vmul.f32 %v3373, 0.5
    %v3502 = vmul.f32 %v3374, 0.5
    %v3503 = vmul.f32 %v3375, 0.5
    %v3504 = vmul.f32 %v3376, 0.5
    %v3505 = vmul.f32 %v3377, 0.5
    %v3506 = vmul.f32 %v3378, 0.5
    %v3507 = vmul.f32 %v3379, 0.5
    %v3508 = vmul.f32 %v3380, 0.5
    %v3509 = vmul.f32 %v2453, %v3381
    %v3510 = vmul.f32 %v2455, %v3382
    %v3511 = vmul.f32 %v2839, %v3383
    %v3512 = vmul.f32 %v2841, %v3384
    %v3513 = vmul.f32 %v2457, %v3385
    %v3514 = vmul.f32 %v2459, %v3386
    %v3515 = vmul.f32 %v2843, %v3387
    %v3516 = vmul.f32 %v2845, %v3388
    %v3517 = vmul.f32 %v2463, %v3389
    %v3518 = vmul.f32 %v2465, %v3390
    %v3519 = vmul.f32 %v2849, %v3391
    %v3520 = vmul.f32 %v2851, %v3392
    %v3521 = vmul.f32 %v2467, %v3393
    %v3522 = vmul.f32 %v2469, %v3394
    %v3523 = vmul.f32 %v2853, %v3395
    %v3524 = vmul.f32 %v2855, %v3396
    %v3525 = vmul.f32 %v2473, %v3397
    %v3526 = vmul.f32 %v2475, %v3398
    %v3527 = vmul.f32 %v2859, %v3399
    %v3528 = vmul.f32 %v2861, %v3400
    %v3529 = vmul.f32 %v2477, %v3401
    %v3530 = vmul.f32 %v2479, %v3402
    %v3531 = vmul.f32 %v2863, %v3403
    %v3532 = vmul.f32 %v2865, %v3404
    %v3533 = vmul.f32 %v2483, %v3405
    %v3534 = vmul.f32 %v2485, %v3406
    %v3535 = vmul.f32 %v2869, %v3407
    %v3536 = vmul.f32 %v2871, %v3408
    %v3537 = vmul.f32 %v2487, %v3409
    %v3538 = vmul.f32 %v2489, %v3410
    %v3539 = vmul.f32 %v2873, %v3411
    %v3540 = vmul.f32 %v2875, %v3412
    %v3541 = vmul.f32 %v2493, %v3413
    %v3542 = vmul.f32 %v2495, %v3414
    %v3543 = vmul.f32 %v2879, %v3415
    %v3544 = vmul.f32 %v2881, %v3416
    %v3545 = vmul.f32 %v2497, %v3417
    %v3546 = vmul.f32 %v2499, %v3418
    %v3547 = vmul.f32 %v2883, %v3419
    %v3548 = vmul.f32 %v2885, %v3420
    %v3549 = vmul.f32 %v2503, %v3421
    %v3550 = vmul.f32 %v2505, %v3422
    %v3551 = vmul.f32 %v2889, %v3423
    %v3552 = vmul.f32 %v2891, %v3424
    %v3553 = vmul.f32 %v2507, %v3425
    %v3554 = vmul.f32 %v2509, %v3426
    %v3555 = vmul.f32 %v2893, %v3427
    %v3556 = vmul.f32 %v2895, %v3428
    %v3557 = vmul.f32 %v2513, %v3429
    %v3558 = vmul.f32 %v2515, %v3430
    %v3559 = vmul.f32 %v2899, %v3431
    %v3560 = vmul.f32 %v2901, %v3432
    %v3561 = vmul.f32 %v2517, %v3433
    %v3562 = vmul.f32 %v2519, %v3434
    %v3563 = vmul.f32 %v2903, %v3435
    %v3564 = vmul.f32 %v2905, %v3436
    %v3565 = vmul.f32 %v2523, %v3437
    %v3566 = vmul.f32 %v2525, %v3438
    %v3567 = vmul.f32 %v2909, %v3439
    %v3568 = vmul.f32 %v2911, %v3440
    %v3569 = vmul.f32 %v2527, %v3441
    %v3570 = vmul.f32 %v2529, %v3442
    %v3571 = vmul.f32 %v2913, %v3443
    %v3572 = vmul.f32 %v2915, %v3444
    %v3573 = vmul.f32 %v2533, %v3445
    %v3574 = vmul.f32 %v2535, %v3446
    %v3575 = vmul.f32 %v2919, %v3447
    %v3576 = vmul.f32 %v2921, %v3448
    %v3577 = vmul.f32 %v2537, %v3449
    %v3578 = vmul.f32 %v2539, %v3450
    %v3579 = vmul.f32 %v2923, %v3451
    %v3580 = vmul.f32 %v2925, %v3452
    %v3581 = vmul.f32 %v2543, %v3453
    %v3582 = vmul.f32 %v2545, %v3454
    %v3583 = vmul.f32 %v2929, %v3455
    %v3584 = vmul.f32 %v2931, %v3456
    %v3585 = vmul.f32 %v2547, %v3457
    %v3586 = vmul.f32 %v2549, %v3458
    %v3587 = vmul.f32 %v2933, %v3459
    %v3588 = vmul.f32 %v2935, %v3460
    %v3589 = vmul.f32 %v2553, %v3461
    %v3590 = vmul.f32 %v2555, %v3462
    %v3591 = vmul.f32 %v2939, %v3463
    %v3592 = vmul.f32 %v2941, %v3464
    %v3593 = vmul.f32 %v2557, %v3465
    %v3594 = vmul.f32 %v2559, %v3466
    %v3595 = vmul.f32 %v2943, %v3467
    %v3596 = vmul.f32 %v2945, %v3468
    %v3597 = vmul.f32 %v2563, %v3469
    %v3598 = vmul.f32 %v2565, %v3470
    %v3599 = vmul.f32 %v2949, %v3471
    %v3600 = vmul.f32 %v2951, %v3472
    %v3601 = vmul.f32 %v2567, %v3473
    %v3602 = vmul.f32 %v2569, %v3474
    %v3603 = vmul.f32 %v2953, %v3475
    %v3604 = vmul.f32 %v2955, %v3476
    %v3605 = vmul.f32 %v2573, %v3477
    %v3606 = vmul.f32 %v2575, %v3478
    %v3607 = vmul.f32 %v2959, %v3479
    %v3608 = vmul.f32 %v2961, %v3480
    %v3609 = vmul.f32 %v2577, %v3481
    %v3610 = vmul.f32 %v2579, %v3482
    %v3611 = vmul.f32 %v2963, %v3483
    %v3612 = vmul.f32 %v2965, %v3484
    %v3613 = vmul.f32 %v2583, %v3485
    %v3614 = vmul.f32 %v2585, %v3486
    %v3615 = vmul.f32 %v2969, %v3487
    %v3616 = vmul.f32 %v2971, %v3488
    %v3617 = vmul.f32 %v2587, %v3489
    %v3618 = vmul.f32 %v2589, %v3490
    %v3619 = vmul.f32 %v2973, %v3491
    %v3620 = vmul.f32 %v2975, %v3492
    %v3621 = vmul.f32 %v2593, %v3493
    %v3622 = vmul.f32 %v2595, %v3494
    %v3623 = vmul.f32 %v2979, %v3495
    %v3624 = vmul.f32 %v2981, %v3496
    %v3625 = vmul.f32 %v2597, %v3497
    %v3626 = vmul.f32 %v2599, %v3498
    %v3627 = vmul.f32 %v2983, %v3499
    %v3628 = vmul.f32 %v2985, %v3500
    %v3629 = vmul.f32 %v2603, %v3501
    %v3630 = vmul.f32 %v2605, %v3502
    %v3631 = vmul.f32 %v2989, %v3503
    %v3632 = vmul.f32 %v2991, %v3504
    %v3633 = vmul.f32 %v2607, %v3505
    %v3634 = vmul.f32 %v2609, %v3506
    %v3635 = vmul.f32 %v2993, %v3507
    %v3636 = vmul.f32 %v2995, %v3508
    %v3637 = vpack.c.bf16 %v3513, %v3509
    %v3638 = vpack.c.bf16 %v3514, %v3510
    %v3639 = vpack.c.bf16 %v3515, %v3511
    %v3640 = vpack.c.bf16 %v3516, %v3512
    %v3641 = vpack.c.bf16 %v3521, %v3517
    %v3642 = vpack.c.bf16 %v3522, %v3518
    %v3643 = vpack.c.bf16 %v3523, %v3519
    %v3644 = vpack.c.bf16 %v3524, %v3520
    %v3645 = vpack.c.bf16 %v3529, %v3525
    %v3646 = vpack.c.bf16 %v3530, %v3526
    %v3647 = vpack.c.bf16 %v3531, %v3527
    %v3648 = vpack.c.bf16 %v3532, %v3528
    %v3649 = vpack.c.bf16 %v3537, %v3533
    %v3650 = vpack.c.bf16 %v3538, %v3534
    %v3651 = vpack.c.bf16 %v3539, %v3535
    %v3652 = vpack.c.bf16 %v3540, %v3536
    %v3653 = vpack.c.bf16 %v3545, %v3541
    %v3654 = vpack.c.bf16 %v3546, %v3542
    %v3655 = vpack.c.bf16 %v3547, %v3543
    %v3656 = vpack.c.bf16 %v3548, %v3544
    %v3657 = vpack.c.bf16 %v3553, %v3549
    %v3658 = vpack.c.bf16 %v3554, %v3550
    %v3659 = vpack.c.bf16 %v3555, %v3551
    %v3660 = vpack.c.bf16 %v3556, %v3552
    %v3661 = vpack.c.bf16 %v3561, %v3557
    %v3662 = vpack.c.bf16 %v3562, %v3558
    %v3663 = vpack.c.bf16 %v3563, %v3559
    %v3664 = vpack.c.bf16 %v3564, %v3560
    %v3665 = vpack.c.bf16 %v3569, %v3565
    %v3666 = vpack.c.bf16 %v3570, %v3566
    %v3667 = vpack.c.bf16 %v3571, %v3567
    %v3668 = vpack.c.bf16 %v3572, %v3568
    %v3669 = vpack.c.bf16 %v3577, %v3573
    %v3670 = vpack.c.bf16 %v3578, %v3574
    %v3671 = vpack.c.bf16 %v3579, %v3575
    %v3672 = vpack.c.bf16 %v3580, %v3576
    %v3673 = vpack.c.bf16 %v3585, %v3581
    %v3674 = vpack.c.bf16 %v3586, %v3582
    %v3675 = vpack.c.bf16 %v3587, %v3583
    %v3676 = vpack.c.bf16 %v3588, %v3584
    %v3677 = vpack.c.bf16 %v3593, %v3589
    %v3678 = vpack.c.bf16 %v3594, %v3590
    %v3679 = vpack.c.bf16 %v3595, %v3591
    %v3680 = vpack.c.bf16 %v3596, %v3592
    %v3681 = vpack.c.bf16 %v3601, %v3597
    %v3682 = vpack.c.bf16 %v3602, %v3598
    %v3683 = vpack.c.bf16 %v3603, %v3599
    %v3684 = vpack.c.bf16 %v3604, %v3600
    %v3685 = vpack.c.bf16 %v3609, %v3605
    %v3686 = vpack.c.bf16 %v3610, %v3606
    %v3687 = vpack.c.bf16 %v3611, %v3607
    %v3688 = vpack.c.bf16 %v3612, %v3608
    %v3689 = vpack.c.bf16 %v3617, %v3613
    %v3690 = vpack.c.bf16 %v3618, %v3614
    %v3691 = vpack.c.bf16 %v3619, %v3615
    %v3692 = vpack.c.bf16 %v3620, %v3616
    %v3693 = vpack.c.bf16 %v3625, %v3621
    %v3694 = vpack.c.bf16 %v3626, %v3622
    %v3695 = vpack.c.bf16 %v3627, %v3623
    %v3696 = vpack.c.bf16 %v3628, %v3624
    %v3697 = vpack.c.bf16 %v3633, %v3629
    %v3698 = vpack.c.bf16 %v3634, %v3630
    %v3699 = vpack.c.bf16 %v3635, %v3631
    %v3700 = vpack.c.bf16 %v3636, %v3632
    %v3701 = vld [vmem:[#allocation8] sm:$0xf]
    %v3702 = vld [vmem:[#allocation8 + $0x4] sm:$0xf]
    %v3703 = vld [vmem:[#allocation8 + $0x8] sm:$0xf]
    %v3704 = vld [vmem:[#allocation8 + $0xc] sm:$0xf]
    %v3705 = vld [vmem:[#allocation8 + $0x10] sm:$0xf]
    %v3706 = vld [vmem:[#allocation8 + $0x14] sm:$0xf]
    %v3707 = vld [vmem:[#allocation8 + $0x18] sm:$0xf]
    %v3708 = vld [vmem:[#allocation8 + $0x1c] sm:$0xf]
    %v3709 = vld [vmem:[#allocation8 + $0x20] sm:$0xf]
    %v3710 = vld [vmem:[#allocation8 + $0x24] sm:$0xf]
    %v3711 = vld [vmem:[#allocation8 + $0x28] sm:$0xf]
    %v3712 = vld [vmem:[#allocation8 + $0x2c] sm:$0xf]
    %v3713 = vld [vmem:[#allocation8 + $0x30] sm:$0xf]
    %v3714 = vld [vmem:[#allocation8 + $0x34] sm:$0xf]
    %v3715 = vld [vmem:[#allocation8 + $0x38] sm:$0xf]
    %v3716 = vld [vmem:[#allocation8 + $0x3c] sm:$0xf]
    %v3717 = vld [vmem:[#allocation8 + $0x40] sm:$0xf]
    %v3718 = vld [vmem:[#allocation8 + $0x44] sm:$0xf]
    %v3719 = vld [vmem:[#allocation8 + $0x48] sm:$0xf]
    %v3720 = vld [vmem:[#allocation8 + $0x4c] sm:$0xf]
    %v3721 = vld [vmem:[#allocation8 + $0x50] sm:$0xf]
    %v3722 = vld [vmem:[#allocation8 + $0x54] sm:$0xf]
    %v3723 = vld [vmem:[#allocation8 + $0x58] sm:$0xf]
    %v3724 = vld [vmem:[#allocation8 + $0x5c] sm:$0xf]
    %v3725 = vld [vmem:[#allocation8 + $0x60] sm:$0xf]
    %v3726 = vld [vmem:[#allocation8 + $0x64] sm:$0xf]
    %v3727 = vld [vmem:[#allocation8 + $0x68] sm:$0xf]
    %v3728 = vld [vmem:[#allocation8 + $0x6c] sm:$0xf]
    %v3729 = vld [vmem:[#allocation8 + $0x70] sm:$0xf]
    %v3730 = vld [vmem:[#allocation8 + $0x74] sm:$0xf]
    %v3731 = vld [vmem:[#allocation8 + $0x78] sm:$0xf]
    %v3732 = vld [vmem:[#allocation8 + $0x7c] sm:$0xf]
    %v3733 = vld [vmem:[#allocation8 + $0x80] sm:$0xf]
    %v3734 = vld [vmem:[#allocation8 + $0x84] sm:$0xf]
    %v3735 = vld [vmem:[#allocation8 + $0x88] sm:$0xf]
    %v3736 = vld [vmem:[#allocation8 + $0x8c] sm:$0xf]
    %v3737 = vld [vmem:[#allocation8 + $0x90] sm:$0xf]
    %v3738 = vld [vmem:[#allocation8 + $0x94] sm:$0xf]
    %v3739 = vld [vmem:[#allocation8 + $0x98] sm:$0xf]
    %v3740 = vld [vmem:[#allocation8 + $0x9c] sm:$0xf]
    %v3741 = vld [vmem:[#allocation8 + $0xa0] sm:$0xf]
    %v3742 = vld [vmem:[#allocation8 + $0xa4] sm:$0xf]
    %v3743 = vld [vmem:[#allocation8 + $0xa8] sm:$0xf]
    %v3744 = vld [vmem:[#allocation8 + $0xac] sm:$0xf]
    %v3745 = vld [vmem:[#allocation8 + $0xb0] sm:$0xf]
    %v3746 = vld [vmem:[#allocation8 + $0xb4] sm:$0xf]
    %v3747 = vld [vmem:[#allocation8 + $0xb8] sm:$0xf]
    %v3748 = vld [vmem:[#allocation8 + $0xbc] sm:$0xf]
    %v3749 = vld [vmem:[#allocation8 + $0xc0] sm:$0xf]
    %v3750 = vld [vmem:[#allocation8 + $0xc4] sm:$0xf]
    %v3751 = vld [vmem:[#allocation8 + $0xc8] sm:$0xf]
    %v3752 = vld [vmem:[#allocation8 + $0xcc] sm:$0xf]
    %v3753 = vld [vmem:[#allocation8 + $0xd0] sm:$0xf]
    %v3754 = vld [vmem:[#allocation8 + $0xd4] sm:$0xf]
    %v3755 = vld [vmem:[#allocation8 + $0xd8] sm:$0xf]
    %v3756 = vld [vmem:[#allocation8 + $0xdc] sm:$0xf]
    %v3757 = vld [vmem:[#allocation8 + $0xe0] sm:$0xf]
    %v3758 = vld [vmem:[#allocation8 + $0xe4] sm:$0xf]
    %v3759 = vld [vmem:[#allocation8 + $0xe8] sm:$0xf]
    %v3760 = vld [vmem:[#allocation8 + $0xec] sm:$0xf]
    %v3761 = vld [vmem:[#allocation8 + $0xf0] sm:$0xf]
    %v3762 = vld [vmem:[#allocation8 + $0xf4] sm:$0xf]
    %v3763 = vld [vmem:[#allocation8 + $0xf8] sm:$0xf]
    %v3764 = vld [vmem:[#allocation8 + $0xfc] sm:$0xf]
    %v3765 = vld [vmem:[%s6] sm:$0x1]
    %v3767 = vlaneseq
    %v3768 = vshrl.u32 %v3767, 7
    %v3769 = vsub.s32 0, %v3768
    %v3770 = vrot.slane %v3765, %v3769
    %v3836 = vunpack.c.l.b16 %v3701
    %v3837 = vunpack.c.l.b16 %v3702
    %v3838 = vunpack.c.l.b16 %v3703
    %v3839 = vunpack.c.l.b16 %v3704
    %v3840 = vunpack.c.l.b16 %v3705
    %v3841 = vunpack.c.l.b16 %v3706
    %v3842 = vunpack.c.l.b16 %v3707
    %v3843 = vunpack.c.l.b16 %v3708
    %v3844 = vunpack.c.l.b16 %v3709
    %v3845 = vunpack.c.l.b16 %v3710
    %v3846 = vunpack.c.l.b16 %v3711
    %v3847 = vunpack.c.l.b16 %v3712
    %v3848 = vunpack.c.l.b16 %v3713
    %v3849 = vunpack.c.l.b16 %v3714
    %v3850 = vunpack.c.l.b16 %v3715
    %v3851 = vunpack.c.l.b16 %v3716
    %v3852 = vunpack.c.l.b16 %v3717
    %v3853 = vunpack.c.l.b16 %v3718
    %v3854 = vunpack.c.l.b16 %v3719
    %v3855 = vunpack.c.l.b16 %v3720
    %v3856 = vunpack.c.l.b16 %v3721
    %v3857 = vunpack.c.l.b16 %v3722
    %v3858 = vunpack.c.l.b16 %v3723
    %v3859 = vunpack.c.l.b16 %v3724
    %v3860 = vunpack.c.l.b16 %v3725
    %v3861 = vunpack.c.l.b16 %v3726
    %v3862 = vunpack.c.l.b16 %v3727
    %v3863 = vunpack.c.l.b16 %v3728
    %v3864 = vunpack.c.l.b16 %v3729
    %v3865 = vunpack.c.l.b16 %v3730
    %v3866 = vunpack.c.l.b16 %v3731
    %v3867 = vunpack.c.l.b16 %v3732
    %v3868 = vunpack.c.l.b16 %v3733
    %v3869 = vunpack.c.l.b16 %v3734
    %v3870 = vunpack.c.l.b16 %v3735
    %v3871 = vunpack.c.l.b16 %v3736
    %v3872 = vunpack.c.l.b16 %v3737
    %v3873 = vunpack.c.l.b16 %v3738
    %v3874 = vunpack.c.l.b16 %v3739
    %v3875 = vunpack.c.l.b16 %v3740
    %v3876 = vunpack.c.l.b16 %v3741
    %v3877 = vunpack.c.l.b16 %v3742
    %v3878 = vunpack.c.l.b16 %v3743
    %v3879 = vunpack.c.l.b16 %v3744
    %v3880 = vunpack.c.l.b16 %v3745
    %v3881 = vunpack.c.l.b16 %v3746
    %v3882 = vunpack.c.l.b16 %v3747
    %v3883 = vunpack.c.l.b16 %v3748
    %v3884 = vunpack.c.l.b16 %v3749
    %v3885 = vunpack.c.l.b16 %v3750
    %v3886 = vunpack.c.l.b16 %v3751
    %v3887 = vunpack.c.l.b16 %v3752
    %v3888 = vunpack.c.l.b16 %v3753
    %v3889 = vunpack.c.l.b16 %v3754
    %v3890 = vunpack.c.l.b16 %v3755
    %v3891 = vunpack.c.l.b16 %v3756
    %v3892 = vunpack.c.l.b16 %v3757
    %v3893 = vunpack.c.l.b16 %v3758
    %v3894 = vunpack.c.l.b16 %v3759
    %v3895 = vunpack.c.l.b16 %v3760
    %v3896 = vunpack.c.l.b16 %v3761
    %v3897 = vunpack.c.l.b16 %v3762
    %v3898 = vunpack.c.l.b16 %v3763
    %v3899 = vunpack.c.l.b16 %v3764
    %v3900 = vpack.c.b16 %v3837, %v3836
    %v3901 = vpack.c.b16 %v3839, %v3838
    %v3902 = vpack.c.b16 %v3841, %v3840
    %v3903 = vpack.c.b16 %v3843, %v3842
    %v3904 = vpack.c.b16 %v3845, %v3844
    %v3905 = vpack.c.b16 %v3847, %v3846
    %v3906 = vpack.c.b16 %v3849, %v3848
    %v3907 = vpack.c.b16 %v3851, %v3850
    %v3908 = vpack.c.b16 %v3853, %v3852
    %v3909 = vpack.c.b16 %v3855, %v3854
    %v3910 = vpack.c.b16 %v3857, %v3856
    %v3911 = vpack.c.b16 %v3859, %v3858
    %v3912 = vpack.c.b16 %v3861, %v3860
    %v3913 = vpack.c.b16 %v3863, %v3862
    %v3914 = vpack.c.b16 %v3865, %v3864
    %v3915 = vpack.c.b16 %v3867, %v3866
    %v3916 = vpack.c.b16 %v3869, %v3868
    %v3917 = vpack.c.b16 %v3871, %v3870
    %v3918 = vpack.c.b16 %v3873, %v3872
    %v3919 = vpack.c.b16 %v3875, %v3874
    %v3920 = vpack.c.b16 %v3877, %v3876
    %v3921 = vpack.c.b16 %v3879, %v3878
    %v3922 = vpack.c.b16 %v3881, %v3880
    %v3923 = vpack.c.b16 %v3883, %v3882
    %v3924 = vpack.c.b16 %v3885, %v3884
    %v3925 = vpack.c.b16 %v3887, %v3886
    %v3926 = vpack.c.b16 %v3889, %v3888
    %v3927 = vpack.c.b16 %v3891, %v3890
    %v3928 = vpack.c.b16 %v3893, %v3892
    %v3929 = vpack.c.b16 %v3895, %v3894
    %v3930 = vpack.c.b16 %v3897, %v3896
    %v3931 = vpack.c.b16 %v3899, %v3898
    %3964 = vmatprep.subr.bf16.mxu0 0
    %3965 = vmatpush1.bf16.msra.mxu0 %v3900
    %3966 = vmatprep.subr.bf16.mxu0 0
    %3967 = vmatpush1.bf16.msra.mxu0 %v3901
    %3968 = vmatprep.subr.bf16.mxu0 0
    %3969 = vmatpush1.bf16.msra.mxu0 %v3902
    %3970 = vmatprep.subr.bf16.mxu0 0
    %3971 = vmatpush1.bf16.msra.mxu0 %v3903
    %3972 = vmatprep.subr.bf16.mxu0 0
    %3973 = vmatpush1.bf16.msra.mxu0 %v3904
    %3974 = vmatprep.subr.bf16.mxu0 0
    %3975 = vmatpush1.bf16.msra.mxu0 %v3905
    %3976 = vmatprep.subr.bf16.mxu0 0
    %3977 = vmatpush1.bf16.msra.mxu0 %v3906
    %3978 = vmatprep.subr.bf16.mxu0 0
    %3979 = vmatpush1.bf16.msra.mxu0 %v3907
    %3980 = vmatprep.subr.bf16.mxu0 0
    %3981 = vmatpush1.bf16.msra.mxu0 %v3908
    %3982 = vmatprep.subr.bf16.mxu0 0
    %3983 = vmatpush1.bf16.msra.mxu0 %v3909
    %3984 = vmatprep.subr.bf16.mxu0 0
    %3985 = vmatpush1.bf16.msra.mxu0 %v3910
    %3986 = vmatprep.subr.bf16.mxu0 0
    %3987 = vmatpush1.bf16.msra.mxu0 %v3911
    %3988 = vmatprep.subr.bf16.mxu0 0
    %3989 = vmatpush1.bf16.msra.mxu0 %v3912
    %3990 = vmatprep.subr.bf16.mxu0 0
    %3991 = vmatpush1.bf16.msra.mxu0 %v3913
    %3992 = vmatprep.subr.bf16.mxu0 0
    %3993 = vmatpush1.bf16.msra.mxu0 %v3914
    %3994 = vmatprep.subr.bf16.mxu0 0
    %3995 = vmatpush1.bf16.msra.mxu0 %v3915
    %3996 = vmatprep.mubr.bf16.mxu0 %v3638
    %3997 = vmatmul.mubr.bf16.gmra.mrb[0].mxu0 %v3637
    %v3998 = vpop.f32.mrb[0].mxu0
    %v3999 = vadd.f32 %v3770, %v3998
    %v4000 = vpop.f32.mrb[0].mxu0
    %v4001 = vpop.f32.mrb[0].mxu0
    %v4002 = vadd.f32 %v3770, %v4001
    %v4003 = vpop.f32.mrb[0].mxu0
    %4004 = vmatprep.mubr.bf16.mxu0 %v3642
    %4005 = vmatmul.mubr.bf16.gmra.mrb[0].mxu0 %v3641
    %v4006 = vpop.f32.mrb[0].mxu0
    %v4007 = vadd.f32 %v3770, %v4006
    %v4008 = vpop.f32.mrb[0].mxu0
    %v4009 = vpop.f32.mrb[0].mxu0
    %v4010 = vadd.f32 %v3770, %v4009
    %v4011 = vpop.f32.mrb[0].mxu0
    %4012 = vmatprep.mubr.bf16.mxu0 %v3646
    %4013 = vmatmul.mubr.bf16.gmra.mrb[0].mxu0 %v3645
    %v4014 = vpop.f32.mrb[0].mxu0
    %v4015 = vadd.f32 %v3770, %v4014
    %v4016 = vpop.f32.mrb[0].mxu0
    %v4017 = vpop.f32.mrb[0].mxu0
    %v4018 = vadd.f32 %v3770, %v4017
    %v4019 = vpop.f32.mrb[0].mxu0
    %4020 = vmatprep.mubr.bf16.mxu0 %v3650
    %4021 = vmatmul.mubr.bf16.gmra.mrb[0].mxu0 %v3649
    %v4022 = vpop.f32.mrb[0].mxu0
    %v4023 = vadd.f32 %v3770, %v4022
    %v4024 = vpop.f32.mrb[0].mxu0
    %v4025 = vpop.f32.mrb[0].mxu0
    %v4026 = vadd.f32 %v3770, %v4025
    %v4027 = vpop.f32.mrb[0].mxu0
    %4028 = vmatprep.mubr.bf16.mxu0 %v3654
    %4029 = vmatmul.mubr.bf16.gmra.mrb[0].mxu0 %v3653
    %v4030 = vpop.f32.mrb[0].mxu0
    %v4031 = vadd.f32 %v3770, %v4030
    %v4032 = vpop.f32.mrb[0].mxu0
    %v4033 = vpop.f32.mrb[0].mxu0
    %v4034 = vadd.f32 %v3770, %v4033
    %v4035 = vpop.f32.mrb[0].mxu0
    %4036 = vmatprep.mubr.bf16.mxu0 %v3658
    %4037 = vmatmul.mubr.bf16.gmra.mrb[0].mxu0 %v3657
    %v4038 = vpop.f32.mrb[0].mxu0
    %v4039 = vadd.f32 %v3770, %v4038
    %v4040 = vpop.f32.mrb[0].mxu0
    %v4041 = vpop.f32.mrb[0].mxu0
    %v4042 = vadd.f32 %v3770, %v4041
    %v4043 = vpop.f32.mrb[0].mxu0
    %4044 = vmatprep.mubr.bf16.mxu0 %v3662
    %4045 = vmatmul.mubr.bf16.gmra.mrb[0].mxu0 %v3661
    %v4046 = vpop.f32.mrb[0].mxu0
    %v4047 = vadd.f32 %v3770, %v4046
    %v4048 = vpop.f32.mrb[0].mxu0
    %v4049 = vpop.f32.mrb[0].mxu0
    %v4050 = vadd.f32 %v3770, %v4049
    %v4051 = vpop.f32.mrb[0].mxu0
    %4052 = vmatprep.mubr.bf16.mxu0 %v3666
    %4053 = vmatmul.mubr.bf16.gmra.mrb[0].mxu0 %v3665
    %v4054 = vpop.f32.mrb[0].mxu0
    %v4055 = vadd.f32 %v3770, %v4054
    %v4056 = vpop.f32.mrb[0].mxu0
    %v4057 = vpop.f32.mrb[0].mxu0
    %v4058 = vadd.f32 %v3770, %v4057
    %v4059 = vpop.f32.mrb[0].mxu0
    %4060 = vmatprep.mubr.bf16.mxu0 %v3670
    %4061 = vmatmul.mubr.bf16.gmra.mrb[0].mxu0 %v3669
    %v4062 = vpop.f32.mrb[0].mxu0
    %v4063 = vadd.f32 %v3770, %v4062
    %v4064 = vpop.f32.mrb[0].mxu0
    %v4065 = vpop.f32.mrb[0].mxu0
    %v4066 = vadd.f32 %v3770, %v4065
    %v4067 = vpop.f32.mrb[0].mxu0
    %4068 = vmatprep.mubr.bf16.mxu0 %v3674
    %4069 = vmatmul.mubr.bf16.gmra.mrb[0].mxu0 %v3673
    %v4070 = vpop.f32.mrb[0].mxu0
    %v4071 = vadd.f32 %v3770, %v4070
    %v4072 = vpop.f32.mrb[0].mxu0
    %v4073 = vpop.f32.mrb[0].mxu0
    %v4074 = vadd.f32 %v3770, %v4073
    %v4075 = vpop.f32.mrb[0].mxu0
    %4076 = vmatprep.mubr.bf16.mxu0 %v3678
    %4077 = vmatmul.mubr.bf16.gmra.mrb[0].mxu0 %v3677
    %v4078 = vpop.f32.mrb[0].mxu0
    %v4079 = vadd.f32 %v3770, %v4078
    %v4080 = vpop.f32.mrb[0].mxu0
    %v4081 = vpop.f32.mrb[0].mxu0
    %v4082 = vadd.f32 %v3770, %v4081
    %v4083 = vpop.f32.mrb[0].mxu0
    %4084 = vmatprep.mubr.bf16.mxu0 %v3682
    %4085 = vmatmul.mubr.bf16.gmra.mrb[0].mxu0 %v3681
    %v4086 = vpop.f32.mrb[0].mxu0
    %v4087 = vadd.f32 %v3770, %v4086
    %v4088 = vpop.f32.mrb[0].mxu0
    %v4089 = vpop.f32.mrb[0].mxu0
    %v4090 = vadd.f32 %v3770, %v4089
    %v4091 = vpop.f32.mrb[0].mxu0
    %4092 = vmatprep.mubr.bf16.mxu0 %v3686
    %4093 = vmatmul.mubr.bf16.gmra.mrb[0].mxu0 %v3685
    %v4094 = vpop.f32.mrb[0].mxu0
    %v4095 = vadd.f32 %v3770, %v4094
    %v4096 = vpop.f32.mrb[0].mxu0
    %v4097 = vpop.f32.mrb[0].mxu0
    %v4098 = vadd.f32 %v3770, %v4097
    %v4099 = vpop.f32.mrb[0].mxu0
    %4100 = vmatprep.mubr.bf16.mxu0 %v3690
    %4101 = vmatmul.mubr.bf16.gmra.mrb[0].mxu0 %v3689
    %v4102 = vpop.f32.mrb[0].mxu0
    %v4103 = vadd.f32 %v3770, %v4102
    %v4104 = vpop.f32.mrb[0].mxu0
    %v4105 = vpop.f32.mrb[0].mxu0
    %v4106 = vadd.f32 %v3770, %v4105
    %v4107 = vpop.f32.mrb[0].mxu0
    %4108 = vmatprep.mubr.bf16.mxu0 %v3694
    %4109 = vmatmul.mubr.bf16.gmra.mrb[0].mxu0 %v3693
    %v4110 = vpop.f32.mrb[0].mxu0
    %v4111 = vadd.f32 %v3770, %v4110
    %v4112 = vpop.f32.mrb[0].mxu0
    %v4113 = vpop.f32.mrb[0].mxu0
    %v4114 = vadd.f32 %v3770, %v4113
    %v4115 = vpop.f32.mrb[0].mxu0
    %4116 = vmatprep.mubr.bf16.mxu0 %v3698
    %4117 = vmatmul.mubr.bf16.gmra.mrb[0].mxu0 %v3697
    %v4118 = vpop.f32.mrb[0].mxu0
    %v4119 = vadd.f32 %v3770, %v4118
    %v4120 = vpop.f32.mrb[0].mxu0
    %v4121 = vpop.f32.mrb[0].mxu0
    %v4122 = vadd.f32 %v3770, %v4121
    %v4123 = vpop.f32.mrb[0].mxu0
    %4124 = vdwg.mxu0
    %4125 = vmatprep.subr.bf16.mxu0 0
    %4126 = vmatpush1.bf16.msra.mxu0 %v3916
    %4127 = vmatprep.subr.bf16.mxu0 0
    %4128 = vmatpush1.bf16.msra.mxu0 %v3917
    %4129 = vmatprep.subr.bf16.mxu0 0
    %4130 = vmatpush1.bf16.msra.mxu0 %v3918
    %4131 = vmatprep.subr.bf16.mxu0 0
    %4132 = vmatpush1.bf16.msra.mxu0 %v3919
    %4133 = vmatprep.subr.bf16.mxu0 0
    %4134 = vmatpush1.bf16.msra.mxu0 %v3920
    %4135 = vmatprep.subr.bf16.mxu0 0
    %4136 = vmatpush1.bf16.msra.mxu0 %v3921
    %4137 = vmatprep.subr.bf16.mxu0 0
    %4138 = vmatpush1.bf16.msra.mxu0 %v3922
    %4139 = vmatprep.subr.bf16.mxu0 0
    %4140 = vmatpush1.bf16.msra.mxu0 %v3923
    %4141 = vmatprep.subr.bf16.mxu0 0
    %4142 = vmatpush1.bf16.msra.mxu0 %v3924
    %4143 = vmatprep.subr.bf16.mxu0 0
    %4144 = vmatpush1.bf16.msra.mxu0 %v3925
    %4145 = vmatprep.subr.bf16.mxu0 0
    %4146 = vmatpush1.bf16.msra.mxu0 %v3926
    %4147 = vmatprep.subr.bf16.mxu0 0
    %4148 = vmatpush1.bf16.msra.mxu0 %v3927
    %4149 = vmatprep.subr.bf16.mxu0 0
    %4150 = vmatpush1.bf16.msra.mxu0 %v3928
    %4151 = vmatprep.subr.bf16.mxu0 0
    %4152 = vmatpush1.bf16.msra.mxu0 %v3929
    %4153 = vmatprep.subr.bf16.mxu0 0
    %4154 = vmatpush1.bf16.msra.mxu0 %v3930
    %4155 = vmatprep.subr.bf16.mxu0 0
    %4156 = vmatpush1.bf16.msra.mxu0 %v3931
    %4157 = vmatprep.mubr.bf16.mxu0 %v3640
    %4158 = vmatmul.mubr.bf16.gmra.mrb[0].mxu0 %v3639
    %v4159 = vpop.f32.mrb[0].mxu0
    %v4160 = vadd.f32 %v3999, %v4159
    %v4161 = vpop.f32.mrb[0].mxu0
    %v4162 = vpop.f32.mrb[0].mxu0
    %v4163 = vadd.f32 %v4002, %v4162
    %v4164 = vpop.f32.mrb[0].mxu0
    %4165 = vmatprep.mubr.bf16.mxu0 %v3644
    %4166 = vmatmul.mubr.bf16.gmra.mrb[0].mxu0 %v3643
    %v4167 = vpop.f32.mrb[0].mxu0
    %v4168 = vadd.f32 %v4007, %v4167
    %v4169 = vpop.f32.mrb[0].mxu0
    %v4170 = vpop.f32.mrb[0].mxu0
    %v4171 = vadd.f32 %v4010, %v4170
    %v4172 = vpop.f32.mrb[0].mxu0
    %4173 = vmatprep.mubr.bf16.mxu0 %v3648
    %4174 = vmatmul.mubr.bf16.gmra.mrb[0].mxu0 %v3647
    %v4175 = vpop.f32.mrb[0].mxu0
    %v4176 = vadd.f32 %v4015, %v4175
    %v4177 = vpop.f32.mrb[0].mxu0
    %v4178 = vpop.f32.mrb[0].mxu0
    %v4179 = vadd.f32 %v4018, %v4178
    %v4180 = vpop.f32.mrb[0].mxu0
    %4181 = vmatprep.mubr.bf16.mxu0 %v3652
    %4182 = vmatmul.mubr.bf16.gmra.mrb[0].mxu0 %v3651
    %v4183 = vpop.f32.mrb[0].mxu0
    %v4184 = vadd.f32 %v4023, %v4183
    %v4185 = vpop.f32.mrb[0].mxu0
    %v4186 = vpop.f32.mrb[0].mxu0
    %v4187 = vadd.f32 %v4026, %v4186
    %v4188 = vpop.f32.mrb[0].mxu0
    %4189 = vmatprep.mubr.bf16.mxu0 %v3656
    %4190 = vmatmul.mubr.bf16.gmra.mrb[0].mxu0 %v3655
    %v4191 = vpop.f32.mrb[0].mxu0
    %v4192 = vadd.f32 %v4031, %v4191
    %v4193 = vpop.f32.mrb[0].mxu0
    %v4194 = vpop.f32.mrb[0].mxu0
    %v4195 = vadd.f32 %v4034, %v4194
    %v4196 = vpop.f32.mrb[0].mxu0
    %4197 = vmatprep.mubr.bf16.mxu0 %v3660
    %4198 = vmatmul.mubr.bf16.gmra.mrb[0].mxu0 %v3659
    %v4199 = vpop.f32.mrb[0].mxu0
    %v4200 = vadd.f32 %v4039, %v4199
    %v4201 = vpop.f32.mrb[0].mxu0
    %v4202 = vpop.f32.mrb[0].mxu0
    %v4203 = vadd.f32 %v4042, %v4202
    %v4204 = vpop.f32.mrb[0].mxu0
    %4205 = vmatprep.mubr.bf16.mxu0 %v3664
    %4206 = vmatmul.mubr.bf16.gmra.mrb[0].mxu0 %v3663
    %v4207 = vpop.f32.mrb[0].mxu0
    %v4208 = vadd.f32 %v4047, %v4207
    %v4209 = vpop.f32.mrb[0].mxu0
    %v4210 = vpop.f32.mrb[0].mxu0
    %v4211 = vadd.f32 %v4050, %v4210
    %v4212 = vpop.f32.mrb[0].mxu0
    %4213 = vmatprep.mubr.bf16.mxu0 %v3668
    %4214 = vmatmul.mubr.bf16.gmra.mrb[0].mxu0 %v3667
    %v4215 = vpop.f32.mrb[0].mxu0
    %v4216 = vadd.f32 %v4055, %v4215
    %v4217 = vpop.f32.mrb[0].mxu0
    %v4218 = vpop.f32.mrb[0].mxu0
    %v4219 = vadd.f32 %v4058, %v4218
    %v4220 = vpop.f32.mrb[0].mxu0
    %4221 = vmatprep.mubr.bf16.mxu0 %v3672
    %4222 = vmatmul.mubr.bf16.gmra.mrb[0].mxu0 %v3671
    %v4223 = vpop.f32.mrb[0].mxu0
    %v4224 = vadd.f32 %v4063, %v4223
    %v4225 = vpop.f32.mrb[0].mxu0
    %v4226 = vpop.f32.mrb[0].mxu0
    %v4227 = vadd.f32 %v4066, %v4226
    %v4228 = vpop.f32.mrb[0].mxu0
    %4229 = vmatprep.mubr.bf16.mxu0 %v3676
    %4230 = vmatmul.mubr.bf16.gmra.mrb[0].mxu0 %v3675
    %v4231 = vpop.f32.mrb[0].mxu0
    %v4232 = vadd.f32 %v4071, %v4231
    %v4233 = vpop.f32.mrb[0].mxu0
    %v4234 = vpop.f32.mrb[0].mxu0
    %v4235 = vadd.f32 %v4074, %v4234
    %v4236 = vpop.f32.mrb[0].mxu0
    %4237 = vmatprep.mubr.bf16.mxu0 %v3680
    %4238 = vmatmul.mubr.bf16.gmra.mrb[0].mxu0 %v3679
    %v4239 = vpop.f32.mrb[0].mxu0
    %v4240 = vadd.f32 %v4079, %v4239
    %v4241 = vpop.f32.mrb[0].mxu0
    %v4242 = vpop.f32.mrb[0].mxu0
    %v4243 = vadd.f32 %v4082, %v4242
    %v4244 = vpop.f32.mrb[0].mxu0
    %4245 = vmatprep.mubr.bf16.mxu0 %v3684
    %4246 = vmatmul.mubr.bf16.gmra.mrb[0].mxu0 %v3683
    %v4247 = vpop.f32.mrb[0].mxu0
    %v4248 = vadd.f32 %v4087, %v4247
    %v4249 = vpop.f32.mrb[0].mxu0
    %v4250 = vpop.f32.mrb[0].mxu0
    %v4251 = vadd.f32 %v4090, %v4250
    %v4252 = vpop.f32.mrb[0].mxu0
    %4253 = vmatprep.mubr.bf16.mxu0 %v3688
    %4254 = vmatmul.mubr.bf16.gmra.mrb[0].mxu0 %v3687
    %v4255 = vpop.f32.mrb[0].mxu0
    %v4256 = vadd.f32 %v4095, %v4255
    %v4257 = vpop.f32.mrb[0].mxu0
    %v4258 = vpop.f32.mrb[0].mxu0
    %v4259 = vadd.f32 %v4098, %v4258
    %v4260 = vpop.f32.mrb[0].mxu0
    %4261 = vmatprep.mubr.bf16.mxu0 %v3692
    %4262 = vmatmul.mubr.bf16.gmra.mrb[0].mxu0 %v3691
    %v4263 = vpop.f32.mrb[0].mxu0
    %v4264 = vadd.f32 %v4103, %v4263
    %v4265 = vpop.f32.mrb[0].mxu0
    %v4266 = vpop.f32.mrb[0].mxu0
    %v4267 = vadd.f32 %v4106, %v4266
    %v4268 = vpop.f32.mrb[0].mxu0
    %4269 = vmatprep.mubr.bf16.mxu0 %v3696
    %4270 = vmatmul.mubr.bf16.gmra.mrb[0].mxu0 %v3695
    %v4271 = vpop.f32.mrb[0].mxu0
    %v4272 = vadd.f32 %v4111, %v4271
    %v4273 = vpop.f32.mrb[0].mxu0
    %v4274 = vpop.f32.mrb[0].mxu0
    %v4275 = vadd.f32 %v4114, %v4274
    %v4276 = vpop.f32.mrb[0].mxu0
    %4277 = vmatprep.mubr.bf16.mxu0 %v3700
    %4278 = vmatmul.mubr.bf16.gmra.mrb[0].mxu0 %v3699
    %v4279 = vpop.f32.mrb[0].mxu0
    %v4280 = vadd.f32 %v4119, %v4279
    %v4281 = vpop.f32.mrb[0].mxu0
    %v4282 = vpop.f32.mrb[0].mxu0
    %v4283 = vadd.f32 %v4122, %v4282
    %v4284 = vpop.f32.mrb[0].mxu0
    %4285 = vdwg.mxu0
    %4286 = vst [vmem:[#allocation10] sm:$0xff] %v4160
    %4287 = vst [vmem:[#allocation10 + $0x8] sm:$0xff] %v4163
    %4288 = vst [vmem:[#allocation10 + $0x10] sm:$0xff] %v4168
    %4289 = vst [vmem:[#allocation10 + $0x18] sm:$0xff] %v4171
    %4290 = vst [vmem:[#allocation10 + $0x20] sm:$0xff] %v4176
    %4291 = vst [vmem:[#allocation10 + $0x28] sm:$0xff] %v4179
    %4292 = vst [vmem:[#allocation10 + $0x30] sm:$0xff] %v4184
    %4293 = vst [vmem:[#allocation10 + $0x38] sm:$0xff] %v4187
    %4294 = vst [vmem:[#allocation10 + $0x40] sm:$0xff] %v4192
    %4295 = vst [vmem:[#allocation10 + $0x48] sm:$0xff] %v4195
    %4296 = vst [vmem:[#allocation10 + $0x50] sm:$0xff] %v4200
    %4297 = vst [vmem:[#allocation10 + $0x58] sm:$0xff] %v4203
    %4298 = vst [vmem:[#allocation10 + $0x60] sm:$0xff] %v4208
    %4299 = vst [vmem:[#allocation10 + $0x68] sm:$0xff] %v4211
    %4300 = vst [vmem:[#allocation10 + $0x70] sm:$0xff] %v4216
    %4301 = vst [vmem:[#allocation10 + $0x78] sm:$0xff] %v4219
    %4302 = vst [vmem:[#allocation10 + $0x80] sm:$0xff] %v4224
    %4303 = vst [vmem:[#allocation10 + $0x88] sm:$0xff] %v4227
    %4304 = vst [vmem:[#allocation10 + $0x90] sm:$0xff] %v4232
    %4305 = vst [vmem:[#allocation10 + $0x98] sm:$0xff] %v4235
    %4306 = vst [vmem:[#allocation10 + $0xa0] sm:$0xff] %v4240
    %4307 = vst [vmem:[#allocation10 + $0xa8] sm:$0xff] %v4243
    %4308 = vst [vmem:[#allocation10 + $0xb0] sm:$0xff] %v4248
    %4309 = vst [vmem:[#allocation10 + $0xb8] sm:$0xff] %v4251
    %4310 = vst [vmem:[#allocation10 + $0xc0] sm:$0xff] %v4256
    %4311 = vst [vmem:[#allocation10 + $0xc8] sm:$0xff] %v4259
    %4312 = vst [vmem:[#allocation10 + $0xd0] sm:$0xff] %v4264
    %4313 = vst [vmem:[#allocation10 + $0xd8] sm:$0xff] %v4267
    %4314 = vst [vmem:[#allocation10 + $0xe0] sm:$0xff] %v4272
    %4315 = vst [vmem:[#allocation10 + $0xe8] sm:$0xff] %v4275
    %4316 = vst [vmem:[#allocation10 + $0xf0] sm:$0xff] %v4280
    %4317 = vst [vmem:[#allocation10 + $0xf8] sm:$0xff] %v4283
    // Predicated region
    $region46: #{tpu_custom_call.1} parent=1 // pred_check
      _
    $region47: #{tpu_custom_call.1} parent=1 // pred_check_branch
      %4319 = sbr.rel (0) target = $region49
    $region48: #{tpu_custom_call.1} parent=1 // pred_region
      %s4321 = ssub.s32 4096, 4096
      %4322 = vsyncadd [#allocation4], %s4321
      %s4323 = sshll.u32 [#allocation10], 4
      %s4324 = int_to_ptr.vmem [resolvable:$true] %s4323
      %4329 = dma.vmem_to_hbm [thread:$0]  %s4324, 4096, %s7, [#allocation4], 128, 128, 8
    $region49: #{tpu_custom_call.1} parent=1 // pred_fallthru
      _
    // Predicated region
    $region50: #{tpu_custom_call.1} parent=1 // pred_check
      _
    $region51: #{tpu_custom_call.1} parent=1 // pred_check_branch
      %4331 = sbr.rel (0) target = $region53
    $region52: #{tpu_custom_call.1} parent=1 // pred_region
      %4332 = dma.done [#allocation4], 4096
    $region53: #{tpu_custom_call.1} parent=1 // pred_fallthru
      _
    %4333 = vsyncpa [#allocation3], 1
    %4334 = vsyncpa [#allocation6], 1
    %4335 = vsyncpa [#allocation9], 1
    %4336 = vsyncpa [#allocation4], 1

</llo_original>
